<compile_context>
chip_gen: v7x
topology: tpu7x:2x2x1
jax: 0.10.0
libtpu: 0.0.40
codegen_flags: <defaults>
</compile_context>

<pallas_src>
import jax
import jax.numpy as jnp
import numpy as np
from jax.experimental import pallas as pl
from jax.experimental.pallas import tpu as pltpu


COMPUTE_DTYPE = jnp.bfloat16   # MXU operand dtype; accumulation stays f32


# ---------------------------------------------------------------------------
# Fused encoder kernel: one grid step processes TG groups of N points each.
# ---------------------------------------------------------------------------
def _encoder_kernel(pts_ref,                       # (TG, N, 3)            f32
                    w1a_ref, b1a_ref,              # (3,128) f32, (1,128)  [BN1 folded]
                    wcat_ref, b1b_ref,             # (128,768) bf16, (1,256) f32
                    w2ag_ref, b2a_ref,             # (256,512) bf16, (1,512) f32 [BN2 + b1b@W2a_l folded]
                    w2b_ref, b2b_ref,              # (512,C) bf16, (1,C) f32
                    o_ref):                        # (TG, C)
    tg, n, _ = pts_ref.shape
    c_enc = o_ref.shape[-1]
    c_mid = b1b_ref.shape[-1]                      # 256

    x = pts_ref[...].reshape(tg * n, 3)

    # ---- first_conv stage 1: Conv1d(3,128,1)+BN+ReLU (folded). K=3 is <0.2% of
    #      the MACs -> keep f32; cast the ReLU output to bf16 for the MXU chain.
    h = jnp.dot(x, w1a_ref[...], preferred_element_type=jnp.float32) + b1a_ref[...]
    h = jnp.maximum(h, 0.0).astype(COMPUTE_DTYPE)                         # (M, 128)

    # ---- one wide K=128 matmul: [w1b | w1b @ W2a_l]
    wide = jnp.dot(h, wcat_ref[...], preferred_element_type=jnp.float32)  # (M, 768)
    f = wide[:, :c_mid] + b1b_ref[...]          # local features (M, 256) -> global max path
    l_part = wide[:, c_mid:]                    # local branch of conv2a   (M, 512)

    # ---- per-group max pool over points -> global feature, then global branch
    gmax = jnp.max(f.reshape(tg, n, c_mid), axis=1)                       # (TG, 256)
    g_part = jnp.dot(gmax.astype(COMPUTE_DTYPE), w2ag_ref[...],
                     preferred_element_type=jnp.float32)                  # (TG, 512)

    # ---- conv2a pre-activation = global part + local part + folded bias, ReLU
    h2 = (l_part.reshape(tg, n, -1)
          + g_part.reshape(tg, 1, -1)
          + b2a_ref[...].reshape(1, 1, -1))
    h2 = jnp.maximum(h2, 0.0).astype(COMPUTE_DTYPE).reshape(tg * n, -1)   # (M, 512)

    # ---- second_conv stage 2: Conv1d(512, C, 1)
    o = jnp.dot(h2, w2b_ref[...], preferred_element_type=jnp.float32) + b2b_ref[...]

    # ---- final per-group max pool over points -> (TG, C), lane-dense output
    o_ref[...] = jnp.max(o.reshape(tg, n, c_enc), axis=1).astype(o_ref.dtype)


# ---------------------------------------------------------------------------
# Tile selection: large tiles (amortize step overhead, long MXU M) but
#   * tg divides BG,
#   * output sublane block is a multiple of 8 (or the full BG),
#   * >=2 grid steps whenever possible (both TensorCores on v7x),
#   * tg*N stays under a VMEM-derived point budget (safe on v7x's 64 MiB too).
# ---------------------------------------------------------------------------
def _pick_groups_per_step(bg, n, target_points):
    max_tg = max(1, target_points // max(n, 1))
    best, best_key = bg, None
    for d in range(1, bg + 1):
        if bg % d:
            continue
        if d % 8 != 0 and d != bg:
            continue
        key = (d <= max_tg, (bg // d) >= 2, d)
        if best_key is None or key > best_key:
            best, best_key = d, key
    return best


# ---------------------------------------------------------------------------
# Pallas wrapper
# ---------------------------------------------------------------------------
def pallas_encoder(pts, p, *, groups_per_step=None, target_points_per_step=2048,
                   vmem_limit_bytes=None):
    """pts: (BG, N, 3) float32; p: folded/pre-transposed params; -> (BG, C)."""
    bg, n, _ = pts.shape
    c_enc = p["w2b"].shape[1]

    if groups_per_step is not None:
        tg = groups_per_step
    else:
        tg = _pick_groups_per_step(bg, n, target_points_per_step)
    assert bg % tg == 0, "B*G must be divisible by the group tile"

    if vmem_limit_bytes is None:
        # ~16 KB/point of live intermediates (incl. the (tg,n,3) block padded to
        # 128 lanes, double-buffered) + ~8 MiB for double-buffered weights/IO.
        # Capped at 48 MiB so the same code path stays inside v7x's 64 MiB VMEM.
        vmem_limit_bytes = min(48 << 20, max(32 << 20, tg * n * 16 * 1024 + (8 << 20)))

    const2 = lambda i: (0, 0)

    return pl.pallas_call(
        _encoder_kernel,
        out_shape=jax.ShapeDtypeStruct((bg, c_enc), pts.dtype),
        grid=(bg // tg,),
        in_specs=[
            pl.BlockSpec((tg, n, 3), lambda i: (i, 0, 0)),
            pl.BlockSpec(p["w1a"].shape, const2),
            pl.BlockSpec(p["b1a"].shape, const2),
            pl.BlockSpec(p["w_cat"].shape, const2),
            pl.BlockSpec(p["b1b"].shape, const2),
            pl.BlockSpec(p["w2a_g"].shape, const2),
            pl.BlockSpec(p["b2a"].shape, const2),
            pl.BlockSpec(p["w2b"].shape, const2),
            pl.BlockSpec(p["b2b"].shape, const2),
        ],
        out_specs=pl.BlockSpec((tg, c_enc), lambda i: (i, 0)),
        compiler_params=pltpu.CompilerParams(
            dimension_semantics=("parallel",),
            vmem_limit_bytes=int(vmem_limit_bytes),
        ),
    )(pts, p["w1a"], p["b1a"], p["w_cat"], p["b1b"],
      p["w2a_g"], p["b2a"], p["w2b"], p["b2b"])


def encoder_forward(point_groups, folded_params):
    """point_groups: (B, G, N, 3) -> (B, G, encoder_channel)."""
    b, g, n, _ = point_groups.shape
    pts = point_groups.reshape(b * g, n, 3)          # free: leading-dim reshape only
    out = pallas_encoder(pts, folded_params)         # (BG, C)
    return out.reshape(b, g, -1)


# ---------------------------------------------------------------------------
# One-time parameter prep: fold eval-mode BN into the preceding 1x1 convs,
# fold conv1b into the local branch of conv2a (no ReLU in between), pre-transpose
# everything to (in, out), and cast the big MXU weights to bf16.
# ---------------------------------------------------------------------------
def fold_params(raw, eps=1e-5, compute_dtype=COMPUTE_DTYPE):
    hi = jax.lax.Precision.HIGHEST

    s1 = raw["bn1_gamma"] / jnp.sqrt(raw["bn1_var"] + eps)
    w1a = raw["conv1a_w"].T * s1[None, :]                                   # (3, 128)
    b1a = ((raw["conv1a_b"] - raw["bn1_mean"]) * s1 + raw["bn1_beta"])[None, :]
    w1b = raw["conv1b_w"].T                                                 # (128, 256)
    b1b = raw["conv1b_b"][None, :]                                          # (1, 256)

    s2 = raw["bn2_gamma"] / jnp.sqrt(raw["bn2_var"] + eps)
    w2a = raw["conv2a_w"].T * s2[None, :]                                   # (512, 512)
    b2a_bn = (raw["conv2a_b"] - raw["bn2_mean"]) * s2 + raw["bn2_beta"]     # (512,)
    w2b = raw["conv2b_w"].T                                                 # (512, C)
    b2b = raw["conv2b_b"][None, :]

    c_mid = w1b.shape[1]   # 256: first input channels of conv2a see the GLOBAL feature
    w2a_g = w2a[:c_mid]    # (256, 512)  global branch
    w2a_l = w2a[c_mid:]    # (256, 512)  local branch

    # No ReLU between conv1b and conv2a:
    #   f @ W2a_l = (h @ w1b + b1b) @ W2a_l = h @ (w1b @ W2a_l) + b1b @ W2a_l
    w_fold = jnp.dot(w1b, w2a_l, precision=hi)                              # (128, 512)
    b2a = b2a_bn[None, :] + jnp.dot(b1b, w2a_l, precision=hi)               # (1, 512)

    # One wide K=128 weight: lanes [0:256] -> f, lanes [256:768] -> conv2a local branch.
    w_cat = jnp.concatenate([w1b, w_fold], axis=1)                          # (128, 768)

    return {
        "w1a": w1a.astype(jnp.float32), "b1a": b1a.astype(jnp.float32),
        "w_cat": w_cat.astype(compute_dtype), "b1b": b1b.astype(jnp.float32),
        "w2a_g": w2a_g.astype(compute_dtype), "b2a": b2a.astype(jnp.float32),
        "w2b": w2b.astype(compute_dtype), "b2b": b2b.astype(jnp.float32),
    }


# ---------------------------------------------------------------------------
# Pure-JAX reference (eval-mode BatchNorm, f32 HIGHEST precision).
# ---------------------------------------------------------------------------
def encoder_reference(point_groups, raw, eps=1e-5):
    hi = jax.lax.Precision.HIGHEST
    b, g, n, _ = point_groups.shape
    x = point_groups.reshape(b * g, n, 3)

    y = jnp.dot(x, raw["conv1a_w"].T, precision=hi) + raw["conv1a_b"]
    y = (y - raw["bn1_mean"]) / jnp.sqrt(raw["bn1_var"] + eps) * raw["bn1_gamma"] + raw["bn1_beta"]
    y = jnp.maximum(y, 0.0)
    feature = jnp.dot(y, raw["conv1b_w"].T, precision=hi) + raw["conv1b_b"]      # (BG, N, 256)

    feature_global = jnp.max(feature, axis=1, keepdims=True)                     # (BG, 1, 256)
    feature = jnp.concatenate(
        [jnp.broadcast_to(feature_global, feature.shape), feature], axis=-1)     # (BG, N, 512)

    y = jnp.dot(feature, raw["conv2a_w"].T, precision=hi) + raw["conv2a_b"]
    y = (y - raw["bn2_mean"]) / jnp.sqrt(raw["bn2_var"] + eps) * raw["bn2_gamma"] + raw["bn2_beta"]
    y = jnp.maximum(y, 0.0)
    y = jnp.dot(y, raw["conv2b_w"].T, precision=hi) + raw["conv2b_b"]            # (BG, N, C)

    return jnp.max(y, axis=1).reshape(b, g, -1)


# ---------------------------------------------------------------------------
# Demo / self-check
# ---------------------------------------------------------------------------
if __name__ == "__main__":
    # Small shapes consistent with the module: B batches, G groups, N points per
    # group, 3 coords; encoder_channel = 256.  BG=16, tg=8 -> 2 grid steps.
    B, G, N = 2, 8, 32
    ENCODER_CHANNEL = 256

    key = jax.random.PRNGKey(0)
    keys = jax.random.split(key, 16)

    point_groups = jax.random.normal(keys[0], (B, G, N, 3), dtype=jnp.float32)

    def w(k, out_ch, in_ch):
        return (in_ch ** -0.5) * jax.random.normal(k, (out_ch, in_ch), dtype=jnp.float32)

    # Raw params in PyTorch layout (Conv1d kernel-size-1 weights stored as (out, in)).
    raw = {
        "conv1a_w": w(keys[1], 128, 3),
        "conv1a_b": 0.02 * jax.random.normal(keys[2], (128,), dtype=jnp.float32),
        "bn1_gamma": 1.0 + 0.1 * jax.random.normal(keys[3], (128,), dtype=jnp.float32),
        "bn1_beta": 0.1 * jax.random.normal(keys[4], (128,), dtype=jnp.float32),
        "bn1_mean": 0.1 * jax.random.normal(keys[5], (128,), dtype=jnp.float32),
        "bn1_var": 0.5 + jax.random.uniform(keys[6], (128,), dtype=jnp.float32),
        "conv1b_w": w(keys[7], 256, 128),
        "conv1b_b": 0.02 * jax.random.normal(keys[8], (256,), dtype=jnp.float32),
        "conv2a_w": w(keys[9], 512, 512),
        "conv2a_b": 0.02 * jax.random.normal(keys[10], (512,), dtype=jnp.float32),
        "bn2_gamma": 1.0 + 0.1 * jax.random.normal(keys[11], (512,), dtype=jnp.float32),
        "bn2_beta": 0.1 * jax.random.normal(keys[12], (512,), dtype=jnp.float32),
        "bn2_mean": 0.1 * jax.random.normal(keys[13], (512,), dtype=jnp.float32),
        "bn2_var": 0.5 + jax.random.uniform(keys[14], (512,), dtype=jnp.float32),
        "conv2b_w": w(keys[15], ENCODER_CHANNEL, 512),
        "conv2b_b": jnp.zeros((ENCODER_CHANNEL,), dtype=jnp.float32),
    }

    # Fold BN + conv1b->conv2a_local, pre-transpose, cast MXU weights to bf16 — once.
    folded = fold_params(raw)

    fwd = jax.jit(encoder_forward)
    out = jax.block_until_ready(fwd(point_groups, folded))     # (B, G, C)

    # bf16 MXU operands (f32 accumulation) vs f32 HIGHEST reference -> loose tolerance.
    ref = encoder_reference(point_groups, raw)
    np.testing.assert_allclose(np.asarray(out), np.asarray(ref), rtol=3e-2, atol=3e-2)
    assert out.shape == (B, G, ENCODER_CHANNEL)

    print("KERNEL_OK")
</pallas_src>

<mosaic_0001>
module attributes {stable_mosaic.version = 11 : i64} {
  func.func @_encoder_kernel(%arg0: i32, %arg1: memref<8x32x3xf32, #tpu.memory_space<vmem>>, %arg2: memref<3x128xf32, #tpu.memory_space<vmem>>, %arg3: memref<1x128xf32, #tpu.memory_space<vmem>>, %arg4: memref<128x768xbf16, #tpu.memory_space<vmem>>, %arg5: memref<1x256xf32, #tpu.memory_space<vmem>>, %arg6: memref<256x512xbf16, #tpu.memory_space<vmem>>, %arg7: memref<1x512xf32, #tpu.memory_space<vmem>>, %arg8: memref<512x256xbf16, #tpu.memory_space<vmem>>, %arg9: memref<1x256xf32, #tpu.memory_space<vmem>>, %arg10: memref<8x256xf32, #tpu.memory_space<vmem>>) attributes {dimension_semantics = [#tpu.dimension_semantics<parallel>], iteration_bounds = array<i64: 2>, scalar_prefetch = 0 : i64, scratch_operands = 0 : i64, tpu.core_type = #tpu.core_type<tc>, window_params = [{transform_indices = @transform_0, window_bounds = array<i64: 8, 32, 3>}, {pipeline_mode = #tpu.pipeline_mode<synchronous>, transform_indices = @transform_1, window_bounds = array<i64: 3, 128>}, {pipeline_mode = #tpu.pipeline_mode<synchronous>, transform_indices = @transform_2, window_bounds = array<i64: 1, 128>}, {pipeline_mode = #tpu.pipeline_mode<synchronous>, transform_indices = @transform_3, window_bounds = array<i64: 128, 768>}, {pipeline_mode = #tpu.pipeline_mode<synchronous>, transform_indices = @transform_4, window_bounds = array<i64: 1, 256>}, {pipeline_mode = #tpu.pipeline_mode<synchronous>, transform_indices = @transform_5, window_bounds = array<i64: 256, 512>}, {pipeline_mode = #tpu.pipeline_mode<synchronous>, transform_indices = @transform_6, window_bounds = array<i64: 1, 512>}, {pipeline_mode = #tpu.pipeline_mode<synchronous>, transform_indices = @transform_7, window_bounds = array<i64: 512, 256>}, {pipeline_mode = #tpu.pipeline_mode<synchronous>, transform_indices = @transform_8, window_bounds = array<i64: 1, 256>}, {transform_indices = @transform_9, window_bounds = array<i64: 8, 256>}]} {
    %c0 = arith.constant 0 : index
    %c0_0 = arith.constant 0 : index
    %c0_1 = arith.constant 0 : index
    %0 = vector.load %arg1[%c0, %c0_0, %c0_1] : memref<8x32x3xf32, #tpu.memory_space<vmem>>, vector<8x32x3xf32>
    %1 = vector.shape_cast %0 : vector<8x32x3xf32> to vector<256x3xf32>
    %c0_2 = arith.constant 0 : index
    %c0_3 = arith.constant 0 : index
    %2 = vector.load %arg2[%c0_2, %c0_3] : memref<3x128xf32, #tpu.memory_space<vmem>>, vector<3x128xf32>
    %cst = arith.constant dense<0.000000e+00> : vector<256x128xf32>
    %3 = tpu.matmul %1, %2, %cst {dimension_numbers = #tpu.dot_dimension_numbers<[1], [0], [0], [1], [0, 0, 1, 1], [], []>} : vector<256x3xf32>, vector<3x128xf32>, vector<256x128xf32> -> vector<256x128xf32>
    %c0_4 = arith.constant 0 : index
    %c0_5 = arith.constant 0 : index
    %4 = vector.load %arg3[%c0_4, %c0_5] : memref<1x128xf32, #tpu.memory_space<vmem>>, vector<1x128xf32>
    %5 = vector.broadcast %4 : vector<1x128xf32> to vector<256x128xf32>
    %6 = arith.addf %3, %5 : vector<256x128xf32>
    %cst_6 = arith.constant 0.000000e+00 : f32
    %7 = vector.broadcast %cst_6 : f32 to vector<256x128xf32>
    %8 = arith.maximumf %6, %7 : vector<256x128xf32>
    %9 = arith.truncf %8 : vector<256x128xf32> to vector<256x128xbf16>
    %c0_7 = arith.constant 0 : index
    %c0_8 = arith.constant 0 : index
    %10 = vector.load %arg4[%c0_7, %c0_8] : memref<128x768xbf16, #tpu.memory_space<vmem>>, vector<128x768xbf16>
    %cst_9 = arith.constant dense<0.000000e+00> : vector<256x768xf32>
    %11 = tpu.matmul %9, %10, %cst_9 {dimension_numbers = #tpu.dot_dimension_numbers<[1], [0], [0], [1], [0, 0, 1, 1], [], []>} : vector<256x128xbf16>, vector<128x768xbf16>, vector<256x768xf32> -> vector<256x768xf32>
    %12 = vector.extract_strided_slice %11 {offsets = [0, 0], sizes = [256, 256], strides = [1, 1]} : vector<256x768xf32> to vector<256x256xf32>
    %c0_10 = arith.constant 0 : index
    %c0_11 = arith.constant 0 : index
    %13 = vector.load %arg5[%c0_10, %c0_11] : memref<1x256xf32, #tpu.memory_space<vmem>>, vector<1x256xf32>
    %14 = vector.broadcast %13 : vector<1x256xf32> to vector<256x256xf32>
    %15 = arith.addf %12, %14 : vector<256x256xf32>
    %16 = vector.extract_strided_slice %11 {offsets = [0, 256], sizes = [256, 512], strides = [1, 1]} : vector<256x768xf32> to vector<256x512xf32>
    %17 = vector.shape_cast %15 : vector<256x256xf32> to vector<8x32x256xf32>
    %cst_12 = arith.constant dense<0xFF800000> : vector<8x256xf32>
    %18 = vector.multi_reduction <maximumf>, %17, %cst_12 [1] : vector<8x32x256xf32> to vector<8x256xf32>
    %19 = arith.truncf %18 : vector<8x256xf32> to vector<8x256xbf16>
    %c0_13 = arith.constant 0 : index
    %c0_14 = arith.constant 0 : index
    %20 = vector.load %arg6[%c0_13, %c0_14] : memref<256x512xbf16, #tpu.memory_space<vmem>>, vector<256x512xbf16>
    %cst_15 = arith.constant dense<0.000000e+00> : vector<8x512xf32>
    %21 = tpu.matmul %19, %20, %cst_15 {dimension_numbers = #tpu.dot_dimension_numbers<[1], [0], [0], [1], [0, 0, 1, 1], [], []>} : vector<8x256xbf16>, vector<256x512xbf16>, vector<8x512xf32> -> vector<8x512xf32>
    %22 = vector.shape_cast %16 : vector<256x512xf32> to vector<8x32x512xf32>
    %23 = vector.shape_cast %21 : vector<8x512xf32> to vector<8x1x512xf32>
    %24 = vector.broadcast %23 : vector<8x1x512xf32> to vector<8x32x512xf32>
    %25 = arith.addf %22, %24 : vector<8x32x512xf32>
    %c0_16 = arith.constant 0 : index
    %c0_17 = arith.constant 0 : index
    %26 = vector.load %arg7[%c0_16, %c0_17] : memref<1x512xf32, #tpu.memory_space<vmem>>, vector<1x512xf32>
    %27 = vector.shape_cast %26 : vector<1x512xf32> to vector<1x1x512xf32>
    %28 = vector.broadcast %27 : vector<1x1x512xf32> to vector<8x32x512xf32>
    %29 = arith.addf %25, %28 : vector<8x32x512xf32>
    %cst_18 = arith.constant 0.000000e+00 : f32
    %30 = vector.broadcast %cst_18 : f32 to vector<8x32x512xf32>
    %31 = arith.maximumf %29, %30 : vector<8x32x512xf32>
    %32 = arith.truncf %31 : vector<8x32x512xf32> to vector<8x32x512xbf16>
    %33 = vector.shape_cast %32 : vector<8x32x512xbf16> to vector<256x512xbf16>
    %c0_19 = arith.constant 0 : index
    %c0_20 = arith.constant 0 : index
    %34 = vector.load %arg8[%c0_19, %c0_20] : memref<512x256xbf16, #tpu.memory_space<vmem>>, vector<512x256xbf16>
    %cst_21 = arith.constant dense<0.000000e+00> : vector<256x256xf32>
    %35 = tpu.matmul %33, %34, %cst_21 {dimension_numbers = #tpu.dot_dimension_numbers<[1], [0], [0], [1], [0, 0, 1, 1], [], []>} : vector<256x512xbf16>, vector<512x256xbf16>, vector<256x256xf32> -> vector<256x256xf32>
    %c0_22 = arith.constant 0 : index
    %c0_23 = arith.constant 0 : index
    %36 = vector.load %arg9[%c0_22, %c0_23] : memref<1x256xf32, #tpu.memory_space<vmem>>, vector<1x256xf32>
    %37 = vector.broadcast %36 : vector<1x256xf32> to vector<256x256xf32>
    %38 = arith.addf %35, %37 : vector<256x256xf32>
    %39 = vector.shape_cast %38 : vector<256x256xf32> to vector<8x32x256xf32>
    %cst_24 = arith.constant dense<0xFF800000> : vector<8x256xf32>
    %40 = vector.multi_reduction <maximumf>, %39, %cst_24 [1] : vector<8x32x256xf32> to vector<8x256xf32>
    %c0_25 = arith.constant 0 : index
    %c0_26 = arith.constant 0 : index
    %41 = vector.load %arg10[%c0_25, %c0_26] : memref<8x256xf32, #tpu.memory_space<vmem>>, vector<8x256xf32>
    tpu.vector_store %arg10[%c0_25, %c0_26], %40 {strides = array<i32>} : memref<8x256xf32, #tpu.memory_space<vmem>>, vector<8x256xf32>,
    return
  }
  func.func @transform_0(%arg0: i32) -> (i32, i32, i32) {
    %c0_i32 = arith.constant 0 : i32
    %c0_i32_0 = arith.constant 0 : i32
    %c0_i32_1 = arith.constant 0 : i32
    return %arg0, %c0_i32, %c0_i32_0 : i32, i32, i32
  }
  func.func @transform_1(%arg0: i32) -> (i32, i32) {
    %c0_i32 = arith.constant 0 : i32
    %c0_i32_0 = arith.constant 0 : i32
    %c0_i32_1 = arith.constant 0 : i32
    return %c0_i32, %c0_i32_0 : i32, i32
  }
  func.func @transform_2(%arg0: i32) -> (i32, i32) {
    %c0_i32 = arith.constant 0 : i32
    %c0_i32_0 = arith.constant 0 : i32
    %c0_i32_1 = arith.constant 0 : i32
    return %c0_i32, %c0_i32_0 : i32, i32
  }
  func.func @transform_3(%arg0: i32) -> (i32, i32) {
    %c0_i32 = arith.constant 0 : i32
    %c0_i32_0 = arith.constant 0 : i32
    %c0_i32_1 = arith.constant 0 : i32
    return %c0_i32, %c0_i32_0 : i32, i32
  }
  func.func @transform_4(%arg0: i32) -> (i32, i32) {
    %c0_i32 = arith.constant 0 : i32
    %c0_i32_0 = arith.constant 0 : i32
    %c0_i32_1 = arith.constant 0 : i32
    return %c0_i32, %c0_i32_0 : i32, i32
  }
  func.func @transform_5(%arg0: i32) -> (i32, i32) {
    %c0_i32 = arith.constant 0 : i32
    %c0_i32_0 = arith.constant 0 : i32
    %c0_i32_1 = arith.constant 0 : i32
    return %c0_i32, %c0_i32_0 : i32, i32
  }
  func.func @transform_6(%arg0: i32) -> (i32, i32) {
    %c0_i32 = arith.constant 0 : i32
    %c0_i32_0 = arith.constant 0 : i32
    %c0_i32_1 = arith.constant 0 : i32
    return %c0_i32, %c0_i32_0 : i32, i32
  }
  func.func @transform_7(%arg0: i32) -> (i32, i32) {
    %c0_i32 = arith.constant 0 : i32
    %c0_i32_0 = arith.constant 0 : i32
    %c0_i32_1 = arith.constant 0 : i32
    return %c0_i32, %c0_i32_0 : i32, i32
  }
  func.func @transform_8(%arg0: i32) -> (i32, i32) {
    %c0_i32 = arith.constant 0 : i32
    %c0_i32_0 = arith.constant 0 : i32
    %c0_i32_1 = arith.constant 0 : i32
    return %c0_i32, %c0_i32_0 : i32, i32
  }
  func.func @transform_9(%arg0: i32) -> (i32, i32) {
    %c0_i32 = arith.constant 0 : i32
    %c0_i32_0 = arith.constant 0 : i32
    return %arg0, %c0_i32 : i32, i32
  }
}

</mosaic_0001>

<llo_original>
// kernel: encoder_forward.1
$region0: #{encoder_forward.1}
  #allocation0 [shape = 'u32[]', space=smem, size = 0x4, offset = 0x4, fixed_abs, tag = 'smem constant byte address 0x4 - core index']
  #allocation1 [shape = 'u32[144,128]{1,0:T(1,128)}', space=vmem, size = 0x12000, scoped, tag = 'internal scratch']
  %s0 = inlined_call_operand.vmem [shape: f32[16,32,3], index: 0, kind: input, shape index: {}]
  %s1 = inlined_call_operand.vmem [shape: f32[3,128], index: 1, kind: input, shape index: {}]
  %s2 = inlined_call_operand.vmem [shape: f32[1,128], index: 2, kind: input, shape index: {}]
  %s3 = inlined_call_operand.hbm [shape: bf16[128,768], index: 3, kind: input, shape index: {}]
  %s4 = inlined_call_operand.vmem [shape: f32[1,256], index: 4, kind: input, shape index: {}]
  %s5 = inlined_call_operand.vmem [shape: bf16[256,512], index: 5, kind: input, shape index: {}]
  %s6 = inlined_call_operand.vmem [shape: f32[1,512], index: 6, kind: input, shape index: {}]
  %s7 = inlined_call_operand.hbm [shape: bf16[512,256], index: 7, kind: input, shape index: {}]
  %s8 = inlined_call_operand.vmem [shape: f32[1,256], index: 8, kind: input, shape index: {}]
  %s9 = inlined_call_operand.hbm [shape: f32[16,256], index: 9, kind: output, shape index: {}]
  %s10 = sld [smem:[#allocation0]]
  $region77: #{encoder_forward.1} parent=0
    _
  %s12 = ssub.s32 1, %s10
  %s13 = scalar_select 0, %s12, %s10
  $region1: #{encoder_forward.1} parent=0
    #allocation2 [shape = 'u8[196608]{0}', space=vmem, size = 0x30000, scoped, tag = 'input window, operand 3, single buffered']
    #allocation3 [shape = 's32[2]{0}', space=sflag, size = 0x8, scoped, tag = 'scoped memory for encoder_forward.1']
    #allocation4 [shape = 's32[2]{0}', space=sflag, size = 0x8, scoped, tag = 'scoped memory for encoder_forward.1']
    #allocation5 [shape = 'u8[262144]{0}', space=vmem, size = 0x40000, scoped, tag = 'input window, operand 7, single buffered']
    #allocation6 [shape = 's32[1]{0}', space=sflag, size = 0x4, scoped, tag = 'scoped memory for encoder_forward.1']
    #allocation7 [shape = 'u8[16384]{0}', space=vmem, size = 0x4000, scoped, tag = 'output window, operand 0']
    %14 = vsyncpa [#allocation3], 0
    %15 = vsyncpa [#allocation6], 0
    %16 = vsyncpa [#allocation4], 0
    %s17 = scalar_lea.sflag [#allocation4], 1
    %18 = vsyncpa %s17, 0
    loop: start=0, step=1, limit=4
    $region2: #{encoder_forward.1} parent=1 // loop_pre_header
      _
    $region3: #{encoder_forward.1} parent=1 // loop_header
      %s20 = sphi 0, %s24
      %p21 = scmp.ge.s32.totalorder %s20, 4
      %s30 = sphi 0, %s32
      %s33 = sphi 0, %s30
      %s34 = sphi 0, %s33
      %s50 = sphi 0, %s34
      %s54 = sphi 0, %s54
      %s56 = sphi 0, %s54
      %s57 = sphi 0, %s56
      %s71 = sphi 0, %s57
      %s75 = sphi 0, %s75
      %s77 = sphi 0, %s75
      %s78 = sphi 0, %s77
      %s92 = sphi 0, %s78
      %s96 = sphi 0, %s96
      %s98 = sphi 0, %s96
      %s99 = sphi 0, %s98
      %s113 = sphi 0, %s99
      %s117 = sphi 0, %s117
      %s119 = sphi 0, %s117
      %s120 = sphi 0, %s119
      %s134 = sphi 0, %s120
      %s138 = sphi 0, %s138
      %s140 = sphi 0, %s138
      %s141 = sphi 0, %s140
      %s155 = sphi 0, %s141
      %s159 = sphi 0, %s159
      %s161 = sphi 0, %s159
      %s162 = sphi 0, %s161
      %s176 = sphi 0, %s162
      %s180 = sphi 0, %s180
      %s182 = sphi 0, %s180
      %s183 = sphi 0, %s182
      %s197 = sphi 0, %s183
      %s201 = sphi 0, %s201
      %s203 = sphi 0, %s201
      %s204 = sphi 0, %s203
      %s218 = sphi 0, %s204
      %s224 = sphi 0, %s226
      %s227 = sphi 0, %s224
      %s228 = sphi 0, %s227
      %s244 = sphi 0, %s228
    $region4: #{encoder_forward.1} parent=1 // loop_header_branch
      %23 = sbr.rel (%p21) target = $region8
    $region5: #{encoder_forward.1} parent=1 // loop_body
      %s25 = ssub.s32 %s20, 1
      %s26 = ssub.s32 %s20, 2
      %s27 = sadd.s32 %s20, 1
      %s28 = ssub.s32 %s20, %s27
      %p29 = scmp.eq.s32.totalorder %s28, 0
      %s31 = sadd.s32 %s30, 1
      %s32 = scalar_select %p29, %s30, %s31
      %p35 = pneg %p29
      %p36 = scmp.eq.s32.totalorder %s20, 1
      %p37 = por %p35, %p36
      %p38 = scmp.ne.s32.totalorder %s30, %s33
      %p39 = scmp.eq.s32.totalorder %s20, 0
      %p40 = por %p38, %p39
      %p41 = scmp.ne.s32.totalorder %s30, %s33
      %p42 = scmp.eq.s32.totalorder %s25, 1
      %p43 = por %p41, %p42
      %p44 = scmp.ne.s32.totalorder %s33, %s34
      %p45 = scmp.eq.s32.totalorder %s25, 0
      %p46 = por %p44, %p45
      %p47 = scmp.ne.s32.totalorder %s33, %s34
      %p48 = scmp.eq.s32.totalorder %s26, 1
      %p49 = por %p47, %p48
      %p51 = scmp.ne.s32.totalorder %s34, %s50
      %p52 = scmp.eq.s32.totalorder %s26, 0
      %p53 = por %p51, %p52
      %s55 = sadd.s32 %s54, 1
      %p58 = scmp.eq.s32.totalorder %s20, 1
      %p59 = scmp.ne.s32.totalorder %s54, %s56
      %p60 = scmp.eq.s32.totalorder %s20, 0
      %p61 = por %p59, %p60
      %p62 = scmp.ne.s32.totalorder %s54, %s56
      %p63 = scmp.eq.s32.totalorder %s25, 1
      %p64 = por %p62, %p63
      %p65 = scmp.ne.s32.totalorder %s56, %s57
      %p66 = scmp.eq.s32.totalorder %s25, 0
      %p67 = por %p65, %p66
      %p68 = scmp.ne.s32.totalorder %s56, %s57
      %p69 = scmp.eq.s32.totalorder %s26, 1
      %p70 = por %p68, %p69
      %p72 = scmp.ne.s32.totalorder %s57, %s71
      %p73 = scmp.eq.s32.totalorder %s26, 0
      %p74 = por %p72, %p73
      %s76 = sadd.s32 %s75, 1
      %p79 = scmp.eq.s32.totalorder %s20, 1
      %p80 = scmp.ne.s32.totalorder %s75, %s77
      %p81 = scmp.eq.s32.totalorder %s20, 0
      %p82 = por %p80, %p81
      %p83 = scmp.ne.s32.totalorder %s75, %s77
      %p84 = scmp.eq.s32.totalorder %s25, 1
      %p85 = por %p83, %p84
      %p86 = scmp.ne.s32.totalorder %s77, %s78
      %p87 = scmp.eq.s32.totalorder %s25, 0
      %p88 = por %p86, %p87
      %p89 = scmp.ne.s32.totalorder %s77, %s78
      %p90 = scmp.eq.s32.totalorder %s26, 1
      %p91 = por %p89, %p90
      %p93 = scmp.ne.s32.totalorder %s78, %s92
      %p94 = scmp.eq.s32.totalorder %s26, 0
      %p95 = por %p93, %p94
      %s97 = sadd.s32 %s96, 1
      %p100 = scmp.eq.s32.totalorder %s20, 1
      %p101 = scmp.ne.s32.totalorder %s96, %s98
      %p102 = scmp.eq.s32.totalorder %s20, 0
      %p103 = por %p101, %p102
      %p104 = scmp.ne.s32.totalorder %s96, %s98
      %p105 = scmp.eq.s32.totalorder %s25, 1
      %p106 = por %p104, %p105
      %p107 = scmp.ne.s32.totalorder %s98, %s99
      %p108 = scmp.eq.s32.totalorder %s25, 0
      %p109 = por %p107, %p108
      %p110 = scmp.ne.s32.totalorder %s98, %s99
      %p111 = scmp.eq.s32.totalorder %s26, 1
      %p112 = por %p110, %p111
      %p114 = scmp.ne.s32.totalorder %s99, %s113
      %p115 = scmp.eq.s32.totalorder %s26, 0
      %p116 = por %p114, %p115
      %s118 = sadd.s32 %s117, 1
      %p121 = scmp.eq.s32.totalorder %s20, 1
      %p122 = scmp.ne.s32.totalorder %s117, %s119
      %p123 = scmp.eq.s32.totalorder %s20, 0
      %p124 = por %p122, %p123
      %p125 = scmp.ne.s32.totalorder %s117, %s119
      %p126 = scmp.eq.s32.totalorder %s25, 1
      %p127 = por %p125, %p126
      %p128 = scmp.ne.s32.totalorder %s119, %s120
      %p129 = scmp.eq.s32.totalorder %s25, 0
      %p130 = por %p128, %p129
      %p131 = scmp.ne.s32.totalorder %s119, %s120
      %p132 = scmp.eq.s32.totalorder %s26, 1
      %p133 = por %p131, %p132
      %p135 = scmp.ne.s32.totalorder %s120, %s134
      %p136 = scmp.eq.s32.totalorder %s26, 0
      %p137 = por %p135, %p136
      %s139 = sadd.s32 %s138, 1
      %p142 = scmp.eq.s32.totalorder %s20, 1
      %p143 = scmp.ne.s32.totalorder %s138, %s140
      %p144 = scmp.eq.s32.totalorder %s20, 0
      %p145 = por %p143, %p144
      %p146 = scmp.ne.s32.totalorder %s138, %s140
      %p147 = scmp.eq.s32.totalorder %s25, 1
      %p148 = por %p146, %p147
      %p149 = scmp.ne.s32.totalorder %s140, %s141
      %p150 = scmp.eq.s32.totalorder %s25, 0
      %p151 = por %p149, %p150
      %p152 = scmp.ne.s32.totalorder %s140, %s141
      %p153 = scmp.eq.s32.totalorder %s26, 1
      %p154 = por %p152, %p153
      %p156 = scmp.ne.s32.totalorder %s141, %s155
      %p157 = scmp.eq.s32.totalorder %s26, 0
      %p158 = por %p156, %p157
      %s160 = sadd.s32 %s159, 1
      %p163 = scmp.eq.s32.totalorder %s20, 1
      %p164 = scmp.ne.s32.totalorder %s159, %s161
      %p165 = scmp.eq.s32.totalorder %s20, 0
      %p166 = por %p164, %p165
      %p167 = scmp.ne.s32.totalorder %s159, %s161
      %p168 = scmp.eq.s32.totalorder %s25, 1
      %p169 = por %p167, %p168
      %p170 = scmp.ne.s32.totalorder %s161, %s162
      %p171 = scmp.eq.s32.totalorder %s25, 0
      %p172 = por %p170, %p171
      %p173 = scmp.ne.s32.totalorder %s161, %s162
      %p174 = scmp.eq.s32.totalorder %s26, 1
      %p175 = por %p173, %p174
      %p177 = scmp.ne.s32.totalorder %s162, %s176
      %p178 = scmp.eq.s32.totalorder %s26, 0
      %p179 = por %p177, %p178
      %s181 = sadd.s32 %s180, 1
      %p184 = scmp.eq.s32.totalorder %s20, 1
      %p185 = scmp.ne.s32.totalorder %s180, %s182
      %p186 = scmp.eq.s32.totalorder %s20, 0
      %p187 = por %p185, %p186
      %p188 = scmp.ne.s32.totalorder %s180, %s182
      %p189 = scmp.eq.s32.totalorder %s25, 1
      %p190 = por %p188, %p189
      %p191 = scmp.ne.s32.totalorder %s182, %s183
      %p192 = scmp.eq.s32.totalorder %s25, 0
      %p193 = por %p191, %p192
      %p194 = scmp.ne.s32.totalorder %s182, %s183
      %p195 = scmp.eq.s32.totalorder %s26, 1
      %p196 = por %p194, %p195
      %p198 = scmp.ne.s32.totalorder %s183, %s197
      %p199 = scmp.eq.s32.totalorder %s26, 0
      %p200 = por %p198, %p199
      %s202 = sadd.s32 %s201, 1
      %p205 = scmp.eq.s32.totalorder %s20, 1
      %p206 = scmp.ne.s32.totalorder %s201, %s203
      %p207 = scmp.eq.s32.totalorder %s20, 0
      %p208 = por %p206, %p207
      %p209 = scmp.ne.s32.totalorder %s201, %s203
      %p210 = scmp.eq.s32.totalorder %s25, 1
      %p211 = por %p209, %p210
      %p212 = scmp.ne.s32.totalorder %s203, %s204
      %p213 = scmp.eq.s32.totalorder %s25, 0
      %p214 = por %p212, %p213
      %p215 = scmp.ne.s32.totalorder %s203, %s204
      %p216 = scmp.eq.s32.totalorder %s26, 1
      %p217 = por %p215, %p216
      %p219 = scmp.ne.s32.totalorder %s204, %s218
      %p220 = scmp.eq.s32.totalorder %s26, 0
      %p221 = por %p219, %p220
      %s222 = ssub.s32 %s20, %s27
      %p223 = scmp.eq.s32.totalorder %s222, 0
      %s225 = sadd.s32 %s224, 1
      %s226 = scalar_select %p223, %s224, %s225
      %p229 = pneg %p223
      %p230 = scmp.eq.s32.totalorder %s20, 1
      %p231 = por %p229, %p230
      %p232 = scmp.ne.s32.totalorder %s224, %s227
      %p233 = scmp.eq.s32.totalorder %s20, 0
      %p234 = por %p232, %p233
      %p235 = scmp.ne.s32.totalorder %s224, %s227
      %p236 = scmp.eq.s32.totalorder %s25, 1
      %p237 = por %p235, %p236
      %p238 = scmp.ne.s32.totalorder %s227, %s228
      %p239 = scmp.eq.s32.totalorder %s25, 0
      %p240 = por %p238, %p239
      %p241 = scmp.ne.s32.totalorder %s227, %s228
      %p242 = scmp.eq.s32.totalorder %s26, 1
      %p243 = por %p241, %p242
      %p245 = scmp.ne.s32.totalorder %s228, %s244
      %p246 = scmp.eq.s32.totalorder %s26, 0
      %p247 = por %p245, %p246
      %p248 = scmp.le.s32.totalorder 1, %s20
      %p249 = scmp.lt.s32.totalorder %s20, 3
      %p250 = pnand %p248, %p249
      %p251 = pneg %p250
      // Predicated region
      $region9: #{encoder_forward.1} parent=5 // pred_check
        _
      $region10: #{encoder_forward.1} parent=5 // pred_check_branch
        %253 = sbr.rel (%p250) target = $region12
      $region11: #{encoder_forward.1} parent=5 // pred_region
        %s254 = ssub.s32 %s20, 1
        // Predicated region
        $region13: #{encoder_forward.1} parent=11 // pred_check
          %p255 = pneg %p67
        $region14: #{encoder_forward.1} parent=11 // pred_check_branch
          %257 = sbr.rel (%p255) target = $region16
        $region15: #{encoder_forward.1} parent=11 // pred_region
          _
        $region16: #{encoder_forward.1} parent=11 // pred_fallthru
          _
        // Predicated region
        $region17: #{encoder_forward.1} parent=11 // pred_check
          %p258 = pneg %p88
        $region18: #{encoder_forward.1} parent=11 // pred_check_branch
          %260 = sbr.rel (%p258) target = $region20
        $region19: #{encoder_forward.1} parent=11 // pred_region
          _
        $region20: #{encoder_forward.1} parent=11 // pred_fallthru
          _
        // Predicated region
        $region21: #{encoder_forward.1} parent=11 // pred_check
          %p261 = pneg %p109
        $region22: #{encoder_forward.1} parent=11 // pred_check_branch
          %263 = sbr.rel (%p261) target = $region24
        $region23: #{encoder_forward.1} parent=11 // pred_region
          %s265 = ssub.s32 6144, 6144
          %266 = vsyncadd [#allocation3], %s265
          %s267 = sshll.u32 [#allocation2], 4
          %s268 = int_to_ptr.vmem [resolvable:$true] %s267
          %273 = dma.hbm_to_vmem [thread:$0]  %s3, 6144, %s268, [#allocation3], 384, 384, 24
        $region24: #{encoder_forward.1} parent=11 // pred_fallthru
          _
        // Predicated region
        $region25: #{encoder_forward.1} parent=11 // pred_check
          %p274 = pneg %p130
        $region26: #{encoder_forward.1} parent=11 // pred_check_branch
          %276 = sbr.rel (%p274) target = $region28
        $region27: #{encoder_forward.1} parent=11 // pred_region
          _
        $region28: #{encoder_forward.1} parent=11 // pred_fallthru
          _
        // Predicated region
        $region29: #{encoder_forward.1} parent=11 // pred_check
          %p277 = pneg %p151
        $region30: #{encoder_forward.1} parent=11 // pred_check_branch
          %279 = sbr.rel (%p277) target = $region32
        $region31: #{encoder_forward.1} parent=11 // pred_region
          _
        $region32: #{encoder_forward.1} parent=11 // pred_fallthru
          _
        // Predicated region
        $region33: #{encoder_forward.1} parent=11 // pred_check
          %p280 = pneg %p172
        $region34: #{encoder_forward.1} parent=11 // pred_check_branch
          %282 = sbr.rel (%p280) target = $region36
        $region35: #{encoder_forward.1} parent=11 // pred_region
          _
        $region36: #{encoder_forward.1} parent=11 // pred_fallthru
          _
        // Predicated region
        $region37: #{encoder_forward.1} parent=11 // pred_check
          %p283 = pneg %p193
        $region38: #{encoder_forward.1} parent=11 // pred_check_branch
          %285 = sbr.rel (%p283) target = $region40
        $region39: #{encoder_forward.1} parent=11 // pred_region
          %s287 = ssub.s32 8192, 8192
          %288 = vsyncadd [#allocation6], %s287
          %s289 = sshll.u32 [#allocation5], 4
          %s290 = int_to_ptr.vmem [resolvable:$true] %s289
          %295 = dma.hbm_to_vmem [thread:$0]  %s7, 8192, %s290, [#allocation6], 128, 128, 8
        $region40: #{encoder_forward.1} parent=11 // pred_fallthru
          _
        // Predicated region
        $region41: #{encoder_forward.1} parent=11 // pred_check
          %p296 = pneg %p214
        $region42: #{encoder_forward.1} parent=11 // pred_check_branch
          %298 = sbr.rel (%p296) target = $region44
        $region43: #{encoder_forward.1} parent=11 // pred_region
          _
        $region44: #{encoder_forward.1} parent=11 // pred_fallthru
          _
      $region12: #{encoder_forward.1} parent=5 // pred_fallthru
        _
      %p299 = scmp.lt.s32.totalorder %s20, 2
      // Predicated region
      $region45: #{encoder_forward.1} parent=5 // pred_check
        %p300 = pneg %p299
      $region46: #{encoder_forward.1} parent=5 // pred_check_branch
        %302 = sbr.rel (%p300) target = $region48
      $region47: #{encoder_forward.1} parent=5 // pred_region
        // Predicated region
        $region49: #{encoder_forward.1} parent=47 // pred_check
          %p303 = pneg %p40
        $region50: #{encoder_forward.1} parent=47 // pred_check_branch
          %305 = sbr.rel (%p303) target = $region52
        $region51: #{encoder_forward.1} parent=47 // pred_region
          %s306 = smul.u32 8, %s20
          %p307 = scmp.lt.s32.totalorder %s306, 15
          %s308 = scalar_select %p307, %s306, 15
          %s309 = smul.addr %s308, 4
          %s310 = smul.addr %s309, 8
          %s311 = scalar_lea.vmem %s0, %s310
          %s312 = smul.u32 8, %s20
        $region52: #{encoder_forward.1} parent=47 // pred_fallthru
          _
      $region48: #{encoder_forward.1} parent=5 // pred_fallthru
        _
      %p313 = scmp.le.s32.totalorder 1, %s20
      %p314 = scmp.lt.s32.totalorder %s20, 3
      %p315 = pnand %p313, %p314
      %p316 = pneg %p315
      // Predicated region
      $region53: #{encoder_forward.1} parent=5 // pred_check
        _
      $region54: #{encoder_forward.1} parent=5 // pred_check_branch
        %318 = sbr.rel (%p315) target = $region56
      $region55: #{encoder_forward.1} parent=5 // pred_region
        %s319 = ssub.s32 %s20, 1
        // Predicated region
        $region57: #{encoder_forward.1} parent=55 // pred_check
          %p320 = pneg %p109
        $region58: #{encoder_forward.1} parent=55 // pred_check_branch
          %322 = sbr.rel (%p320) target = $region60
        $region59: #{encoder_forward.1} parent=55 // pred_region
          %323 = dma.done [#allocation3], 6144
        $region60: #{encoder_forward.1} parent=55 // pred_fallthru
          _
        // Predicated region
        $region61: #{encoder_forward.1} parent=55 // pred_check
          %p324 = pneg %p193
        $region62: #{encoder_forward.1} parent=55 // pred_check_branch
          %326 = sbr.rel (%p324) target = $region64
        $region63: #{encoder_forward.1} parent=55 // pred_region
          %327 = dma.done [#allocation6], 8192
        $region64: #{encoder_forward.1} parent=55 // pred_fallthru
          _
        %s328 = smul.u32 8, %s25
        %p329 = scmp.lt.s32.totalorder %s328, 15
        %s330 = scalar_select %p329, %s328, 15
        %s331 = smul.addr %s330, 4
        %s332 = smul.addr %s331, 8
        %s333 = scalar_lea.vmem %s0, %s332
        %p334 = pneg %p46
        %p335 = pneg %p43
        %p336 = pneg %p67
        %p337 = pneg %p64
        %p338 = pneg %p88
        %p339 = pneg %p85
        %p340 = pneg %p109
        %p341 = pneg %p106
        %p342 = pneg %p130
        %p343 = pneg %p127
        %p344 = pneg %p151
        %p345 = pneg %p148
        %p346 = pneg %p172
        %p347 = pneg %p169
        %p348 = pneg %p193
        %p349 = pneg %p190
        %p350 = pneg %p214
        %p351 = pneg %p211
        %p352 = pneg %p240
        %p353 = pneg %p237
        %s354 = sand.u32 %s227, 1
        %s355 = scalar_lea.sflag [#allocation4], %s354
        %s356 = sand.u32 %s227, 1
        %s357 = smul.addr %s356, 16
        %s358 = scalar_lea.vmem [#allocation7], %s357
        %s359 = smul.u32 8, %s25
        %p360 = scmp.lt.s32.totalorder %s359, 15
        %s361 = scalar_select %p360, %s359, 15
        %s362 = smul.addr %s361, 4
        %s363 = smul.addr %s362, 8
        %s364 = scalar_lea.vmem %s0, %s363
        %s365 = smul.u32 8, %s25
        %v367 = vld [vmem:[%s364] sm:$0xff]
        %v368 = vld [vmem:[%s364 + $0x8] sm:$0xff]
        %v369 = vld [vmem:[%s364 + $0x10] sm:$0xff]
        %v370 = vld [vmem:[%s364 + $0x18] sm:$0xff]
        %v371 = vld [vmem:[%s364 + $0x20] sm:$0xff]
        %v372 = vld [vmem:[%s364 + $0x28] sm:$0xff]
        %v373 = vld [vmem:[%s364 + $0x30] sm:$0xff]
        %v374 = vld [vmem:[%s364 + $0x38] sm:$0xff]
        %v375 = vld [vmem:[%s364 + $0x40] sm:$0xff]
        %v376 = vld [vmem:[%s364 + $0x48] sm:$0xff]
        %v377 = vld [vmem:[%s364 + $0x50] sm:$0xff]
        %v378 = vld [vmem:[%s364 + $0x58] sm:$0xff]
        %v379 = vld [vmem:[%s364 + $0x60] sm:$0xff]
        %v380 = vld [vmem:[%s364 + $0x68] sm:$0xff]
        %v381 = vld [vmem:[%s364 + $0x70] sm:$0xff]
        %v382 = vld [vmem:[%s364 + $0x78] sm:$0xff]
        %v383 = vld [vmem:[%s364 + $0x80] sm:$0xff]
        %v384 = vld [vmem:[%s364 + $0x88] sm:$0xff]
        %v385 = vld [vmem:[%s364 + $0x90] sm:$0xff]
        %v386 = vld [vmem:[%s364 + $0x98] sm:$0xff]
        %v387 = vld [vmem:[%s364 + $0xa0] sm:$0xff]
        %v388 = vld [vmem:[%s364 + $0xa8] sm:$0xff]
        %v389 = vld [vmem:[%s364 + $0xb0] sm:$0xff]
        %v390 = vld [vmem:[%s364 + $0xb8] sm:$0xff]
        %v391 = vld [vmem:[%s364 + $0xc0] sm:$0xff]
        %v392 = vld [vmem:[%s364 + $0xc8] sm:$0xff]
        %v393 = vld [vmem:[%s364 + $0xd0] sm:$0xff]
        %v394 = vld [vmem:[%s364 + $0xd8] sm:$0xff]
        %v395 = vld [vmem:[%s364 + $0xe0] sm:$0xff]
        %v396 = vld [vmem:[%s364 + $0xe8] sm:$0xff]
        %v397 = vld [vmem:[%s364 + $0xf0] sm:$0xff]
        %v398 = vld [vmem:[%s364 + $0xf8] sm:$0xff]
        %v399 = vld [vmem:[%s1] sm:$0x7]
        %v400 = vld [vmem:[%s2] sm:$0x1]
        %v402 = vlaneseq
        %v403 = vshrl.u32 %v402, 7
        %v404 = vsub.s32 0, %v403
        %v405 = vrot.slane %v400, %v404
        %vm407 = vcmask 23552
        %v409 = vsel %vm407, %v367, 0
        %v412 = vsel %vm407, %v368, 0
        %v415 = vsel %vm407, %v369, 0
        %v418 = vsel %vm407, %v370, 0
        %v421 = vsel %vm407, %v371, 0
        %v424 = vsel %vm407, %v372, 0
        %v427 = vsel %vm407, %v373, 0
        %v430 = vsel %vm407, %v374, 0
        %v433 = vsel %vm407, %v375, 0
        %v436 = vsel %vm407, %v376, 0
        %v439 = vsel %vm407, %v377, 0
        %v442 = vsel %vm407, %v378, 0
        %v445 = vsel %vm407, %v379, 0
        %v448 = vsel %vm407, %v380, 0
        %v451 = vsel %vm407, %v381, 0
        %v454 = vsel %vm407, %v382, 0
        %v457 = vsel %vm407, %v383, 0
        %v460 = vsel %vm407, %v384, 0
        %v463 = vsel %vm407, %v385, 0
        %v466 = vsel %vm407, %v386, 0
        %v469 = vsel %vm407, %v387, 0
        %v472 = vsel %vm407, %v388, 0
        %v475 = vsel %vm407, %v389, 0
        %v478 = vsel %vm407, %v390, 0
        %v481 = vsel %vm407, %v391, 0
        %v484 = vsel %vm407, %v392, 0
        %v487 = vsel %vm407, %v393, 0
        %v490 = vsel %vm407, %v394, 0
        %v493 = vsel %vm407, %v395, 0
        %v496 = vsel %vm407, %v396, 0
        %v499 = vsel %vm407, %v397, 0
        %v502 = vsel %vm407, %v398, 0
        %vm504 = vcmask 1042432
        %v506 = vsel %vm504, %v399, 0
        %508 = vmatprep.subr.mxu0 0.0
        %509 = vmatpush1.msra.mxu0 %v506
        %510 = vmatprep.subr.mxu0 0.0
        %511 = vmatpush1.msra.mxu0 0.0
        %512 = vmatprep.subr.mxu0 0.0
        %513 = vmatpush1.msra.mxu0 0.0
        %514 = vmatprep.subr.mxu0 0.0
        %515 = vmatpush1.msra.mxu0 0.0
        %516 = vmatprep.subr.mxu0 0.0
        %517 = vmatpush1.msra.mxu0 0.0
        %518 = vmatprep.subr.mxu0 0.0
        %519 = vmatpush1.msra.mxu0 0.0
        %520 = vmatprep.subr.mxu0 0.0
        %521 = vmatpush1.msra.mxu0 0.0
        %522 = vmatprep.subr.mxu0 0.0
        %523 = vmatpush1.msra.mxu0 0.0
        %524 = vmatprep.subr.mxu0 0.0
        %525 = vmatpush1.msra.mxu0 0.0
        %526 = vmatprep.subr.mxu0 0.0
        %527 = vmatpush1.msra.mxu0 0.0
        %528 = vmatprep.subr.mxu0 0.0
        %529 = vmatpush1.msra.mxu0 0.0
        %530 = vmatprep.subr.mxu0 0.0
        %531 = vmatpush1.msra.mxu0 0.0
        %532 = vmatprep.subr.mxu0 0.0
        %533 = vmatpush1.msra.mxu0 0.0
        %534 = vmatprep.subr.mxu0 0.0
        %535 = vmatpush1.msra.mxu0 0.0
        %536 = vmatprep.subr.mxu0 0.0
        %537 = vmatpush1.msra.mxu0 0.0
        %538 = vmatprep.subr.mxu0 0.0
        %539 = vmatpush1.msra.mxu0 0.0
        %540 = vmatprep.subr.mxu0 0.0
        %541 = vmatpush1.msra.mxu0 0.0
        %542 = vmatprep.subr.mxu0 0.0
        %543 = vmatpush1.msra.mxu0 0.0
        %544 = vmatprep.subr.mxu0 0.0
        %545 = vmatpush1.msra.mxu0 0.0
        %546 = vmatprep.subr.mxu0 0.0
        %547 = vmatpush1.msra.mxu0 0.0
        %548 = vmatprep.subr.mxu0 0.0
        %549 = vmatpush1.msra.mxu0 0.0
        %550 = vmatprep.subr.mxu0 0.0
        %551 = vmatpush1.msra.mxu0 0.0
        %552 = vmatprep.subr.mxu0 0.0
        %553 = vmatpush1.msra.mxu0 0.0
        %554 = vmatprep.subr.mxu0 0.0
        %555 = vmatpush1.msra.mxu0 0.0
        %556 = vmatprep.subr.mxu0 0.0
        %557 = vmatpush1.msra.mxu0 0.0
        %558 = vmatprep.subr.mxu0 0.0
        %559 = vmatpush1.msra.mxu0 0.0
        %560 = vmatprep.subr.mxu0 0.0
        %561 = vmatpush1.msra.mxu0 0.0
        %562 = vmatprep.subr.mxu0 0.0
        %563 = vmatpush1.msra.mxu0 0.0
        %564 = vmatprep.subr.mxu0 0.0
        %565 = vmatpush1.msra.mxu0 0.0
        %566 = vmatprep.subr.mxu0 0.0
        %567 = vmatpush1.msra.mxu0 0.0
        %568 = vmatprep.subr.mxu0 0.0
        %569 = vmatpush1.msra.mxu0 0.0
        %570 = vmatprep.subr.mxu0 0.0
        %571 = vmatpush1.msra.mxu0 0.0
        %572 = vmatprep.mubr.f32.mxu0 0.0
        %573 = vmatmul.mubr.f32.gmra.mrb[0].mxu0 %v409
        %v574 = vpop.f32.mrb[0].mxu0
        %v575 = vadd.f32 %v405, %v574
        %v576 = vpop.f32.mrb[0].mxu0
        %577 = vmatprep.mubr.f32.mxu0 0.0
        %578 = vmatmul.mubr.f32.gmra.mrb[0].mxu0 %v412
        %v579 = vpop.f32.mrb[0].mxu0
        %v580 = vadd.f32 %v405, %v579
        %v581 = vpop.f32.mrb[0].mxu0
        %582 = vmatprep.mubr.f32.mxu0 0.0
        %583 = vmatmul.mubr.f32.gmra.mrb[0].mxu0 %v415
        %v584 = vpop.f32.mrb[0].mxu0
        %v585 = vadd.f32 %v405, %v584
        %v586 = vpop.f32.mrb[0].mxu0
        %587 = vmatprep.mubr.f32.mxu0 0.0
        %588 = vmatmul.mubr.f32.gmra.mrb[0].mxu0 %v418
        %v589 = vpop.f32.mrb[0].mxu0
        %v590 = vadd.f32 %v405, %v589
        %v591 = vpop.f32.mrb[0].mxu0
        %592 = vmatprep.mubr.f32.mxu0 0.0
        %593 = vmatmul.mubr.f32.gmra.mrb[0].mxu0 %v421
        %v594 = vpop.f32.mrb[0].mxu0
        %v595 = vadd.f32 %v405, %v594
        %v596 = vpop.f32.mrb[0].mxu0
        %597 = vmatprep.mubr.f32.mxu0 0.0
        %598 = vmatmul.mubr.f32.gmra.mrb[0].mxu0 %v424
        %v599 = vpop.f32.mrb[0].mxu0
        %v600 = vadd.f32 %v405, %v599
        %v601 = vpop.f32.mrb[0].mxu0
        %602 = vmatprep.mubr.f32.mxu0 0.0
        %603 = vmatmul.mubr.f32.gmra.mrb[0].mxu0 %v427
        %v604 = vpop.f32.mrb[0].mxu0
        %v605 = vadd.f32 %v405, %v604
        %v606 = vpop.f32.mrb[0].mxu0
        %607 = vmatprep.mubr.f32.mxu0 0.0
        %608 = vmatmul.mubr.f32.gmra.mrb[0].mxu0 %v430
        %v609 = vpop.f32.mrb[0].mxu0
        %v610 = vadd.f32 %v405, %v609
        %v611 = vpop.f32.mrb[0].mxu0
        %612 = vmatprep.mubr.f32.mxu0 0.0
        %613 = vmatmul.mubr.f32.gmra.mrb[0].mxu0 %v433
        %v614 = vpop.f32.mrb[0].mxu0
        %v615 = vadd.f32 %v405, %v614
        %v616 = vpop.f32.mrb[0].mxu0
        %617 = vmatprep.mubr.f32.mxu0 0.0
        %618 = vmatmul.mubr.f32.gmra.mrb[0].mxu0 %v436
        %v619 = vpop.f32.mrb[0].mxu0
        %v620 = vadd.f32 %v405, %v619
        %v621 = vpop.f32.mrb[0].mxu0
        %622 = vmatprep.mubr.f32.mxu0 0.0
        %623 = vmatmul.mubr.f32.gmra.mrb[0].mxu0 %v439
        %v624 = vpop.f32.mrb[0].mxu0
        %v625 = vadd.f32 %v405, %v624
        %v626 = vpop.f32.mrb[0].mxu0
        %627 = vmatprep.mubr.f32.mxu0 0.0
        %628 = vmatmul.mubr.f32.gmra.mrb[0].mxu0 %v442
        %v629 = vpop.f32.mrb[0].mxu0
        %v630 = vadd.f32 %v405, %v629
        %v631 = vpop.f32.mrb[0].mxu0
        %632 = vmatprep.mubr.f32.mxu0 0.0
        %633 = vmatmul.mubr.f32.gmra.mrb[0].mxu0 %v445
        %v634 = vpop.f32.mrb[0].mxu0
        %v635 = vadd.f32 %v405, %v634
        %v636 = vpop.f32.mrb[0].mxu0
        %637 = vmatprep.mubr.f32.mxu0 0.0
        %638 = vmatmul.mubr.f32.gmra.mrb[0].mxu0 %v448
        %v639 = vpop.f32.mrb[0].mxu0
        %v640 = vadd.f32 %v405, %v639
        %v641 = vpop.f32.mrb[0].mxu0
        %642 = vmatprep.mubr.f32.mxu0 0.0
        %643 = vmatmul.mubr.f32.gmra.mrb[0].mxu0 %v451
        %v644 = vpop.f32.mrb[0].mxu0
        %v645 = vadd.f32 %v405, %v644
        %v646 = vpop.f32.mrb[0].mxu0
        %647 = vmatprep.mubr.f32.mxu0 0.0
        %648 = vmatmul.mubr.f32.gmra.mrb[0].mxu0 %v454
        %v649 = vpop.f32.mrb[0].mxu0
        %v650 = vadd.f32 %v405, %v649
        %v651 = vpop.f32.mrb[0].mxu0
        %652 = vmatprep.mubr.f32.mxu0 0.0
        %653 = vmatmul.mubr.f32.gmra.mrb[0].mxu0 %v457
        %v654 = vpop.f32.mrb[0].mxu0
        %v655 = vadd.f32 %v405, %v654
        %v656 = vpop.f32.mrb[0].mxu0
        %657 = vmatprep.mubr.f32.mxu0 0.0
        %658 = vmatmul.mubr.f32.gmra.mrb[0].mxu0 %v460
        %v659 = vpop.f32.mrb[0].mxu0
        %v660 = vadd.f32 %v405, %v659
        %v661 = vpop.f32.mrb[0].mxu0
        %662 = vmatprep.mubr.f32.mxu0 0.0
        %663 = vmatmul.mubr.f32.gmra.mrb[0].mxu0 %v463
        %v664 = vpop.f32.mrb[0].mxu0
        %v665 = vadd.f32 %v405, %v664
        %v666 = vpop.f32.mrb[0].mxu0
        %667 = vmatprep.mubr.f32.mxu0 0.0
        %668 = vmatmul.mubr.f32.gmra.mrb[0].mxu0 %v466
        %v669 = vpop.f32.mrb[0].mxu0
        %v670 = vadd.f32 %v405, %v669
        %v671 = vpop.f32.mrb[0].mxu0
        %672 = vmatprep.mubr.f32.mxu0 0.0
        %673 = vmatmul.mubr.f32.gmra.mrb[0].mxu0 %v469
        %v674 = vpop.f32.mrb[0].mxu0
        %v675 = vadd.f32 %v405, %v674
        %v676 = vpop.f32.mrb[0].mxu0
        %677 = vmatprep.mubr.f32.mxu0 0.0
        %678 = vmatmul.mubr.f32.gmra.mrb[0].mxu0 %v472
        %v679 = vpop.f32.mrb[0].mxu0
        %v680 = vadd.f32 %v405, %v679
        %v681 = vpop.f32.mrb[0].mxu0
        %682 = vmatprep.mubr.f32.mxu0 0.0
        %683 = vmatmul.mubr.f32.gmra.mrb[0].mxu0 %v475
        %v684 = vpop.f32.mrb[0].mxu0
        %v685 = vadd.f32 %v405, %v684
        %v686 = vpop.f32.mrb[0].mxu0
        %687 = vmatprep.mubr.f32.mxu0 0.0
        %688 = vmatmul.mubr.f32.gmra.mrb[0].mxu0 %v478
        %v689 = vpop.f32.mrb[0].mxu0
        %v690 = vadd.f32 %v405, %v689
        %v691 = vpop.f32.mrb[0].mxu0
        %692 = vmatprep.mubr.f32.mxu0 0.0
        %693 = vmatmul.mubr.f32.gmra.mrb[0].mxu0 %v481
        %v694 = vpop.f32.mrb[0].mxu0
        %v695 = vadd.f32 %v405, %v694
        %v696 = vpop.f32.mrb[0].mxu0
        %697 = vmatprep.mubr.f32.mxu0 0.0
        %698 = vmatmul.mubr.f32.gmra.mrb[0].mxu0 %v484
        %v699 = vpop.f32.mrb[0].mxu0
        %v700 = vadd.f32 %v405, %v699
        %v701 = vpop.f32.mrb[0].mxu0
        %702 = vmatprep.mubr.f32.mxu0 0.0
        %703 = vmatmul.mubr.f32.gmra.mrb[0].mxu0 %v487
        %v704 = vpop.f32.mrb[0].mxu0
        %v705 = vadd.f32 %v405, %v704
        %v706 = vpop.f32.mrb[0].mxu0
        %707 = vmatprep.mubr.f32.mxu0 0.0
        %708 = vmatmul.mubr.f32.gmra.mrb[0].mxu0 %v490
        %v709 = vpop.f32.mrb[0].mxu0
        %v710 = vadd.f32 %v405, %v709
        %v711 = vpop.f32.mrb[0].mxu0
        %712 = vmatprep.mubr.f32.mxu0 0.0
        %713 = vmatmul.mubr.f32.gmra.mrb[0].mxu0 %v493
        %v714 = vpop.f32.mrb[0].mxu0
        %v715 = vadd.f32 %v405, %v714
        %v716 = vpop.f32.mrb[0].mxu0
        %717 = vmatprep.mubr.f32.mxu0 0.0
        %718 = vmatmul.mubr.f32.gmra.mrb[0].mxu0 %v496
        %v719 = vpop.f32.mrb[0].mxu0
        %v720 = vadd.f32 %v405, %v719
        %v721 = vpop.f32.mrb[0].mxu0
        %722 = vmatprep.mubr.f32.mxu0 0.0
        %723 = vmatmul.mubr.f32.gmra.mrb[0].mxu0 %v499
        %v724 = vpop.f32.mrb[0].mxu0
        %v725 = vadd.f32 %v405, %v724
        %v726 = vpop.f32.mrb[0].mxu0
        %727 = vmatprep.mubr.f32.mxu0 0.0
        %728 = vmatmul.mubr.f32.gmra.mrb[0].mxu0 %v502
        %v729 = vpop.f32.mrb[0].mxu0
        %v730 = vadd.f32 %v405, %v729
        %v731 = vpop.f32.mrb[0].mxu0
        %732 = vdwg.mxu0
        %v733 = vmax.f32 %v575, 0.0
        %v734 = vmax.f32 %v580, 0.0
        %v735 = vmax.f32 %v585, 0.0
        %v736 = vmax.f32 %v590, 0.0
        %v737 = vmax.f32 %v595, 0.0
        %v738 = vmax.f32 %v600, 0.0
        %v739 = vmax.f32 %v605, 0.0
        %v740 = vmax.f32 %v610, 0.0
        %v741 = vmax.f32 %v615, 0.0
        %v742 = vmax.f32 %v620, 0.0
        %v743 = vmax.f32 %v625, 0.0
        %v744 = vmax.f32 %v630, 0.0
        %v745 = vmax.f32 %v635, 0.0
        %v746 = vmax.f32 %v640, 0.0
        %v747 = vmax.f32 %v645, 0.0
        %v748 = vmax.f32 %v650, 0.0
        %v749 = vmax.f32 %v655, 0.0
        %v750 = vmax.f32 %v660, 0.0
        %v751 = vmax.f32 %v665, 0.0
        %v752 = vmax.f32 %v670, 0.0
        %v753 = vmax.f32 %v675, 0.0
        %v754 = vmax.f32 %v680, 0.0
        %v755 = vmax.f32 %v685, 0.0
        %v756 = vmax.f32 %v690, 0.0
        %v757 = vmax.f32 %v695, 0.0
        %v758 = vmax.f32 %v700, 0.0
        %v759 = vmax.f32 %v705, 0.0
        %v760 = vmax.f32 %v710, 0.0
        %v761 = vmax.f32 %v715, 0.0
        %v762 = vmax.f32 %v720, 0.0
        %v763 = vmax.f32 %v725, 0.0
        %v764 = vmax.f32 %v730, 0.0
        %v765 = vpack.c.bf16 %v734, %v733
        %v766 = vpack.c.bf16 %v736, %v735
        %v767 = vpack.c.bf16 %v738, %v737
        %v768 = vpack.c.bf16 %v740, %v739
        %v769 = vpack.c.bf16 %v742, %v741
        %v770 = vpack.c.bf16 %v744, %v743
        %v771 = vpack.c.bf16 %v746, %v745
        %v772 = vpack.c.bf16 %v748, %v747
        %v773 = vpack.c.bf16 %v750, %v749
        %v774 = vpack.c.bf16 %v752, %v751
        %v775 = vpack.c.bf16 %v754, %v753
        %v776 = vpack.c.bf16 %v756, %v755
        %v777 = vpack.c.bf16 %v758, %v757
        %v778 = vpack.c.bf16 %v760, %v759
        %v779 = vpack.c.bf16 %v762, %v761
        %v780 = vpack.c.bf16 %v764, %v763
        %v781 = vld [vmem:[#allocation2] sm:$0xff]
        %v782 = vld [vmem:[#allocation2 + $0x8] sm:$0xff]
        %v783 = vld [vmem:[#allocation2 + $0x10] sm:$0xff]
        %v784 = vld [vmem:[#allocation2 + $0x18] sm:$0xff]
        %v785 = vld [vmem:[#allocation2 + $0x20] sm:$0xff]
        %v786 = vld [vmem:[#allocation2 + $0x28] sm:$0xff]
        %v787 = vld [vmem:[#allocation2 + $0x30] sm:$0xff]
        %v788 = vld [vmem:[#allocation2 + $0x38] sm:$0xff]
        %v789 = vld [vmem:[#allocation2 + $0x40] sm:$0xff]
        %v790 = vld [vmem:[#allocation2 + $0x48] sm:$0xff]
        %v791 = vld [vmem:[#allocation2 + $0x50] sm:$0xff]
        %v792 = vld [vmem:[#allocation2 + $0x58] sm:$0xff]
        %v793 = vld [vmem:[#allocation2 + $0x60] sm:$0xff]
        %v794 = vld [vmem:[#allocation2 + $0x68] sm:$0xff]
        %v795 = vld [vmem:[#allocation2 + $0x70] sm:$0xff]
        %v796 = vld [vmem:[#allocation2 + $0x78] sm:$0xff]
        %v797 = vld [vmem:[#allocation2 + $0x80] sm:$0xff]
        %v798 = vld [vmem:[#allocation2 + $0x88] sm:$0xff]
        %v799 = vld [vmem:[#allocation2 + $0x90] sm:$0xff]
        %v800 = vld [vmem:[#allocation2 + $0x98] sm:$0xff]
        %v801 = vld [vmem:[#allocation2 + $0xa0] sm:$0xff]
        %v802 = vld [vmem:[#allocation2 + $0xa8] sm:$0xff]
        %v803 = vld [vmem:[#allocation2 + $0xb0] sm:$0xff]
        %v804 = vld [vmem:[#allocation2 + $0xb8] sm:$0xff]
        %v805 = vld [vmem:[#allocation2 + $0xc0] sm:$0xff]
        %v806 = vld [vmem:[#allocation2 + $0xc8] sm:$0xff]
        %v807 = vld [vmem:[#allocation2 + $0xd0] sm:$0xff]
        %v808 = vld [vmem:[#allocation2 + $0xd8] sm:$0xff]
        %v809 = vld [vmem:[#allocation2 + $0xe0] sm:$0xff]
        %v810 = vld [vmem:[#allocation2 + $0xe8] sm:$0xff]
        %v811 = vld [vmem:[#allocation2 + $0xf0] sm:$0xff]
        %v812 = vld [vmem:[#allocation2 + $0xf8] sm:$0xff]
        %v813 = vld [vmem:[#allocation2 + $0x100] sm:$0xff]
        %v814 = vld [vmem:[#allocation2 + $0x108] sm:$0xff]
        %v815 = vld [vmem:[#allocation2 + $0x110] sm:$0xff]
        %v816 = vld [vmem:[#allocation2 + $0x118] sm:$0xff]
        %v817 = vld [vmem:[#allocation2 + $0x120] sm:$0xff]
        %v818 = vld [vmem:[#allocation2 + $0x128] sm:$0xff]
        %v819 = vld [vmem:[#allocation2 + $0x130] sm:$0xff]
        %v820 = vld [vmem:[#allocation2 + $0x138] sm:$0xff]
        %v821 = vld [vmem:[#allocation2 + $0x140] sm:$0xff]
        %v822 = vld [vmem:[#allocation2 + $0x148] sm:$0xff]
        %v823 = vld [vmem:[#allocation2 + $0x150] sm:$0xff]
        %v824 = vld [vmem:[#allocation2 + $0x158] sm:$0xff]
        %v825 = vld [vmem:[#allocation2 + $0x160] sm:$0xff]
        %v826 = vld [vmem:[#allocation2 + $0x168] sm:$0xff]
        %v827 = vld [vmem:[#allocation2 + $0x170] sm:$0xff]
        %v828 = vld [vmem:[#allocation2 + $0x178] sm:$0xff]
        %v877 = vunpack.c.l.b16 %v781
        %v878 = vunpack.c.h.b16 %v781
        %v879 = vunpack.c.l.b16 %v782
        %v880 = vunpack.c.h.b16 %v782
        %v881 = vunpack.c.l.b16 %v783
        %v882 = vunpack.c.h.b16 %v783
        %v883 = vunpack.c.l.b16 %v784
        %v884 = vunpack.c.h.b16 %v784
        %v885 = vunpack.c.l.b16 %v785
        %v886 = vunpack.c.h.b16 %v785
        %v887 = vunpack.c.l.b16 %v786
        %v888 = vunpack.c.h.b16 %v786
        %v889 = vunpack.c.l.b16 %v787
        %v890 = vunpack.c.h.b16 %v787
        %v891 = vunpack.c.l.b16 %v788
        %v892 = vunpack.c.h.b16 %v788
        %v893 = vunpack.c.l.b16 %v789
        %v894 = vunpack.c.h.b16 %v789
        %v895 = vunpack.c.l.b16 %v790
        %v896 = vunpack.c.h.b16 %v790
        %v897 = vunpack.c.l.b16 %v791
        %v898 = vunpack.c.h.b16 %v791
        %v899 = vunpack.c.l.b16 %v792
        %v900 = vunpack.c.h.b16 %v792
        %v901 = vunpack.c.l.b16 %v793
        %v902 = vunpack.c.h.b16 %v793
        %v903 = vunpack.c.l.b16 %v794
        %v904 = vunpack.c.h.b16 %v794
        %v905 = vunpack.c.l.b16 %v795
        %v906 = vunpack.c.h.b16 %v795
        %v907 = vunpack.c.l.b16 %v796
        %v908 = vunpack.c.h.b16 %v796
        %v909 = vunpack.c.l.b16 %v797
        %v910 = vunpack.c.h.b16 %v797
        %v911 = vunpack.c.l.b16 %v798
        %v912 = vunpack.c.h.b16 %v798
        %v913 = vunpack.c.l.b16 %v799
        %v914 = vunpack.c.h.b16 %v799
        %v915 = vunpack.c.l.b16 %v800
        %v916 = vunpack.c.h.b16 %v800
        %v917 = vunpack.c.l.b16 %v801
        %v918 = vunpack.c.h.b16 %v801
        %v919 = vunpack.c.l.b16 %v802
        %v920 = vunpack.c.h.b16 %v802
        %v921 = vunpack.c.l.b16 %v803
        %v922 = vunpack.c.h.b16 %v803
        %v923 = vunpack.c.l.b16 %v804
        %v924 = vunpack.c.h.b16 %v804
        %v925 = vunpack.c.l.b16 %v805
        %v926 = vunpack.c.h.b16 %v805
        %v927 = vunpack.c.l.b16 %v806
        %v928 = vunpack.c.h.b16 %v806
        %v929 = vunpack.c.l.b16 %v807
        %v930 = vunpack.c.h.b16 %v807
        %v931 = vunpack.c.l.b16 %v808
        %v932 = vunpack.c.h.b16 %v808
        %v933 = vunpack.c.l.b16 %v809
        %v934 = vunpack.c.h.b16 %v809
        %v935 = vunpack.c.l.b16 %v810
        %v936 = vunpack.c.h.b16 %v810
        %v937 = vunpack.c.l.b16 %v811
        %v938 = vunpack.c.h.b16 %v811
        %v939 = vunpack.c.l.b16 %v812
        %v940 = vunpack.c.h.b16 %v812
        %v941 = vunpack.c.l.b16 %v813
        %v942 = vunpack.c.h.b16 %v813
        %v943 = vunpack.c.l.b16 %v814
        %v944 = vunpack.c.h.b16 %v814
        %v945 = vunpack.c.l.b16 %v815
        %v946 = vunpack.c.h.b16 %v815
        %v947 = vunpack.c.l.b16 %v816
        %v948 = vunpack.c.h.b16 %v816
        %v949 = vunpack.c.l.b16 %v817
        %v950 = vunpack.c.h.b16 %v817
        %v951 = vunpack.c.l.b16 %v818
        %v952 = vunpack.c.h.b16 %v818
        %v953 = vunpack.c.l.b16 %v819
        %v954 = vunpack.c.h.b16 %v819
        %v955 = vunpack.c.l.b16 %v820
        %v956 = vunpack.c.h.b16 %v820
        %v957 = vunpack.c.l.b16 %v821
        %v958 = vunpack.c.h.b16 %v821
        %v959 = vunpack.c.l.b16 %v822
        %v960 = vunpack.c.h.b16 %v822
        %v961 = vunpack.c.l.b16 %v823
        %v962 = vunpack.c.h.b16 %v823
        %v963 = vunpack.c.l.b16 %v824
        %v964 = vunpack.c.h.b16 %v824
        %v965 = vunpack.c.l.b16 %v825
        %v966 = vunpack.c.h.b16 %v825
        %v967 = vunpack.c.l.b16 %v826
        %v968 = vunpack.c.h.b16 %v826
        %v969 = vunpack.c.l.b16 %v827
        %v970 = vunpack.c.h.b16 %v827
        %v971 = vunpack.c.l.b16 %v828
        %v972 = vunpack.c.h.b16 %v828
        %v973 = vpack.c.b16 %v883, %v877
        %v974 = vpack.c.b16 %v884, %v878
        %v975 = vpack.c.b16 %v885, %v879
        %v976 = vpack.c.b16 %v886, %v880
        %v977 = vpack.c.b16 %v887, %v881
        %v978 = vpack.c.b16 %v888, %v882
        %v979 = vpack.c.b16 %v895, %v889
        %v980 = vpack.c.b16 %v896, %v890
        %v981 = vpack.c.b16 %v897, %v891
        %v982 = vpack.c.b16 %v898, %v892
        %v983 = vpack.c.b16 %v899, %v893
        %v984 = vpack.c.b16 %v900, %v894
        %v985 = vpack.c.b16 %v907, %v901
        %v986 = vpack.c.b16 %v908, %v902
        %v987 = vpack.c.b16 %v909, %v903
        %v988 = vpack.c.b16 %v910, %v904
        %v989 = vpack.c.b16 %v911, %v905
        %v990 = vpack.c.b16 %v912, %v906
        %v991 = vpack.c.b16 %v919, %v913
        %v992 = vpack.c.b16 %v920, %v914
        %v993 = vpack.c.b16 %v921, %v915
        %v994 = vpack.c.b16 %v922, %v916
        %v995 = vpack.c.b16 %v923, %v917
        %v996 = vpack.c.b16 %v924, %v918
        %v997 = vpack.c.b16 %v931, %v925
        %v998 = vpack.c.b16 %v932, %v926
        %v999 = vpack.c.b16 %v933, %v927
        %v1000 = vpack.c.b16 %v934, %v928
        %v1001 = vpack.c.b16 %v935, %v929
        %v1002 = vpack.c.b16 %v936, %v930
        %v1003 = vpack.c.b16 %v943, %v937
        %v1004 = vpack.c.b16 %v944, %v938
        %v1005 = vpack.c.b16 %v945, %v939
        %v1006 = vpack.c.b16 %v946, %v940
        %v1007 = vpack.c.b16 %v947, %v941
        %v1008 = vpack.c.b16 %v948, %v942
        %v1009 = vpack.c.b16 %v955, %v949
        %v1010 = vpack.c.b16 %v956, %v950
        %v1011 = vpack.c.b16 %v957, %v951
        %v1012 = vpack.c.b16 %v958, %v952
        %v1013 = vpack.c.b16 %v959, %v953
        %v1014 = vpack.c.b16 %v960, %v954
        %v1015 = vpack.c.b16 %v967, %v961
        %v1016 = vpack.c.b16 %v968, %v962
        %v1017 = vpack.c.b16 %v969, %v963
        %v1018 = vpack.c.b16 %v970, %v964
        %v1019 = vpack.c.b16 %v971, %v965
        %v1020 = vpack.c.b16 %v972, %v966
        %1069 = vmatprep.subr.bf16.mxu0 %v974
        %1070 = vmatpush1.bf16.msra.mxu0 %v973
        %1071 = vmatprep.subr.bf16.mxu0 %v980
        %1072 = vmatpush1.bf16.msra.mxu0 %v979
        %1073 = vmatprep.subr.bf16.mxu0 %v986
        %1074 = vmatpush1.bf16.msra.mxu0 %v985
        %1075 = vmatprep.subr.bf16.mxu0 %v992
        %1076 = vmatpush1.bf16.msra.mxu0 %v991
        %1077 = vmatprep.subr.bf16.mxu0 %v998
        %1078 = vmatpush1.bf16.msra.mxu0 %v997
        %1079 = vmatprep.subr.bf16.mxu0 %v1004
        %1080 = vmatpush1.bf16.msra.mxu0 %v1003
        %1081 = vmatprep.subr.bf16.mxu0 %v1010
        %1082 = vmatpush1.bf16.msra.mxu0 %v1009
        %1083 = vmatprep.subr.bf16.mxu0 %v1016
        %1084 = vmatpush1.bf16.msra.mxu0 %v1015
        %1085 = vmatprep.subr.bf16.mxu0 0
        %1086 = vmatpush1.bf16.msra.mxu0 0
        %1087 = vmatprep.subr.bf16.mxu0 0
        %1088 = vmatpush1.bf16.msra.mxu0 0
        %1089 = vmatprep.subr.bf16.mxu0 0
        %1090 = vmatpush1.bf16.msra.mxu0 0
        %1091 = vmatprep.subr.bf16.mxu0 0
        %1092 = vmatpush1.bf16.msra.mxu0 0
        %1093 = vmatprep.subr.bf16.mxu0 0
        %1094 = vmatpush1.bf16.msra.mxu0 0
        %1095 = vmatprep.subr.bf16.mxu0 0
        %1096 = vmatpush1.bf16.msra.mxu0 0
        %1097 = vmatprep.subr.bf16.mxu0 0
        %1098 = vmatpush1.bf16.msra.mxu0 0
        %1099 = vmatprep.subr.bf16.mxu0 0
        %1100 = vmatpush1.bf16.msra.mxu0 0
        %1101 = vmatprep.mubr.bf16.mxu0 0
        %1102 = vmatmul.mubr.bf16.gmra.mrb[0].mxu0 %v765
        %v1103 = vpop.f32.mrb[0].mxu0
        %v1104 = vadd.f32 0.0, %v1103
        %v1105 = vpop.f32.mrb[0].mxu0
        %v1106 = vadd.f32 0.0, %v1105
        %v1107 = vpop.f32.mrb[0].mxu0
        %v1108 = vadd.f32 0.0, %v1107
        %v1109 = vpop.f32.mrb[0].mxu0
        %v1110 = vadd.f32 0.0, %v1109
        %1111 = vmatprep.mubr.bf16.mxu0 0
        %1112 = vmatmul.mubr.bf16.gmra.mrb[0].mxu0 %v766
        %v1113 = vpop.f32.mrb[0].mxu0
        %v1114 = vadd.f32 0.0, %v1113
        %v1115 = vpop.f32.mrb[0].mxu0
        %v1116 = vadd.f32 0.0, %v1115
        %v1117 = vpop.f32.mrb[0].mxu0
        %v1118 = vadd.f32 0.0, %v1117
        %v1119 = vpop.f32.mrb[0].mxu0
        %v1120 = vadd.f32 0.0, %v1119
        %1121 = vmatprep.mubr.bf16.mxu0 0
        %1122 = vmatmul.mubr.bf16.gmra.mrb[0].mxu0 %v767
        %v1123 = vpop.f32.mrb[0].mxu0
        %v1124 = vadd.f32 0.0, %v1123
        %v1125 = vpop.f32.mrb[0].mxu0
        %v1126 = vadd.f32 0.0, %v1125
        %v1127 = vpop.f32.mrb[0].mxu0
        %v1128 = vadd.f32 0.0, %v1127
        %v1129 = vpop.f32.mrb[0].mxu0
        %v1130 = vadd.f32 0.0, %v1129
        %1131 = vmatprep.mubr.bf16.mxu0 0
        %1132 = vmatmul.mubr.bf16.gmra.mrb[0].mxu0 %v768
        %v1133 = vpop.f32.mrb[0].mxu0
        %v1134 = vadd.f32 0.0, %v1133
        %v1135 = vpop.f32.mrb[0].mxu0
        %v1136 = vadd.f32 0.0, %v1135
        %v1137 = vpop.f32.mrb[0].mxu0
        %v1138 = vadd.f32 0.0, %v1137
        %v1139 = vpop.f32.mrb[0].mxu0
        %v1140 = vadd.f32 0.0, %v1139
        %1141 = vmatprep.mubr.bf16.mxu0 0
        %1142 = vmatmul.mubr.bf16.gmra.mrb[0].mxu0 %v769
        %v1143 = vpop.f32.mrb[0].mxu0
        %v1144 = vadd.f32 0.0, %v1143
        %v1145 = vpop.f32.mrb[0].mxu0
        %v1146 = vadd.f32 0.0, %v1145
        %v1147 = vpop.f32.mrb[0].mxu0
        %v1148 = vadd.f32 0.0, %v1147
        %v1149 = vpop.f32.mrb[0].mxu0
        %v1150 = vadd.f32 0.0, %v1149
        %1151 = vmatprep.mubr.bf16.mxu0 0
        %1152 = vmatmul.mubr.bf16.gmra.mrb[0].mxu0 %v770
        %v1153 = vpop.f32.mrb[0].mxu0
        %v1154 = vadd.f32 0.0, %v1153
        %v1155 = vpop.f32.mrb[0].mxu0
        %v1156 = vadd.f32 0.0, %v1155
        %v1157 = vpop.f32.mrb[0].mxu0
        %v1158 = vadd.f32 0.0, %v1157
        %v1159 = vpop.f32.mrb[0].mxu0
        %v1160 = vadd.f32 0.0, %v1159
        %1161 = vmatprep.mubr.bf16.mxu0 0
        %1162 = vmatmul.mubr.bf16.gmra.mrb[0].mxu0 %v771
        %v1163 = vpop.f32.mrb[0].mxu0
        %v1164 = vadd.f32 0.0, %v1163
        %v1165 = vpop.f32.mrb[0].mxu0
        %v1166 = vadd.f32 0.0, %v1165
        %v1167 = vpop.f32.mrb[0].mxu0
        %v1168 = vadd.f32 0.0, %v1167
        %v1169 = vpop.f32.mrb[0].mxu0
        %v1170 = vadd.f32 0.0, %v1169
        %1171 = vmatprep.mubr.bf16.mxu0 0
        %1172 = vmatmul.mubr.bf16.gmra.mrb[0].mxu0 %v772
        %v1173 = vpop.f32.mrb[0].mxu0
        %v1174 = vadd.f32 0.0, %v1173
        %v1175 = vpop.f32.mrb[0].mxu0
        %v1176 = vadd.f32 0.0, %v1175
        %v1177 = vpop.f32.mrb[0].mxu0
        %v1178 = vadd.f32 0.0, %v1177
        %v1179 = vpop.f32.mrb[0].mxu0
        %v1180 = vadd.f32 0.0, %v1179
        %1181 = vmatprep.mubr.bf16.mxu0 0
        %1182 = vmatmul.mubr.bf16.gmra.mrb[0].mxu0 %v773
        %v1183 = vpop.f32.mrb[0].mxu0
        %v1184 = vadd.f32 0.0, %v1183
        %v1185 = vpop.f32.mrb[0].mxu0
        %v1186 = vadd.f32 0.0, %v1185
        %v1187 = vpop.f32.mrb[0].mxu0
        %v1188 = vadd.f32 0.0, %v1187
        %v1189 = vpop.f32.mrb[0].mxu0
        %v1190 = vadd.f32 0.0, %v1189
        %1191 = vmatprep.mubr.bf16.mxu0 0
        %1192 = vmatmul.mubr.bf16.gmra.mrb[0].mxu0 %v774
        %v1193 = vpop.f32.mrb[0].mxu0
        %v1194 = vadd.f32 0.0, %v1193
        %v1195 = vpop.f32.mrb[0].mxu0
        %v1196 = vadd.f32 0.0, %v1195
        %v1197 = vpop.f32.mrb[0].mxu0
        %v1198 = vadd.f32 0.0, %v1197
        %v1199 = vpop.f32.mrb[0].mxu0
        %v1200 = vadd.f32 0.0, %v1199
        %1201 = vmatprep.mubr.bf16.mxu0 0
        %1202 = vmatmul.mubr.bf16.gmra.mrb[0].mxu0 %v775
        %v1203 = vpop.f32.mrb[0].mxu0
        %v1204 = vadd.f32 0.0, %v1203
        %v1205 = vpop.f32.mrb[0].mxu0
        %v1206 = vadd.f32 0.0, %v1205
        %v1207 = vpop.f32.mrb[0].mxu0
        %v1208 = vadd.f32 0.0, %v1207
        %v1209 = vpop.f32.mrb[0].mxu0
        %v1210 = vadd.f32 0.0, %v1209
        %1211 = vmatprep.mubr.bf16.mxu0 0
        %1212 = vmatmul.mubr.bf16.gmra.mrb[0].mxu0 %v776
        %v1213 = vpop.f32.mrb[0].mxu0
        %v1214 = vadd.f32 0.0, %v1213
        %v1215 = vpop.f32.mrb[0].mxu0
        %v1216 = vadd.f32 0.0, %v1215
        %v1217 = vpop.f32.mrb[0].mxu0
        %v1218 = vadd.f32 0.0, %v1217
        %v1219 = vpop.f32.mrb[0].mxu0
        %v1220 = vadd.f32 0.0, %v1219
        %1221 = vmatprep.mubr.bf16.mxu0 0
        %1222 = vmatmul.mubr.bf16.gmra.mrb[0].mxu0 %v777
        %v1223 = vpop.f32.mrb[0].mxu0
        %v1224 = vadd.f32 0.0, %v1223
        %v1225 = vpop.f32.mrb[0].mxu0
        %v1226 = vadd.f32 0.0, %v1225
        %v1227 = vpop.f32.mrb[0].mxu0
        %v1228 = vadd.f32 0.0, %v1227
        %v1229 = vpop.f32.mrb[0].mxu0
        %v1230 = vadd.f32 0.0, %v1229
        %1231 = vmatprep.mubr.bf16.mxu0 0
        %1232 = vmatmul.mubr.bf16.gmra.mrb[0].mxu0 %v778
        %v1233 = vpop.f32.mrb[0].mxu0
        %v1234 = vadd.f32 0.0, %v1233
        %v1235 = vpop.f32.mrb[0].mxu0
        %v1236 = vadd.f32 0.0, %v1235
        %v1237 = vpop.f32.mrb[0].mxu0
        %v1238 = vadd.f32 0.0, %v1237
        %v1239 = vpop.f32.mrb[0].mxu0
        %v1240 = vadd.f32 0.0, %v1239
        %1241 = vmatprep.mubr.bf16.mxu0 0
        %1242 = vmatmul.mubr.bf16.gmra.mrb[0].mxu0 %v779
        %v1243 = vpop.f32.mrb[0].mxu0
        %v1244 = vadd.f32 0.0, %v1243
        %v1245 = vpop.f32.mrb[0].mxu0
        %v1246 = vadd.f32 0.0, %v1245
        %v1247 = vpop.f32.mrb[0].mxu0
        %v1248 = vadd.f32 0.0, %v1247
        %v1249 = vpop.f32.mrb[0].mxu0
        %v1250 = vadd.f32 0.0, %v1249
        %1251 = vmatprep.mubr.bf16.mxu0 0
        %1252 = vmatmul.mubr.bf16.gmra.mrb[0].mxu0 %v780
        %v1253 = vpop.f32.mrb[0].mxu0
        %v1254 = vadd.f32 0.0, %v1253
        %v1255 = vpop.f32.mrb[0].mxu0
        %v1256 = vadd.f32 0.0, %v1255
        %v1257 = vpop.f32.mrb[0].mxu0
        %v1258 = vadd.f32 0.0, %v1257
        %v1259 = vpop.f32.mrb[0].mxu0
        %v1260 = vadd.f32 0.0, %v1259
        %1261 = vdwg.mxu0
        %1262 = vmatprep.subr.bf16.mxu0 %v976
        %1263 = vmatpush1.bf16.msra.mxu0 %v975
        %1264 = vmatprep.subr.bf16.mxu0 %v982
        %1265 = vmatpush1.bf16.msra.mxu0 %v981
        %1266 = vmatprep.subr.bf16.mxu0 %v988
        %1267 = vmatpush1.bf16.msra.mxu0 %v987
        %1268 = vmatprep.subr.bf16.mxu0 %v994
        %1269 = vmatpush1.bf16.msra.mxu0 %v993
        %1270 = vmatprep.subr.bf16.mxu0 %v1000
        %1271 = vmatpush1.bf16.msra.mxu0 %v999
        %1272 = vmatprep.subr.bf16.mxu0 %v1006
        %1273 = vmatpush1.bf16.msra.mxu0 %v1005
        %1274 = vmatprep.subr.bf16.mxu0 %v1012
        %1275 = vmatpush1.bf16.msra.mxu0 %v1011
        %1276 = vmatprep.subr.bf16.mxu0 %v1018
        %1277 = vmatpush1.bf16.msra.mxu0 %v1017
        %1278 = vmatprep.subr.bf16.mxu0 0
        %1279 = vmatpush1.bf16.msra.mxu0 0
        %1280 = vmatprep.subr.bf16.mxu0 0
        %1281 = vmatpush1.bf16.msra.mxu0 0
        %1282 = vmatprep.subr.bf16.mxu0 0
        %1283 = vmatpush1.bf16.msra.mxu0 0
        %1284 = vmatprep.subr.bf16.mxu0 0
        %1285 = vmatpush1.bf16.msra.mxu0 0
        %1286 = vmatprep.subr.bf16.mxu0 0
        %1287 = vmatpush1.bf16.msra.mxu0 0
        %1288 = vmatprep.subr.bf16.mxu0 0
        %1289 = vmatpush1.bf16.msra.mxu0 0
        %1290 = vmatprep.subr.bf16.mxu0 0
        %1291 = vmatpush1.bf16.msra.mxu0 0
        %1292 = vmatprep.subr.bf16.mxu0 0
        %1293 = vmatpush1.bf16.msra.mxu0 0
        %1294 = vmatprep.mubr.bf16.mxu0 0
        %1295 = vmatmul.mubr.bf16.gmra.mrb[0].mxu0 %v765
        %v1296 = vpop.f32.mrb[0].mxu0
        %v1297 = vadd.f32 0.0, %v1296
        %v1298 = vpop.f32.mrb[0].mxu0
        %v1299 = vadd.f32 0.0, %v1298
        %v1300 = vpop.f32.mrb[0].mxu0
        %v1301 = vadd.f32 0.0, %v1300
        %v1302 = vpop.f32.mrb[0].mxu0
        %v1303 = vadd.f32 0.0, %v1302
        %1304 = vmatprep.mubr.bf16.mxu0 0
        %1305 = vmatmul.mubr.bf16.gmra.mrb[0].mxu0 %v766
        %v1306 = vpop.f32.mrb[0].mxu0
        %v1307 = vadd.f32 0.0, %v1306
        %v1308 = vpop.f32.mrb[0].mxu0
        %v1309 = vadd.f32 0.0, %v1308
        %v1310 = vpop.f32.mrb[0].mxu0
        %v1311 = vadd.f32 0.0, %v1310
        %v1312 = vpop.f32.mrb[0].mxu0
        %v1313 = vadd.f32 0.0, %v1312
        %1314 = vmatprep.mubr.bf16.mxu0 0
        %1315 = vmatmul.mubr.bf16.gmra.mrb[0].mxu0 %v767
        %v1316 = vpop.f32.mrb[0].mxu0
        %v1317 = vadd.f32 0.0, %v1316
        %v1318 = vpop.f32.mrb[0].mxu0
        %v1319 = vadd.f32 0.0, %v1318
        %v1320 = vpop.f32.mrb[0].mxu0
        %v1321 = vadd.f32 0.0, %v1320
        %v1322 = vpop.f32.mrb[0].mxu0
        %v1323 = vadd.f32 0.0, %v1322
        %1324 = vmatprep.mubr.bf16.mxu0 0
        %1325 = vmatmul.mubr.bf16.gmra.mrb[0].mxu0 %v768
        %v1326 = vpop.f32.mrb[0].mxu0
        %v1327 = vadd.f32 0.0, %v1326
        %v1328 = vpop.f32.mrb[0].mxu0
        %v1329 = vadd.f32 0.0, %v1328
        %v1330 = vpop.f32.mrb[0].mxu0
        %v1331 = vadd.f32 0.0, %v1330
        %v1332 = vpop.f32.mrb[0].mxu0
        %v1333 = vadd.f32 0.0, %v1332
        %1334 = vmatprep.mubr.bf16.mxu0 0
        %1335 = vmatmul.mubr.bf16.gmra.mrb[0].mxu0 %v769
        %v1336 = vpop.f32.mrb[0].mxu0
        %v1337 = vadd.f32 0.0, %v1336
        %v1338 = vpop.f32.mrb[0].mxu0
        %v1339 = vadd.f32 0.0, %v1338
        %v1340 = vpop.f32.mrb[0].mxu0
        %v1341 = vadd.f32 0.0, %v1340
        %v1342 = vpop.f32.mrb[0].mxu0
        %v1343 = vadd.f32 0.0, %v1342
        %1344 = vmatprep.mubr.bf16.mxu0 0
        %1345 = vmatmul.mubr.bf16.gmra.mrb[0].mxu0 %v770
        %v1346 = vpop.f32.mrb[0].mxu0
        %v1347 = vadd.f32 0.0, %v1346
        %v1348 = vpop.f32.mrb[0].mxu0
        %v1349 = vadd.f32 0.0, %v1348
        %v1350 = vpop.f32.mrb[0].mxu0
        %v1351 = vadd.f32 0.0, %v1350
        %v1352 = vpop.f32.mrb[0].mxu0
        %v1353 = vadd.f32 0.0, %v1352
        %1354 = vmatprep.mubr.bf16.mxu0 0
        %1355 = vmatmul.mubr.bf16.gmra.mrb[0].mxu0 %v771
        %v1356 = vpop.f32.mrb[0].mxu0
        %v1357 = vadd.f32 0.0, %v1356
        %v1358 = vpop.f32.mrb[0].mxu0
        %v1359 = vadd.f32 0.0, %v1358
        %v1360 = vpop.f32.mrb[0].mxu0
        %v1361 = vadd.f32 0.0, %v1360
        %v1362 = vpop.f32.mrb[0].mxu0
        %v1363 = vadd.f32 0.0, %v1362
        %1364 = vmatprep.mubr.bf16.mxu0 0
        %1365 = vmatmul.mubr.bf16.gmra.mrb[0].mxu0 %v772
        %v1366 = vpop.f32.mrb[0].mxu0
        %v1367 = vadd.f32 0.0, %v1366
        %v1368 = vpop.f32.mrb[0].mxu0
        %v1369 = vadd.f32 0.0, %v1368
        %v1370 = vpop.f32.mrb[0].mxu0
        %v1371 = vadd.f32 0.0, %v1370
        %v1372 = vpop.f32.mrb[0].mxu0
        %v1373 = vadd.f32 0.0, %v1372
        %1374 = vmatprep.mubr.bf16.mxu0 0
        %1375 = vmatmul.mubr.bf16.gmra.mrb[0].mxu0 %v773
        %v1376 = vpop.f32.mrb[0].mxu0
        %v1377 = vadd.f32 0.0, %v1376
        %v1378 = vpop.f32.mrb[0].mxu0
        %v1379 = vadd.f32 0.0, %v1378
        %v1380 = vpop.f32.mrb[0].mxu0
        %v1381 = vadd.f32 0.0, %v1380
        %v1382 = vpop.f32.mrb[0].mxu0
        %v1383 = vadd.f32 0.0, %v1382
        %1384 = vmatprep.mubr.bf16.mxu0 0
        %1385 = vmatmul.mubr.bf16.gmra.mrb[0].mxu0 %v774
        %v1386 = vpop.f32.mrb[0].mxu0
        %v1387 = vadd.f32 0.0, %v1386
        %v1388 = vpop.f32.mrb[0].mxu0
        %v1389 = vadd.f32 0.0, %v1388
        %v1390 = vpop.f32.mrb[0].mxu0
        %v1391 = vadd.f32 0.0, %v1390
        %v1392 = vpop.f32.mrb[0].mxu0
        %v1393 = vadd.f32 0.0, %v1392
        %1394 = vmatprep.mubr.bf16.mxu0 0
        %1395 = vmatmul.mubr.bf16.gmra.mrb[0].mxu0 %v775
        %v1396 = vpop.f32.mrb[0].mxu0
        %v1397 = vadd.f32 0.0, %v1396
        %v1398 = vpop.f32.mrb[0].mxu0
        %v1399 = vadd.f32 0.0, %v1398
        %v1400 = vpop.f32.mrb[0].mxu0
        %v1401 = vadd.f32 0.0, %v1400
        %v1402 = vpop.f32.mrb[0].mxu0
        %v1403 = vadd.f32 0.0, %v1402
        %1404 = vmatprep.mubr.bf16.mxu0 0
        %1405 = vmatmul.mubr.bf16.gmra.mrb[0].mxu0 %v776
        %v1406 = vpop.f32.mrb[0].mxu0
        %v1407 = vadd.f32 0.0, %v1406
        %v1408 = vpop.f32.mrb[0].mxu0
        %v1409 = vadd.f32 0.0, %v1408
        %v1410 = vpop.f32.mrb[0].mxu0
        %v1411 = vadd.f32 0.0, %v1410
        %v1412 = vpop.f32.mrb[0].mxu0
        %v1413 = vadd.f32 0.0, %v1412
        %1414 = vmatprep.mubr.bf16.mxu0 0
        %1415 = vmatmul.mubr.bf16.gmra.mrb[0].mxu0 %v777
        %v1416 = vpop.f32.mrb[0].mxu0
        %v1417 = vadd.f32 0.0, %v1416
        %v1418 = vpop.f32.mrb[0].mxu0
        %v1419 = vadd.f32 0.0, %v1418
        %v1420 = vpop.f32.mrb[0].mxu0
        %v1421 = vadd.f32 0.0, %v1420
        %v1422 = vpop.f32.mrb[0].mxu0
        %v1423 = vadd.f32 0.0, %v1422
        %1424 = vmatprep.mubr.bf16.mxu0 0
        %1425 = vmatmul.mubr.bf16.gmra.mrb[0].mxu0 %v778
        %v1426 = vpop.f32.mrb[0].mxu0
        %v1427 = vadd.f32 0.0, %v1426
        %v1428 = vpop.f32.mrb[0].mxu0
        %v1429 = vadd.f32 0.0, %v1428
        %v1430 = vpop.f32.mrb[0].mxu0
        %v1431 = vadd.f32 0.0, %v1430
        %v1432 = vpop.f32.mrb[0].mxu0
        %v1433 = vadd.f32 0.0, %v1432
        %1434 = vmatprep.mubr.bf16.mxu0 0
        %1435 = vmatmul.mubr.bf16.gmra.mrb[0].mxu0 %v779
        %v1436 = vpop.f32.mrb[0].mxu0
        %v1437 = vadd.f32 0.0, %v1436
        %v1438 = vpop.f32.mrb[0].mxu0
        %v1439 = vadd.f32 0.0, %v1438
        %v1440 = vpop.f32.mrb[0].mxu0
        %v1441 = vadd.f32 0.0, %v1440
        %v1442 = vpop.f32.mrb[0].mxu0
        %v1443 = vadd.f32 0.0, %v1442
        %1444 = vmatprep.mubr.bf16.mxu0 0
        %1445 = vmatmul.mubr.bf16.gmra.mrb[0].mxu0 %v780
        %v1446 = vpop.f32.mrb[0].mxu0
        %v1447 = vadd.f32 0.0, %v1446
        %v1448 = vpop.f32.mrb[0].mxu0
        %v1449 = vadd.f32 0.0, %v1448
        %v1450 = vpop.f32.mrb[0].mxu0
        %v1451 = vadd.f32 0.0, %v1450
        %v1452 = vpop.f32.mrb[0].mxu0
        %v1453 = vadd.f32 0.0, %v1452
        %1454 = vdwg.mxu0
        %1455 = vmatprep.subr.bf16.mxu0 %v978
        %1456 = vmatpush1.bf16.msra.mxu0 %v977
        %1457 = vmatprep.subr.bf16.mxu0 %v984
        %1458 = vmatpush1.bf16.msra.mxu0 %v983
        %1459 = vmatprep.subr.bf16.mxu0 %v990
        %1460 = vmatpush1.bf16.msra.mxu0 %v989
        %1461 = vmatprep.subr.bf16.mxu0 %v996
        %1462 = vmatpush1.bf16.msra.mxu0 %v995
        %1463 = vmatprep.subr.bf16.mxu0 %v1002
        %1464 = vmatpush1.bf16.msra.mxu0 %v1001
        %1465 = vmatprep.subr.bf16.mxu0 %v1008
        %1466 = vmatpush1.bf16.msra.mxu0 %v1007
        %1467 = vmatprep.subr.bf16.mxu0 %v1014
        %1468 = vmatpush1.bf16.msra.mxu0 %v1013
        %1469 = vmatprep.subr.bf16.mxu0 %v1020
        %1470 = vmatpush1.bf16.msra.mxu0 %v1019
        %1471 = vmatprep.subr.bf16.mxu0 0
        %1472 = vmatpush1.bf16.msra.mxu0 0
        %1473 = vmatprep.subr.bf16.mxu0 0
        %1474 = vmatpush1.bf16.msra.mxu0 0
        %1475 = vmatprep.subr.bf16.mxu0 0
        %1476 = vmatpush1.bf16.msra.mxu0 0
        %1477 = vmatprep.subr.bf16.mxu0 0
        %1478 = vmatpush1.bf16.msra.mxu0 0
        %1479 = vmatprep.subr.bf16.mxu0 0
        %1480 = vmatpush1.bf16.msra.mxu0 0
        %1481 = vmatprep.subr.bf16.mxu0 0
        %1482 = vmatpush1.bf16.msra.mxu0 0
        %1483 = vmatprep.subr.bf16.mxu0 0
        %1484 = vmatpush1.bf16.msra.mxu0 0
        %1485 = vmatprep.subr.bf16.mxu0 0
        %1486 = vmatpush1.bf16.msra.mxu0 0
        %1487 = vmatprep.mubr.bf16.mxu0 0
        %1488 = vmatmul.mubr.bf16.gmra.mrb[0].mxu0 %v765
        %v1489 = vpop.f32.mrb[0].mxu0
        %v1490 = vadd.f32 0.0, %v1489
        %v1491 = vpop.f32.mrb[0].mxu0
        %v1492 = vadd.f32 0.0, %v1491
        %v1493 = vpop.f32.mrb[0].mxu0
        %v1494 = vadd.f32 0.0, %v1493
        %v1495 = vpop.f32.mrb[0].mxu0
        %v1496 = vadd.f32 0.0, %v1495
        %1497 = vmatprep.mubr.bf16.mxu0 0
        %1498 = vmatmul.mubr.bf16.gmra.mrb[0].mxu0 %v766
        %v1499 = vpop.f32.mrb[0].mxu0
        %v1500 = vadd.f32 0.0, %v1499
        %v1501 = vpop.f32.mrb[0].mxu0
        %v1502 = vadd.f32 0.0, %v1501
        %v1503 = vpop.f32.mrb[0].mxu0
        %v1504 = vadd.f32 0.0, %v1503
        %v1505 = vpop.f32.mrb[0].mxu0
        %v1506 = vadd.f32 0.0, %v1505
        %1507 = vmatprep.mubr.bf16.mxu0 0
        %1508 = vmatmul.mubr.bf16.gmra.mrb[0].mxu0 %v767
        %v1509 = vpop.f32.mrb[0].mxu0
        %v1510 = vadd.f32 0.0, %v1509
        %v1511 = vpop.f32.mrb[0].mxu0
        %v1512 = vadd.f32 0.0, %v1511
        %v1513 = vpop.f32.mrb[0].mxu0
        %v1514 = vadd.f32 0.0, %v1513
        %v1515 = vpop.f32.mrb[0].mxu0
        %v1516 = vadd.f32 0.0, %v1515
        %1517 = vmatprep.mubr.bf16.mxu0 0
        %1518 = vmatmul.mubr.bf16.gmra.mrb[0].mxu0 %v768
        %v1519 = vpop.f32.mrb[0].mxu0
        %v1520 = vadd.f32 0.0, %v1519
        %v1521 = vpop.f32.mrb[0].mxu0
        %v1522 = vadd.f32 0.0, %v1521
        %v1523 = vpop.f32.mrb[0].mxu0
        %v1524 = vadd.f32 0.0, %v1523
        %v1525 = vpop.f32.mrb[0].mxu0
        %v1526 = vadd.f32 0.0, %v1525
        %1527 = vmatprep.mubr.bf16.mxu0 0
        %1528 = vmatmul.mubr.bf16.gmra.mrb[0].mxu0 %v769
        %v1529 = vpop.f32.mrb[0].mxu0
        %v1530 = vadd.f32 0.0, %v1529
        %v1531 = vpop.f32.mrb[0].mxu0
        %v1532 = vadd.f32 0.0, %v1531
        %v1533 = vpop.f32.mrb[0].mxu0
        %v1534 = vadd.f32 0.0, %v1533
        %v1535 = vpop.f32.mrb[0].mxu0
        %v1536 = vadd.f32 0.0, %v1535
        %1537 = vmatprep.mubr.bf16.mxu0 0
        %1538 = vmatmul.mubr.bf16.gmra.mrb[0].mxu0 %v770
        %v1539 = vpop.f32.mrb[0].mxu0
        %v1540 = vadd.f32 0.0, %v1539
        %v1541 = vpop.f32.mrb[0].mxu0
        %v1542 = vadd.f32 0.0, %v1541
        %v1543 = vpop.f32.mrb[0].mxu0
        %v1544 = vadd.f32 0.0, %v1543
        %v1545 = vpop.f32.mrb[0].mxu0
        %v1546 = vadd.f32 0.0, %v1545
        %1547 = vmatprep.mubr.bf16.mxu0 0
        %1548 = vmatmul.mubr.bf16.gmra.mrb[0].mxu0 %v771
        %v1549 = vpop.f32.mrb[0].mxu0
        %v1550 = vadd.f32 0.0, %v1549
        %v1551 = vpop.f32.mrb[0].mxu0
        %v1552 = vadd.f32 0.0, %v1551
        %v1553 = vpop.f32.mrb[0].mxu0
        %v1554 = vadd.f32 0.0, %v1553
        %v1555 = vpop.f32.mrb[0].mxu0
        %v1556 = vadd.f32 0.0, %v1555
        %1557 = vmatprep.mubr.bf16.mxu0 0
        %1558 = vmatmul.mubr.bf16.gmra.mrb[0].mxu0 %v772
        %v1559 = vpop.f32.mrb[0].mxu0
        %v1560 = vadd.f32 0.0, %v1559
        %v1561 = vpop.f32.mrb[0].mxu0
        %v1562 = vadd.f32 0.0, %v1561
        %v1563 = vpop.f32.mrb[0].mxu0
        %v1564 = vadd.f32 0.0, %v1563
        %v1565 = vpop.f32.mrb[0].mxu0
        %v1566 = vadd.f32 0.0, %v1565
        %1567 = vmatprep.mubr.bf16.mxu0 0
        %1568 = vmatmul.mubr.bf16.gmra.mrb[0].mxu0 %v773
        %v1569 = vpop.f32.mrb[0].mxu0
        %v1570 = vadd.f32 0.0, %v1569
        %v1571 = vpop.f32.mrb[0].mxu0
        %v1572 = vadd.f32 0.0, %v1571
        %v1573 = vpop.f32.mrb[0].mxu0
        %v1574 = vadd.f32 0.0, %v1573
        %v1575 = vpop.f32.mrb[0].mxu0
        %v1576 = vadd.f32 0.0, %v1575
        %1577 = vmatprep.mubr.bf16.mxu0 0
        %1578 = vmatmul.mubr.bf16.gmra.mrb[0].mxu0 %v774
        %v1579 = vpop.f32.mrb[0].mxu0
        %v1580 = vadd.f32 0.0, %v1579
        %v1581 = vpop.f32.mrb[0].mxu0
        %v1582 = vadd.f32 0.0, %v1581
        %v1583 = vpop.f32.mrb[0].mxu0
        %v1584 = vadd.f32 0.0, %v1583
        %v1585 = vpop.f32.mrb[0].mxu0
        %v1586 = vadd.f32 0.0, %v1585
        %1587 = vmatprep.mubr.bf16.mxu0 0
        %1588 = vmatmul.mubr.bf16.gmra.mrb[0].mxu0 %v775
        %v1589 = vpop.f32.mrb[0].mxu0
        %v1590 = vadd.f32 0.0, %v1589
        %v1591 = vpop.f32.mrb[0].mxu0
        %v1592 = vadd.f32 0.0, %v1591
        %v1593 = vpop.f32.mrb[0].mxu0
        %v1594 = vadd.f32 0.0, %v1593
        %v1595 = vpop.f32.mrb[0].mxu0
        %v1596 = vadd.f32 0.0, %v1595
        %1597 = vmatprep.mubr.bf16.mxu0 0
        %1598 = vmatmul.mubr.bf16.gmra.mrb[0].mxu0 %v776
        %v1599 = vpop.f32.mrb[0].mxu0
        %v1600 = vadd.f32 0.0, %v1599
        %v1601 = vpop.f32.mrb[0].mxu0
        %v1602 = vadd.f32 0.0, %v1601
        %v1603 = vpop.f32.mrb[0].mxu0
        %v1604 = vadd.f32 0.0, %v1603
        %v1605 = vpop.f32.mrb[0].mxu0
        %v1606 = vadd.f32 0.0, %v1605
        %1607 = vmatprep.mubr.bf16.mxu0 0
        %1608 = vmatmul.mubr.bf16.gmra.mrb[0].mxu0 %v777
        %v1609 = vpop.f32.mrb[0].mxu0
        %v1610 = vadd.f32 0.0, %v1609
        %v1611 = vpop.f32.mrb[0].mxu0
        %v1612 = vadd.f32 0.0, %v1611
        %v1613 = vpop.f32.mrb[0].mxu0
        %v1614 = vadd.f32 0.0, %v1613
        %v1615 = vpop.f32.mrb[0].mxu0
        %v1616 = vadd.f32 0.0, %v1615
        %1617 = vmatprep.mubr.bf16.mxu0 0
        %1618 = vmatmul.mubr.bf16.gmra.mrb[0].mxu0 %v778
        %v1619 = vpop.f32.mrb[0].mxu0
        %v1620 = vadd.f32 0.0, %v1619
        %v1621 = vpop.f32.mrb[0].mxu0
        %v1622 = vadd.f32 0.0, %v1621
        %v1623 = vpop.f32.mrb[0].mxu0
        %v1624 = vadd.f32 0.0, %v1623
        %v1625 = vpop.f32.mrb[0].mxu0
        %v1626 = vadd.f32 0.0, %v1625
        %1627 = vmatprep.mubr.bf16.mxu0 0
        %1628 = vmatmul.mubr.bf16.gmra.mrb[0].mxu0 %v779
        %v1629 = vpop.f32.mrb[0].mxu0
        %v1630 = vadd.f32 0.0, %v1629
        %v1631 = vpop.f32.mrb[0].mxu0
        %v1632 = vadd.f32 0.0, %v1631
        %v1633 = vpop.f32.mrb[0].mxu0
        %v1634 = vadd.f32 0.0, %v1633
        %v1635 = vpop.f32.mrb[0].mxu0
        %v1636 = vadd.f32 0.0, %v1635
        %1637 = vmatprep.mubr.bf16.mxu0 0
        %1638 = vmatmul.mubr.bf16.gmra.mrb[0].mxu0 %v780
        %v1639 = vpop.f32.mrb[0].mxu0
        %v1640 = vadd.f32 0.0, %v1639
        %v1641 = vpop.f32.mrb[0].mxu0
        %v1642 = vadd.f32 0.0, %v1641
        %v1643 = vpop.f32.mrb[0].mxu0
        %v1644 = vadd.f32 0.0, %v1643
        %v1645 = vpop.f32.mrb[0].mxu0
        %v1646 = vadd.f32 0.0, %v1645
        %1647 = vdwg.mxu0
        %v1648 = vld [vmem:[%s4] sm:$0x3]
        %v1650 = vlaneseq
        %v1651 = vshrl.u32 %v1650, 7
        %v1652 = vsub.s32 0, %v1651
        %v1653 = vrot.slane %v1648, %v1652
        %v1654 = vlaneseq
        %v1655 = vshrl.u32 %v1654, 7
        %v1656 = vsub.s32 1, %v1655
        %v1657 = vrot.slane %v1648, %v1656
        %v1660 = vadd.f32 %v1104, %v1653
        %v1661 = vadd.f32 %v1106, %v1657
        %v1662 = vadd.f32 %v1108, %v1653
        %v1663 = vadd.f32 %v1110, %v1657
        %v1664 = vadd.f32 %v1114, %v1653
        %v1665 = vadd.f32 %v1116, %v1657
        %v1666 = vadd.f32 %v1118, %v1653
        %v1667 = vadd.f32 %v1120, %v1657
        %v1668 = vadd.f32 %v1124, %v1653
        %v1669 = vadd.f32 %v1126, %v1657
        %v1670 = vadd.f32 %v1128, %v1653
        %v1671 = vadd.f32 %v1130, %v1657
        %v1672 = vadd.f32 %v1134, %v1653
        %v1673 = vadd.f32 %v1136, %v1657
        %v1674 = vadd.f32 %v1138, %v1653
        %v1675 = vadd.f32 %v1140, %v1657
        %v1676 = vadd.f32 %v1144, %v1653
        %v1677 = vadd.f32 %v1146, %v1657
        %v1678 = vadd.f32 %v1148, %v1653
        %v1679 = vadd.f32 %v1150, %v1657
        %v1680 = vadd.f32 %v1154, %v1653
        %v1681 = vadd.f32 %v1156, %v1657
        %v1682 = vadd.f32 %v1158, %v1653
        %v1683 = vadd.f32 %v1160, %v1657
        %v1684 = vadd.f32 %v1164, %v1653
        %v1685 = vadd.f32 %v1166, %v1657
        %v1686 = vadd.f32 %v1168, %v1653
        %v1687 = vadd.f32 %v1170, %v1657
        %v1688 = vadd.f32 %v1174, %v1653
        %v1689 = vadd.f32 %v1176, %v1657
        %v1690 = vadd.f32 %v1178, %v1653
        %v1691 = vadd.f32 %v1180, %v1657
        %v1692 = vadd.f32 %v1184, %v1653
        %v1693 = vadd.f32 %v1186, %v1657
        %v1694 = vadd.f32 %v1188, %v1653
        %v1695 = vadd.f32 %v1190, %v1657
        %v1696 = vadd.f32 %v1194, %v1653
        %v1697 = vadd.f32 %v1196, %v1657
        %v1698 = vadd.f32 %v1198, %v1653
        %v1699 = vadd.f32 %v1200, %v1657
        %v1700 = vadd.f32 %v1204, %v1653
        %v1701 = vadd.f32 %v1206, %v1657
        %v1702 = vadd.f32 %v1208, %v1653
        %v1703 = vadd.f32 %v1210, %v1657
        %v1704 = vadd.f32 %v1214, %v1653
        %v1705 = vadd.f32 %v1216, %v1657
        %v1706 = vadd.f32 %v1218, %v1653
        %v1707 = vadd.f32 %v1220, %v1657
        %v1708 = vadd.f32 %v1224, %v1653
        %v1709 = vadd.f32 %v1226, %v1657
        %v1710 = vadd.f32 %v1228, %v1653
        %v1711 = vadd.f32 %v1230, %v1657
        %v1712 = vadd.f32 %v1234, %v1653
        %v1713 = vadd.f32 %v1236, %v1657
        %v1714 = vadd.f32 %v1238, %v1653
        %v1715 = vadd.f32 %v1240, %v1657
        %v1716 = vadd.f32 %v1244, %v1653
        %v1717 = vadd.f32 %v1246, %v1657
        %v1718 = vadd.f32 %v1248, %v1653
        %v1719 = vadd.f32 %v1250, %v1657
        %v1720 = vadd.f32 %v1254, %v1653
        %v1721 = vadd.f32 %v1256, %v1657
        %v1722 = vadd.f32 %v1258, %v1653
        %v1723 = vadd.f32 %v1260, %v1657
        %v1724 = vmax.f32 %v1660, %v1662
        %v1725 = vmax.f32 %v1724, %v1664
        %v1726 = vmax.f32 %v1725, %v1666
        %v1727 = vrot.slane %v1726, 4
        %v1728 = vmax.f32 %v1726, %v1727
        %v1729 = vrot.slane %v1728, 2
        %v1730 = vmax.f32 %v1728, %v1729
        %v1731 = vrot.slane %v1730, 1
        %v1732 = vmax.f32 %v1730, %v1731
        %v1733 = vmax.f32 %v1661, %v1663
        %v1734 = vmax.f32 %v1733, %v1665
        %v1735 = vmax.f32 %v1734, %v1667
        %v1736 = vrot.slane %v1735, 4
        %v1737 = vmax.f32 %v1735, %v1736
        %v1738 = vrot.slane %v1737, 2
        %v1739 = vmax.f32 %v1737, %v1738
        %v1740 = vrot.slane %v1739, 1
        %v1741 = vmax.f32 %v1739, %v1740
        %v1742 = vmax.f32 %v1668, %v1670
        %v1743 = vmax.f32 %v1742, %v1672
        %v1744 = vmax.f32 %v1743, %v1674
        %v1745 = vrot.slane %v1744, 4
        %v1746 = vmax.f32 %v1744, %v1745
        %v1747 = vrot.slane %v1746, 2
        %v1748 = vmax.f32 %v1746, %v1747
        %v1749 = vrot.slane %v1748, 1
        %v1750 = vmax.f32 %v1748, %v1749
        %v1751 = vmax.f32 %v1669, %v1671
        %v1752 = vmax.f32 %v1751, %v1673
        %v1753 = vmax.f32 %v1752, %v1675
        %v1754 = vrot.slane %v1753, 4
        %v1755 = vmax.f32 %v1753, %v1754
        %v1756 = vrot.slane %v1755, 2
        %v1757 = vmax.f32 %v1755, %v1756
        %v1758 = vrot.slane %v1757, 1
        %v1759 = vmax.f32 %v1757, %v1758
        %v1760 = vmax.f32 %v1676, %v1678
        %v1761 = vmax.f32 %v1760, %v1680
        %v1762 = vmax.f32 %v1761, %v1682
        %v1763 = vrot.slane %v1762, 4
        %v1764 = vmax.f32 %v1762, %v1763
        %v1765 = vrot.slane %v1764, 2
        %v1766 = vmax.f32 %v1764, %v1765
        %v1767 = vrot.slane %v1766, 1
        %v1768 = vmax.f32 %v1766, %v1767
        %v1769 = vmax.f32 %v1677, %v1679
        %v1770 = vmax.f32 %v1769, %v1681
        %v1771 = vmax.f32 %v1770, %v1683
        %v1772 = vrot.slane %v1771, 4
        %v1773 = vmax.f32 %v1771, %v1772
        %v1774 = vrot.slane %v1773, 2
        %v1775 = vmax.f32 %v1773, %v1774
        %v1776 = vrot.slane %v1775, 1
        %v1777 = vmax.f32 %v1775, %v1776
        %v1778 = vmax.f32 %v1684, %v1686
        %v1779 = vmax.f32 %v1778, %v1688
        %v1780 = vmax.f32 %v1779, %v1690
        %v1781 = vrot.slane %v1780, 4
        %v1782 = vmax.f32 %v1780, %v1781
        %v1783 = vrot.slane %v1782, 2
        %v1784 = vmax.f32 %v1782, %v1783
        %v1785 = vrot.slane %v1784, 1
        %v1786 = vmax.f32 %v1784, %v1785
        %v1787 = vmax.f32 %v1685, %v1687
        %v1788 = vmax.f32 %v1787, %v1689
        %v1789 = vmax.f32 %v1788, %v1691
        %v1790 = vrot.slane %v1789, 4
        %v1791 = vmax.f32 %v1789, %v1790
        %v1792 = vrot.slane %v1791, 2
        %v1793 = vmax.f32 %v1791, %v1792
        %v1794 = vrot.slane %v1793, 1
        %v1795 = vmax.f32 %v1793, %v1794
        %v1796 = vmax.f32 %v1692, %v1694
        %v1797 = vmax.f32 %v1796, %v1696
        %v1798 = vmax.f32 %v1797, %v1698
        %v1799 = vrot.slane %v1798, 4
        %v1800 = vmax.f32 %v1798, %v1799
        %v1801 = vrot.slane %v1800, 2
        %v1802 = vmax.f32 %v1800, %v1801
        %v1803 = vrot.slane %v1802, 1
        %v1804 = vmax.f32 %v1802, %v1803
        %v1805 = vmax.f32 %v1693, %v1695
        %v1806 = vmax.f32 %v1805, %v1697
        %v1807 = vmax.f32 %v1806, %v1699
        %v1808 = vrot.slane %v1807, 4
        %v1809 = vmax.f32 %v1807, %v1808
        %v1810 = vrot.slane %v1809, 2
        %v1811 = vmax.f32 %v1809, %v1810
        %v1812 = vrot.slane %v1811, 1
        %v1813 = vmax.f32 %v1811, %v1812
        %v1814 = vmax.f32 %v1700, %v1702
        %v1815 = vmax.f32 %v1814, %v1704
        %v1816 = vmax.f32 %v1815, %v1706
        %v1817 = vrot.slane %v1816, 4
        %v1818 = vmax.f32 %v1816, %v1817
        %v1819 = vrot.slane %v1818, 2
        %v1820 = vmax.f32 %v1818, %v1819
        %v1821 = vrot.slane %v1820, 1
        %v1822 = vmax.f32 %v1820, %v1821
        %v1823 = vmax.f32 %v1701, %v1703
        %v1824 = vmax.f32 %v1823, %v1705
        %v1825 = vmax.f32 %v1824, %v1707
        %v1826 = vrot.slane %v1825, 4
        %v1827 = vmax.f32 %v1825, %v1826
        %v1828 = vrot.slane %v1827, 2
        %v1829 = vmax.f32 %v1827, %v1828
        %v1830 = vrot.slane %v1829, 1
        %v1831 = vmax.f32 %v1829, %v1830
        %v1832 = vmax.f32 %v1708, %v1710
        %v1833 = vmax.f32 %v1832, %v1712
        %v1834 = vmax.f32 %v1833, %v1714
        %v1835 = vrot.slane %v1834, 4
        %v1836 = vmax.f32 %v1834, %v1835
        %v1837 = vrot.slane %v1836, 2
        %v1838 = vmax.f32 %v1836, %v1837
        %v1839 = vrot.slane %v1838, 1
        %v1840 = vmax.f32 %v1838, %v1839
        %v1841 = vmax.f32 %v1709, %v1711
        %v1842 = vmax.f32 %v1841, %v1713
        %v1843 = vmax.f32 %v1842, %v1715
        %v1844 = vrot.slane %v1843, 4
        %v1845 = vmax.f32 %v1843, %v1844
        %v1846 = vrot.slane %v1845, 2
        %v1847 = vmax.f32 %v1845, %v1846
        %v1848 = vrot.slane %v1847, 1
        %v1849 = vmax.f32 %v1847, %v1848
        %v1850 = vmax.f32 %v1716, %v1718
        %v1851 = vmax.f32 %v1850, %v1720
        %v1852 = vmax.f32 %v1851, %v1722
        %v1853 = vrot.slane %v1852, 4
        %v1854 = vmax.f32 %v1852, %v1853
        %v1855 = vrot.slane %v1854, 2
        %v1856 = vmax.f32 %v1854, %v1855
        %v1857 = vrot.slane %v1856, 1
        %v1858 = vmax.f32 %v1856, %v1857
        %v1859 = vmax.f32 %v1717, %v1719
        %v1860 = vmax.f32 %v1859, %v1721
        %v1861 = vmax.f32 %v1860, %v1723
        %v1862 = vrot.slane %v1861, 4
        %v1863 = vmax.f32 %v1861, %v1862
        %v1864 = vrot.slane %v1863, 2
        %v1865 = vmax.f32 %v1863, %v1864
        %v1866 = vrot.slane %v1865, 1
        %v1867 = vmax.f32 %v1865, %v1866
        %v1868 = vpack.c.bf16 %v1732, %v1732
        %v1869 = vpack.c.bf16 %v1741, %v1741
        %v1870 = vpack.c.bf16 %v1750, %v1750
        %v1871 = vpack.c.bf16 %v1759, %v1759
        %v1872 = vpack.c.bf16 %v1768, %v1768
        %v1873 = vpack.c.bf16 %v1777, %v1777
        %v1874 = vpack.c.bf16 %v1786, %v1786
        %v1875 = vpack.c.bf16 %v1795, %v1795
        %v1876 = vpack.c.bf16 %v1804, %v1804
        %v1877 = vpack.c.bf16 %v1813, %v1813
        %v1878 = vpack.c.bf16 %v1822, %v1822
        %v1879 = vpack.c.bf16 %v1831, %v1831
        %v1880 = vpack.c.bf16 %v1840, %v1840
        %v1881 = vpack.c.bf16 %v1849, %v1849
        %v1882 = vpack.c.bf16 %v1858, %v1858
        %v1883 = vpack.c.bf16 %v1867, %v1867
        %v1884 = vld [vmem:[%s5] sm:$0xff]
        %v1885 = vld [vmem:[%s5 + $0x8] sm:$0xff]
        %v1886 = vld [vmem:[%s5 + $0x10] sm:$0xff]
        %v1887 = vld [vmem:[%s5 + $0x18] sm:$0xff]
        %v1888 = vld [vmem:[%s5 + $0x20] sm:$0xff]
        %v1889 = vld [vmem:[%s5 + $0x28] sm:$0xff]
        %v1890 = vld [vmem:[%s5 + $0x30] sm:$0xff]
        %v1891 = vld [vmem:[%s5 + $0x38] sm:$0xff]
        %v1892 = vld [vmem:[%s5 + $0x40] sm:$0xff]
        %v1893 = vld [vmem:[%s5 + $0x48] sm:$0xff]
        %v1894 = vld [vmem:[%s5 + $0x50] sm:$0xff]
        %v1895 = vld [vmem:[%s5 + $0x58] sm:$0xff]
        %v1896 = vld [vmem:[%s5 + $0x60] sm:$0xff]
        %v1897 = vld [vmem:[%s5 + $0x68] sm:$0xff]
        %v1898 = vld [vmem:[%s5 + $0x70] sm:$0xff]
        %v1899 = vld [vmem:[%s5 + $0x78] sm:$0xff]
        %v1900 = vld [vmem:[%s5 + $0x80] sm:$0xff]
        %v1901 = vld [vmem:[%s5 + $0x88] sm:$0xff]
        %v1902 = vld [vmem:[%s5 + $0x90] sm:$0xff]
        %v1903 = vld [vmem:[%s5 + $0x98] sm:$0xff]
        %v1904 = vld [vmem:[%s5 + $0xa0] sm:$0xff]
        %v1905 = vld [vmem:[%s5 + $0xa8] sm:$0xff]
        %v1906 = vld [vmem:[%s5 + $0xb0] sm:$0xff]
        %v1907 = vld [vmem:[%s5 + $0xb8] sm:$0xff]
        %v1908 = vld [vmem:[%s5 + $0xc0] sm:$0xff]
        %v1909 = vld [vmem:[%s5 + $0xc8] sm:$0xff]
        %v1910 = vld [vmem:[%s5 + $0xd0] sm:$0xff]
        %v1911 = vld [vmem:[%s5 + $0xd8] sm:$0xff]
        %v1912 = vld [vmem:[%s5 + $0xe0] sm:$0xff]
        %v1913 = vld [vmem:[%s5 + $0xe8] sm:$0xff]
        %v1914 = vld [vmem:[%s5 + $0xf0] sm:$0xff]
        %v1915 = vld [vmem:[%s5 + $0xf8] sm:$0xff]
        %v1916 = vld [vmem:[%s5 + $0x100] sm:$0xff]
        %v1917 = vld [vmem:[%s5 + $0x108] sm:$0xff]
        %v1918 = vld [vmem:[%s5 + $0x110] sm:$0xff]
        %v1919 = vld [vmem:[%s5 + $0x118] sm:$0xff]
        %v1920 = vld [vmem:[%s5 + $0x120] sm:$0xff]
        %v1921 = vld [vmem:[%s5 + $0x128] sm:$0xff]
        %v1922 = vld [vmem:[%s5 + $0x130] sm:$0xff]
        %v1923 = vld [vmem:[%s5 + $0x138] sm:$0xff]
        %v1924 = vld [vmem:[%s5 + $0x140] sm:$0xff]
        %v1925 = vld [vmem:[%s5 + $0x148] sm:$0xff]
        %v1926 = vld [vmem:[%s5 + $0x150] sm:$0xff]
        %v1927 = vld [vmem:[%s5 + $0x158] sm:$0xff]
        %v1928 = vld [vmem:[%s5 + $0x160] sm:$0xff]
        %v1929 = vld [vmem:[%s5 + $0x168] sm:$0xff]
        %v1930 = vld [vmem:[%s5 + $0x170] sm:$0xff]
        %v1931 = vld [vmem:[%s5 + $0x178] sm:$0xff]
        %v1932 = vld [vmem:[%s5 + $0x180] sm:$0xff]
        %v1933 = vld [vmem:[%s5 + $0x188] sm:$0xff]
        %v1934 = vld [vmem:[%s5 + $0x190] sm:$0xff]
        %v1935 = vld [vmem:[%s5 + $0x198] sm:$0xff]
        %v1936 = vld [vmem:[%s5 + $0x1a0] sm:$0xff]
        %v1937 = vld [vmem:[%s5 + $0x1a8] sm:$0xff]
        %v1938 = vld [vmem:[%s5 + $0x1b0] sm:$0xff]
        %v1939 = vld [vmem:[%s5 + $0x1b8] sm:$0xff]
        %v1940 = vld [vmem:[%s5 + $0x1c0] sm:$0xff]
        %v1941 = vld [vmem:[%s5 + $0x1c8] sm:$0xff]
        %v1942 = vld [vmem:[%s5 + $0x1d0] sm:$0xff]
        %v1943 = vld [vmem:[%s5 + $0x1d8] sm:$0xff]
        %v1944 = vld [vmem:[%s5 + $0x1e0] sm:$0xff]
        %v1945 = vld [vmem:[%s5 + $0x1e8] sm:$0xff]
        %v1946 = vld [vmem:[%s5 + $0x1f0] sm:$0xff]
        %v1947 = vld [vmem:[%s5 + $0x1f8] sm:$0xff]
        %v1964 = vunpack.c.l.b16 %v1868
        %v1965 = vunpack.c.l.b16 %v1869
        %v1966 = vunpack.c.l.b16 %v1870
        %v1967 = vunpack.c.l.b16 %v1871
        %v1968 = vunpack.c.l.b16 %v1872
        %v1969 = vunpack.c.l.b16 %v1873
        %v1970 = vunpack.c.l.b16 %v1874
        %v1971 = vunpack.c.l.b16 %v1875
        %v1972 = vunpack.c.l.b16 %v1876
        %v1973 = vunpack.c.l.b16 %v1877
        %v1974 = vunpack.c.l.b16 %v1878
        %v1975 = vunpack.c.l.b16 %v1879
        %v1976 = vunpack.c.l.b16 %v1880
        %v1977 = vunpack.c.l.b16 %v1881
        %v1978 = vunpack.c.l.b16 %v1882
        %v1979 = vunpack.c.l.b16 %v1883
        %vm1980 = vcmask 1041409
        %v1981 = vsel %vm1980, %v1966, %v1964
        %vm1982 = vcmask 1042434
        %v1983 = vsel %vm1982, %v1968, %v1981
        %vm1984 = vcmask 1043459
        %v1985 = vsel %vm1984, %v1970, %v1983
        %vm1986 = vcmask 1044484
        %v1987 = vsel %vm1986, %v1972, %v1985
        %vm1988 = vcmask 1045509
        %v1989 = vsel %vm1988, %v1974, %v1987
        %vm1990 = vcmask 1046534
        %v1991 = vsel %vm1990, %v1976, %v1989
        %vm1992 = vcmask 1047559
        %v1993 = vsel %vm1992, %v1978, %v1991
        %v1994 = vsel %vm1980, %v1967, %v1965
        %v1995 = vsel %vm1982, %v1969, %v1994
        %v1996 = vsel %vm1984, %v1971, %v1995
        %v1997 = vsel %vm1986, %v1973, %v1996
        %v1998 = vsel %vm1988, %v1975, %v1997
        %v1999 = vsel %vm1990, %v1977, %v1998
        %v2000 = vsel %vm1992, %v1979, %v1999
        %v2001 = vpack.c.b16 %v1993, %v1993
        %v2002 = vpack.c.b16 %v2000, %v2000
        %v2069 = vunpack.c.l.b16 %v1884
        %v2070 = vunpack.c.h.b16 %v1884
        %v2071 = vunpack.c.l.b16 %v1885
        %v2072 = vunpack.c.h.b16 %v1885
        %v2073 = vunpack.c.l.b16 %v1886
        %v2074 = vunpack.c.h.b16 %v1886
        %v2075 = vunpack.c.l.b16 %v1887
        %v2076 = vunpack.c.h.b16 %v1887
        %v2077 = vunpack.c.l.b16 %v1888
        %v2078 = vunpack.c.h.b16 %v1888
        %v2079 = vunpack.c.l.b16 %v1889
        %v2080 = vunpack.c.h.b16 %v1889
        %v2081 = vunpack.c.l.b16 %v1890
        %v2082 = vunpack.c.h.b16 %v1890
        %v2083 = vunpack.c.l.b16 %v1891
        %v2084 = vunpack.c.h.b16 %v1891
        %v2085 = vunpack.c.l.b16 %v1892
        %v2086 = vunpack.c.h.b16 %v1892
        %v2087 = vunpack.c.l.b16 %v1893
        %v2088 = vunpack.c.h.b16 %v1893
        %v2089 = vunpack.c.l.b16 %v1894
        %v2090 = vunpack.c.h.b16 %v1894
        %v2091 = vunpack.c.l.b16 %v1895
        %v2092 = vunpack.c.h.b16 %v1895
        %v2093 = vunpack.c.l.b16 %v1896
        %v2094 = vunpack.c.h.b16 %v1896
        %v2095 = vunpack.c.l.b16 %v1897
        %v2096 = vunpack.c.h.b16 %v1897
        %v2097 = vunpack.c.l.b16 %v1898
        %v2098 = vunpack.c.h.b16 %v1898
        %v2099 = vunpack.c.l.b16 %v1899
        %v2100 = vunpack.c.h.b16 %v1899
        %v2101 = vunpack.c.l.b16 %v1900
        %v2102 = vunpack.c.h.b16 %v1900
        %v2103 = vunpack.c.l.b16 %v1901
        %v2104 = vunpack.c.h.b16 %v1901
        %v2105 = vunpack.c.l.b16 %v1902
        %v2106 = vunpack.c.h.b16 %v1902
        %v2107 = vunpack.c.l.b16 %v1903
        %v2108 = vunpack.c.h.b16 %v1903
        %v2109 = vunpack.c.l.b16 %v1904
        %v2110 = vunpack.c.h.b16 %v1904
        %v2111 = vunpack.c.l.b16 %v1905
        %v2112 = vunpack.c.h.b16 %v1905
        %v2113 = vunpack.c.l.b16 %v1906
        %v2114 = vunpack.c.h.b16 %v1906
        %v2115 = vunpack.c.l.b16 %v1907
        %v2116 = vunpack.c.h.b16 %v1907
        %v2117 = vunpack.c.l.b16 %v1908
        %v2118 = vunpack.c.h.b16 %v1908
        %v2119 = vunpack.c.l.b16 %v1909
        %v2120 = vunpack.c.h.b16 %v1909
        %v2121 = vunpack.c.l.b16 %v1910
        %v2122 = vunpack.c.h.b16 %v1910
        %v2123 = vunpack.c.l.b16 %v1911
        %v2124 = vunpack.c.h.b16 %v1911
        %v2125 = vunpack.c.l.b16 %v1912
        %v2126 = vunpack.c.h.b16 %v1912
        %v2127 = vunpack.c.l.b16 %v1913
        %v2128 = vunpack.c.h.b16 %v1913
        %v2129 = vunpack.c.l.b16 %v1914
        %v2130 = vunpack.c.h.b16 %v1914
        %v2131 = vunpack.c.l.b16 %v1915
        %v2132 = vunpack.c.h.b16 %v1915
        %v2133 = vunpack.c.l.b16 %v1916
        %v2134 = vunpack.c.h.b16 %v1916
        %v2135 = vunpack.c.l.b16 %v1917
        %v2136 = vunpack.c.h.b16 %v1917
        %v2137 = vunpack.c.l.b16 %v1918
        %v2138 = vunpack.c.h.b16 %v1918
        %v2139 = vunpack.c.l.b16 %v1919
        %v2140 = vunpack.c.h.b16 %v1919
        %v2141 = vunpack.c.l.b16 %v1920
        %v2142 = vunpack.c.h.b16 %v1920
        %v2143 = vunpack.c.l.b16 %v1921
        %v2144 = vunpack.c.h.b16 %v1921
        %v2145 = vunpack.c.l.b16 %v1922
        %v2146 = vunpack.c.h.b16 %v1922
        %v2147 = vunpack.c.l.b16 %v1923
        %v2148 = vunpack.c.h.b16 %v1923
        %v2149 = vunpack.c.l.b16 %v1924
        %v2150 = vunpack.c.h.b16 %v1924
        %v2151 = vunpack.c.l.b16 %v1925
        %v2152 = vunpack.c.h.b16 %v1925
        %v2153 = vunpack.c.l.b16 %v1926
        %v2154 = vunpack.c.h.b16 %v1926
        %v2155 = vunpack.c.l.b16 %v1927
        %v2156 = vunpack.c.h.b16 %v1927
        %v2157 = vunpack.c.l.b16 %v1928
        %v2158 = vunpack.c.h.b16 %v1928
        %v2159 = vunpack.c.l.b16 %v1929
        %v2160 = vunpack.c.h.b16 %v1929
        %v2161 = vunpack.c.l.b16 %v1930
        %v2162 = vunpack.c.h.b16 %v1930
        %v2163 = vunpack.c.l.b16 %v1931
        %v2164 = vunpack.c.h.b16 %v1931
        %v2165 = vunpack.c.l.b16 %v1932
        %v2166 = vunpack.c.h.b16 %v1932
        %v2167 = vunpack.c.l.b16 %v1933
        %v2168 = vunpack.c.h.b16 %v1933
        %v2169 = vunpack.c.l.b16 %v1934
        %v2170 = vunpack.c.h.b16 %v1934
        %v2171 = vunpack.c.l.b16 %v1935
        %v2172 = vunpack.c.h.b16 %v1935
        %v2173 = vunpack.c.l.b16 %v1936
        %v2174 = vunpack.c.h.b16 %v1936
        %v2175 = vunpack.c.l.b16 %v1937
        %v2176 = vunpack.c.h.b16 %v1937
        %v2177 = vunpack.c.l.b16 %v1938
        %v2178 = vunpack.c.h.b16 %v1938
        %v2179 = vunpack.c.l.b16 %v1939
        %v2180 = vunpack.c.h.b16 %v1939
        %v2181 = vunpack.c.l.b16 %v1940
        %v2182 = vunpack.c.h.b16 %v1940
        %v2183 = vunpack.c.l.b16 %v1941
        %v2184 = vunpack.c.h.b16 %v1941
        %v2185 = vunpack.c.l.b16 %v1942
        %v2186 = vunpack.c.h.b16 %v1942
        %v2187 = vunpack.c.l.b16 %v1943
        %v2188 = vunpack.c.h.b16 %v1943
        %v2189 = vunpack.c.l.b16 %v1944
        %v2190 = vunpack.c.h.b16 %v1944
        %v2191 = vunpack.c.l.b16 %v1945
        %v2192 = vunpack.c.h.b16 %v1945
        %v2193 = vunpack.c.l.b16 %v1946
        %v2194 = vunpack.c.h.b16 %v1946
        %v2195 = vunpack.c.l.b16 %v1947
        %v2196 = vunpack.c.h.b16 %v1947
        %v2197 = vpack.c.b16 %v2073, %v2069
        %v2198 = vpack.c.b16 %v2074, %v2070
        %v2199 = vpack.c.b16 %v2075, %v2071
        %v2200 = vpack.c.b16 %v2076, %v2072
        %v2201 = vpack.c.b16 %v2081, %v2077
        %v2202 = vpack.c.b16 %v2082, %v2078
        %v2203 = vpack.c.b16 %v2083, %v2079
        %v2204 = vpack.c.b16 %v2084, %v2080
        %v2205 = vpack.c.b16 %v2089, %v2085
        %v2206 = vpack.c.b16 %v2090, %v2086
        %v2207 = vpack.c.b16 %v2091, %v2087
        %v2208 = vpack.c.b16 %v2092, %v2088
        %v2209 = vpack.c.b16 %v2097, %v2093
        %v2210 = vpack.c.b16 %v2098, %v2094
        %v2211 = vpack.c.b16 %v2099, %v2095
        %v2212 = vpack.c.b16 %v2100, %v2096
        %v2213 = vpack.c.b16 %v2105, %v2101
        %v2214 = vpack.c.b16 %v2106, %v2102
        %v2215 = vpack.c.b16 %v2107, %v2103
        %v2216 = vpack.c.b16 %v2108, %v2104
        %v2217 = vpack.c.b16 %v2113, %v2109
        %v2218 = vpack.c.b16 %v2114, %v2110
        %v2219 = vpack.c.b16 %v2115, %v2111
        %v2220 = vpack.c.b16 %v2116, %v2112
        %v2221 = vpack.c.b16 %v2121, %v2117
        %v2222 = vpack.c.b16 %v2122, %v2118
        %v2223 = vpack.c.b16 %v2123, %v2119
        %v2224 = vpack.c.b16 %v2124, %v2120
        %v2225 = vpack.c.b16 %v2129, %v2125
        %v2226 = vpack.c.b16 %v2130, %v2126
        %v2227 = vpack.c.b16 %v2131, %v2127
        %v2228 = vpack.c.b16 %v2132, %v2128
        %v2229 = vpack.c.b16 %v2137, %v2133
        %v2230 = vpack.c.b16 %v2138, %v2134
        %v2231 = vpack.c.b16 %v2139, %v2135
        %v2232 = vpack.c.b16 %v2140, %v2136
        %v2233 = vpack.c.b16 %v2145, %v2141
        %v2234 = vpack.c.b16 %v2146, %v2142
        %v2235 = vpack.c.b16 %v2147, %v2143
        %v2236 = vpack.c.b16 %v2148, %v2144
        %v2237 = vpack.c.b16 %v2153, %v2149
        %v2238 = vpack.c.b16 %v2154, %v2150
        %v2239 = vpack.c.b16 %v2155, %v2151
        %v2240 = vpack.c.b16 %v2156, %v2152
        %v2241 = vpack.c.b16 %v2161, %v2157
        %v2242 = vpack.c.b16 %v2162, %v2158
        %v2243 = vpack.c.b16 %v2163, %v2159
        %v2244 = vpack.c.b16 %v2164, %v2160
        %v2245 = vpack.c.b16 %v2169, %v2165
        %v2246 = vpack.c.b16 %v2170, %v2166
        %v2247 = vpack.c.b16 %v2171, %v2167
        %v2248 = vpack.c.b16 %v2172, %v2168
        %v2249 = vpack.c.b16 %v2177, %v2173
        %v2250 = vpack.c.b16 %v2178, %v2174
        %v2251 = vpack.c.b16 %v2179, %v2175
        %v2252 = vpack.c.b16 %v2180, %v2176
        %v2253 = vpack.c.b16 %v2185, %v2181
        %v2254 = vpack.c.b16 %v2186, %v2182
        %v2255 = vpack.c.b16 %v2187, %v2183
        %v2256 = vpack.c.b16 %v2188, %v2184
        %v2257 = vpack.c.b16 %v2193, %v2189
        %v2258 = vpack.c.b16 %v2194, %v2190
        %v2259 = vpack.c.b16 %v2195, %v2191
        %v2260 = vpack.c.b16 %v2196, %v2192
        %2325 = vmatprep.subr.bf16.mxu0 %v2198
        %2326 = vmatpush1.bf16.msra.mxu0 %v2197
        %2327 = vmatprep.subr.bf16.mxu0 %v2202
        %2328 = vmatpush1.bf16.msra.mxu0 %v2201
        %2329 = vmatprep.subr.bf16.mxu0 %v2206
        %2330 = vmatpush1.bf16.msra.mxu0 %v2205
        %2331 = vmatprep.subr.bf16.mxu0 %v2210
        %2332 = vmatpush1.bf16.msra.mxu0 %v2209
        %2333 = vmatprep.subr.bf16.mxu0 %v2214
        %2334 = vmatpush1.bf16.msra.mxu0 %v2213
        %2335 = vmatprep.subr.bf16.mxu0 %v2218
        %2336 = vmatpush1.bf16.msra.mxu0 %v2217
        %2337 = vmatprep.subr.bf16.mxu0 %v2222
        %2338 = vmatpush1.bf16.msra.mxu0 %v2221
        %2339 = vmatprep.subr.bf16.mxu0 %v2226
        %2340 = vmatpush1.bf16.msra.mxu0 %v2225
        %2341 = vmatprep.subr.bf16.mxu0 %v2230
        %2342 = vmatpush1.bf16.msra.mxu0 %v2229
        %2343 = vmatprep.subr.bf16.mxu0 %v2234
        %2344 = vmatpush1.bf16.msra.mxu0 %v2233
        %2345 = vmatprep.subr.bf16.mxu0 %v2238
        %2346 = vmatpush1.bf16.msra.mxu0 %v2237
        %2347 = vmatprep.subr.bf16.mxu0 %v2242
        %2348 = vmatpush1.bf16.msra.mxu0 %v2241
        %2349 = vmatprep.subr.bf16.mxu0 %v2246
        %2350 = vmatpush1.bf16.msra.mxu0 %v2245
        %2351 = vmatprep.subr.bf16.mxu0 %v2250
        %2352 = vmatpush1.bf16.msra.mxu0 %v2249
        %2353 = vmatprep.subr.bf16.mxu0 %v2254
        %2354 = vmatpush1.bf16.msra.mxu0 %v2253
        %2355 = vmatprep.subr.bf16.mxu0 %v2258
        %2356 = vmatpush1.bf16.msra.mxu0 %v2257
        %2357 = vmatprep.mubr.bf16.mxu0 %v2002
        %2358 = vmatmul.mubr.bf16.gmra.mrb[0].mxu0 %v2001
        %v2359 = vpop.f32.mrb[0].mxu0
        %v2360 = vadd.f32 0.0, %v2359
        %v2361 = vpop.f32.mrb[0].mxu0
        %v2362 = vadd.f32 0.0, %v2361
        %v2363 = vpop.f32.mrb[0].mxu0
        %v2364 = vpop.f32.mrb[0].mxu0
        %2365 = vdwg.mxu0
        %2366 = vmatprep.subr.bf16.mxu0 %v2200
        %2367 = vmatpush1.bf16.msra.mxu0 %v2199
        %2368 = vmatprep.subr.bf16.mxu0 %v2204
        %2369 = vmatpush1.bf16.msra.mxu0 %v2203
        %2370 = vmatprep.subr.bf16.mxu0 %v2208
        %2371 = vmatpush1.bf16.msra.mxu0 %v2207
        %2372 = vmatprep.subr.bf16.mxu0 %v2212
        %2373 = vmatpush1.bf16.msra.mxu0 %v2211
        %2374 = vmatprep.subr.bf16.mxu0 %v2216
        %2375 = vmatpush1.bf16.msra.mxu0 %v2215
        %2376 = vmatprep.subr.bf16.mxu0 %v2220
        %2377 = vmatpush1.bf16.msra.mxu0 %v2219
        %2378 = vmatprep.subr.bf16.mxu0 %v2224
        %2379 = vmatpush1.bf16.msra.mxu0 %v2223
        %2380 = vmatprep.subr.bf16.mxu0 %v2228
        %2381 = vmatpush1.bf16.msra.mxu0 %v2227
        %2382 = vmatprep.subr.bf16.mxu0 %v2232
        %2383 = vmatpush1.bf16.msra.mxu0 %v2231
        %2384 = vmatprep.subr.bf16.mxu0 %v2236
        %2385 = vmatpush1.bf16.msra.mxu0 %v2235
        %2386 = vmatprep.subr.bf16.mxu0 %v2240
        %2387 = vmatpush1.bf16.msra.mxu0 %v2239
        %2388 = vmatprep.subr.bf16.mxu0 %v2244
        %2389 = vmatpush1.bf16.msra.mxu0 %v2243
        %2390 = vmatprep.subr.bf16.mxu0 %v2248
        %2391 = vmatpush1.bf16.msra.mxu0 %v2247
        %2392 = vmatprep.subr.bf16.mxu0 %v2252
        %2393 = vmatpush1.bf16.msra.mxu0 %v2251
        %2394 = vmatprep.subr.bf16.mxu0 %v2256
        %2395 = vmatpush1.bf16.msra.mxu0 %v2255
        %2396 = vmatprep.subr.bf16.mxu0 %v2260
        %2397 = vmatpush1.bf16.msra.mxu0 %v2259
        %2398 = vmatprep.mubr.bf16.mxu0 %v2002
        %2399 = vmatmul.mubr.bf16.gmra.mrb[0].mxu0 %v2001
        %v2400 = vpop.f32.mrb[0].mxu0
        %v2401 = vadd.f32 0.0, %v2400
        %v2402 = vpop.f32.mrb[0].mxu0
        %v2403 = vadd.f32 0.0, %v2402
        %v2404 = vpop.f32.mrb[0].mxu0
        %v2405 = vpop.f32.mrb[0].mxu0
        %2406 = vdwg.mxu0
        %v2411 = vcombine.low %v2360, %v2362
        %v2412 = vcombine.high %v2360, %v2362
        %v2413 = vcombine.low %v2401, %v2403
        %v2414 = vcombine.high %v2401, %v2403
        %v2416 = vunpack.c.l.s4 1966171168
        %v2417 = vunpack.c.0.s8 %v2416
        %v2418 = vlaneseq
        %v2419 = vshrl.u32 %v2418, 7
        %v2420 = vsub.s32 %v2417, %v2419
        %v2421 = vrot.slane %v2411, %v2420
        %v2423 = vunpack.c.l.s4 1966171168
        %v2424 = vunpack.c.0.s8 %v2423
        %v2425 = vlaneseq
        %v2426 = vshrl.u32 %v2425, 7
        %v2427 = vsub.s32 %v2424, %v2426
        %v2428 = vrot.slane %v2412, %v2427
        %v2430 = vunpack.c.l.s4 1966171168
        %v2431 = vunpack.c.0.s8 %v2430
        %v2432 = vlaneseq
        %v2433 = vshrl.u32 %v2432, 7
        %v2434 = vsub.s32 %v2431, %v2433
        %v2435 = vrot.slane %v2413, %v2434
        %v2437 = vunpack.c.l.s4 1966171168
        %v2438 = vunpack.c.0.s8 %v2437
        %v2439 = vlaneseq
        %v2440 = vshrl.u32 %v2439, 7
        %v2441 = vsub.s32 %v2438, %v2440
        %v2442 = vrot.slane %v2414, %v2441
        %v2443 = vcombine.low %v2421, %v2435
        %v2444 = vcombine.high %v2421, %v2435
        %v2445 = vcombine.low %v2428, %v2442
        %v2446 = vcombine.high %v2428, %v2442
        %v2448 = vunpack.c.l.s4 1966171168
        %v2449 = vunpack.c.0.s8 %v2448
        %v2450 = vlaneseq
        %v2451 = vshrl.u32 %v2450, 7
        %v2452 = vsub.s32 %v2449, %v2451
        %v2453 = vrot.slane %v2443, %v2452
        %v2455 = vunpack.c.l.s4 1966171168
        %v2456 = vunpack.c.0.s8 %v2455
        %v2457 = vlaneseq
        %v2458 = vshrl.u32 %v2457, 7
        %v2459 = vsub.s32 %v2456, %v2458
        %v2460 = vrot.slane %v2445, %v2459
        %v2462 = vunpack.c.l.s4 1966171168
        %v2463 = vunpack.c.0.s8 %v2462
        %v2464 = vlaneseq
        %v2465 = vshrl.u32 %v2464, 7
        %v2466 = vsub.s32 %v2463, %v2465
        %v2467 = vrot.slane %v2444, %v2466
        %v2469 = vunpack.c.l.s4 1966171168
        %v2470 = vunpack.c.0.s8 %v2469
        %v2471 = vlaneseq
        %v2472 = vshrl.u32 %v2471, 7
        %v2473 = vsub.s32 %v2470, %v2472
        %v2474 = vrot.slane %v2446, %v2473
        %v2475 = vcombine.high %v2453, %v2453
        %v2476 = vcombine.high %v2460, %v2460
        %v2477 = vcombine.high %v2467, %v2467
        %v2478 = vcombine.high %v2474, %v2474
        %v2479 = vlaneseq
        %v2480 = vshrl.u32 %v2479, 7
        %v2481 = vsub.s32 0, %v2480
        %v2482 = vrot.slane %v2453, %v2481
        %v2483 = vlaneseq
        %v2484 = vshrl.u32 %v2483, 7
        %v2485 = vsub.s32 1, %v2484
        %v2486 = vrot.slane %v2453, %v2485
        %v2487 = vlaneseq
        %v2488 = vshrl.u32 %v2487, 7
        %v2489 = vsub.s32 2, %v2488
        %v2490 = vrot.slane %v2453, %v2489
        %v2491 = vlaneseq
        %v2492 = vshrl.u32 %v2491, 7
        %v2493 = vsub.s32 3, %v2492
        %v2494 = vrot.slane %v2453, %v2493
        %v2495 = vlaneseq
        %v2496 = vshrl.u32 %v2495, 7
        %v2497 = vsub.s32 0, %v2496
        %v2498 = vrot.slane %v2467, %v2497
        %v2499 = vlaneseq
        %v2500 = vshrl.u32 %v2499, 7
        %v2501 = vsub.s32 1, %v2500
        %v2502 = vrot.slane %v2467, %v2501
        %v2503 = vlaneseq
        %v2504 = vshrl.u32 %v2503, 7
        %v2505 = vsub.s32 2, %v2504
        %v2506 = vrot.slane %v2467, %v2505
        %v2507 = vlaneseq
        %v2508 = vshrl.u32 %v2507, 7
        %v2509 = vsub.s32 3, %v2508
        %v2510 = vrot.slane %v2467, %v2509
        %v2511 = vlaneseq
        %v2512 = vshrl.u32 %v2511, 7
        %v2513 = vsub.s32 0, %v2512
        %v2514 = vrot.slane %v2475, %v2513
        %v2515 = vlaneseq
        %v2516 = vshrl.u32 %v2515, 7
        %v2517 = vsub.s32 1, %v2516
        %v2518 = vrot.slane %v2475, %v2517
        %v2519 = vlaneseq
        %v2520 = vshrl.u32 %v2519, 7
        %v2521 = vsub.s32 2, %v2520
        %v2522 = vrot.slane %v2475, %v2521
        %v2523 = vlaneseq
        %v2524 = vshrl.u32 %v2523, 7
        %v2525 = vsub.s32 3, %v2524
        %v2526 = vrot.slane %v2475, %v2525
        %v2527 = vlaneseq
        %v2528 = vshrl.u32 %v2527, 7
        %v2529 = vsub.s32 0, %v2528
        %v2530 = vrot.slane %v2477, %v2529
        %v2531 = vlaneseq
        %v2532 = vshrl.u32 %v2531, 7
        %v2533 = vsub.s32 1, %v2532
        %v2534 = vrot.slane %v2477, %v2533
        %v2535 = vlaneseq
        %v2536 = vshrl.u32 %v2535, 7
        %v2537 = vsub.s32 2, %v2536
        %v2538 = vrot.slane %v2477, %v2537
        %v2539 = vlaneseq
        %v2540 = vshrl.u32 %v2539, 7
        %v2541 = vsub.s32 3, %v2540
        %v2542 = vrot.slane %v2477, %v2541
        %v2543 = vlaneseq
        %v2544 = vshrl.u32 %v2543, 7
        %v2545 = vsub.s32 0, %v2544
        %v2546 = vrot.slane %v2460, %v2545
        %v2547 = vlaneseq
        %v2548 = vshrl.u32 %v2547, 7
        %v2549 = vsub.s32 1, %v2548
        %v2550 = vrot.slane %v2460, %v2549
        %v2551 = vlaneseq
        %v2552 = vshrl.u32 %v2551, 7
        %v2553 = vsub.s32 2, %v2552
        %v2554 = vrot.slane %v2460, %v2553
        %v2555 = vlaneseq
        %v2556 = vshrl.u32 %v2555, 7
        %v2557 = vsub.s32 3, %v2556
        %v2558 = vrot.slane %v2460, %v2557
        %v2559 = vlaneseq
        %v2560 = vshrl.u32 %v2559, 7
        %v2561 = vsub.s32 0, %v2560
        %v2562 = vrot.slane %v2474, %v2561
        %v2563 = vlaneseq
        %v2564 = vshrl.u32 %v2563, 7
        %v2565 = vsub.s32 1, %v2564
        %v2566 = vrot.slane %v2474, %v2565
        %v2567 = vlaneseq
        %v2568 = vshrl.u32 %v2567, 7
        %v2569 = vsub.s32 2, %v2568
        %v2570 = vrot.slane %v2474, %v2569
        %v2571 = vlaneseq
        %v2572 = vshrl.u32 %v2571, 7
        %v2573 = vsub.s32 3, %v2572
        %v2574 = vrot.slane %v2474, %v2573
        %v2575 = vlaneseq
        %v2576 = vshrl.u32 %v2575, 7
        %v2577 = vsub.s32 0, %v2576
        %v2578 = vrot.slane %v2476, %v2577
        %v2579 = vlaneseq
        %v2580 = vshrl.u32 %v2579, 7
        %v2581 = vsub.s32 1, %v2580
        %v2582 = vrot.slane %v2476, %v2581
        %v2583 = vlaneseq
        %v2584 = vshrl.u32 %v2583, 7
        %v2585 = vsub.s32 2, %v2584
        %v2586 = vrot.slane %v2476, %v2585
        %v2587 = vlaneseq
        %v2588 = vshrl.u32 %v2587, 7
        %v2589 = vsub.s32 3, %v2588
        %v2590 = vrot.slane %v2476, %v2589
        %v2591 = vlaneseq
        %v2592 = vshrl.u32 %v2591, 7
        %v2593 = vsub.s32 0, %v2592
        %v2594 = vrot.slane %v2478, %v2593
        %v2595 = vlaneseq
        %v2596 = vshrl.u32 %v2595, 7
        %v2597 = vsub.s32 1, %v2596
        %v2598 = vrot.slane %v2478, %v2597
        %v2599 = vlaneseq
        %v2600 = vshrl.u32 %v2599, 7
        %v2601 = vsub.s32 2, %v2600
        %v2602 = vrot.slane %v2478, %v2601
        %v2603 = vlaneseq
        %v2604 = vshrl.u32 %v2603, 7
        %v2605 = vsub.s32 3, %v2604
        %v2606 = vrot.slane %v2478, %v2605
        %v2639 = vadd.f32 %v1297, %v2482
        %v2640 = vadd.f32 %v1299, %v2486
        %v2641 = vadd.f32 %v1490, %v2490
        %v2642 = vadd.f32 %v1492, %v2494
        %v2643 = vadd.f32 %v1301, %v2482
        %v2644 = vadd.f32 %v1303, %v2486
        %v2645 = vadd.f32 %v1494, %v2490
        %v2646 = vadd.f32 %v1496, %v2494
        %v2647 = vadd.f32 %v1307, %v2482
        %v2648 = vadd.f32 %v1309, %v2486
        %v2649 = vadd.f32 %v1500, %v2490
        %v2650 = vadd.f32 %v1502, %v2494
        %v2651 = vadd.f32 %v1311, %v2482
        %v2652 = vadd.f32 %v1313, %v2486
        %v2653 = vadd.f32 %v1504, %v2490
        %v2654 = vadd.f32 %v1506, %v2494
        %v2655 = vadd.f32 %v1317, %v2498
        %v2656 = vadd.f32 %v1319, %v2502
        %v2657 = vadd.f32 %v1510, %v2506
        %v2658 = vadd.f32 %v1512, %v2510
        %v2659 = vadd.f32 %v1321, %v2498
        %v2660 = vadd.f32 %v1323, %v2502
        %v2661 = vadd.f32 %v1514, %v2506
        %v2662 = vadd.f32 %v1516, %v2510
        %v2663 = vadd.f32 %v1327, %v2498
        %v2664 = vadd.f32 %v1329, %v2502
        %v2665 = vadd.f32 %v1520, %v2506
        %v2666 = vadd.f32 %v1522, %v2510
        %v2667 = vadd.f32 %v1331, %v2498
        %v2668 = vadd.f32 %v1333, %v2502
        %v2669 = vadd.f32 %v1524, %v2506
        %v2670 = vadd.f32 %v1526, %v2510
        %v2671 = vadd.f32 %v1337, %v2514
        %v2672 = vadd.f32 %v1339, %v2518
        %v2673 = vadd.f32 %v1530, %v2522
        %v2674 = vadd.f32 %v1532, %v2526
        %v2675 = vadd.f32 %v1341, %v2514
        %v2676 = vadd.f32 %v1343, %v2518
        %v2677 = vadd.f32 %v1534, %v2522
        %v2678 = vadd.f32 %v1536, %v2526
        %v2679 = vadd.f32 %v1347, %v2514
        %v2680 = vadd.f32 %v1349, %v2518
        %v2681 = vadd.f32 %v1540, %v2522
        %v2682 = vadd.f32 %v1542, %v2526
        %v2683 = vadd.f32 %v1351, %v2514
        %v2684 = vadd.f32 %v1353, %v2518
        %v2685 = vadd.f32 %v1544, %v2522
        %v2686 = vadd.f32 %v1546, %v2526
        %v2687 = vadd.f32 %v1357, %v2530
        %v2688 = vadd.f32 %v1359, %v2534
        %v2689 = vadd.f32 %v1550, %v2538
        %v2690 = vadd.f32 %v1552, %v2542
        %v2691 = vadd.f32 %v1361, %v2530
        %v2692 = vadd.f32 %v1363, %v2534
        %v2693 = vadd.f32 %v1554, %v2538
        %v2694 = vadd.f32 %v1556, %v2542
        %v2695 = vadd.f32 %v1367, %v2530
        %v2696 = vadd.f32 %v1369, %v2534
        %v2697 = vadd.f32 %v1560, %v2538
        %v2698 = vadd.f32 %v1562, %v2542
        %v2699 = vadd.f32 %v1371, %v2530
        %v2700 = vadd.f32 %v1373, %v2534
        %v2701 = vadd.f32 %v1564, %v2538
        %v2702 = vadd.f32 %v1566, %v2542
        %v2703 = vadd.f32 %v1377, %v2546
        %v2704 = vadd.f32 %v1379, %v2550
        %v2705 = vadd.f32 %v1570, %v2554
        %v2706 = vadd.f32 %v1572, %v2558
        %v2707 = vadd.f32 %v1381, %v2546
        %v2708 = vadd.f32 %v1383, %v2550
        %v2709 = vadd.f32 %v1574, %v2554
        %v2710 = vadd.f32 %v1576, %v2558
        %v2711 = vadd.f32 %v1387, %v2546
        %v2712 = vadd.f32 %v1389, %v2550
        %v2713 = vadd.f32 %v1580, %v2554
        %v2714 = vadd.f32 %v1582, %v2558
        %v2715 = vadd.f32 %v1391, %v2546
        %v2716 = vadd.f32 %v1393, %v2550
        %v2717 = vadd.f32 %v1584, %v2554
        %v2718 = vadd.f32 %v1586, %v2558
        %v2719 = vadd.f32 %v1397, %v2562
        %v2720 = vadd.f32 %v1399, %v2566
        %v2721 = vadd.f32 %v1590, %v2570
        %v2722 = vadd.f32 %v1592, %v2574
        %v2723 = vadd.f32 %v1401, %v2562
        %v2724 = vadd.f32 %v1403, %v2566
        %v2725 = vadd.f32 %v1594, %v2570
        %v2726 = vadd.f32 %v1596, %v2574
        %v2727 = vadd.f32 %v1407, %v2562
        %v2728 = vadd.f32 %v1409, %v2566
        %v2729 = vadd.f32 %v1600, %v2570
        %v2730 = vadd.f32 %v1602, %v2574
        %v2731 = vadd.f32 %v1411, %v2562
        %v2732 = vadd.f32 %v1413, %v2566
        %v2733 = vadd.f32 %v1604, %v2570
        %v2734 = vadd.f32 %v1606, %v2574
        %v2735 = vadd.f32 %v1417, %v2578
        %v2736 = vadd.f32 %v1419, %v2582
        %v2737 = vadd.f32 %v1610, %v2586
        %v2738 = vadd.f32 %v1612, %v2590
        %v2739 = vadd.f32 %v1421, %v2578
        %v2740 = vadd.f32 %v1423, %v2582
        %v2741 = vadd.f32 %v1614, %v2586
        %v2742 = vadd.f32 %v1616, %v2590
        %v2743 = vadd.f32 %v1427, %v2578
        %v2744 = vadd.f32 %v1429, %v2582
        %v2745 = vadd.f32 %v1620, %v2586
        %v2746 = vadd.f32 %v1622, %v2590
        %v2747 = vadd.f32 %v1431, %v2578
        %v2748 = vadd.f32 %v1433, %v2582
        %v2749 = vadd.f32 %v1624, %v2586
        %v2750 = vadd.f32 %v1626, %v2590
        %v2751 = vadd.f32 %v1437, %v2594
        %v2752 = vadd.f32 %v1439, %v2598
        %v2753 = vadd.f32 %v1630, %v2602
        %v2754 = vadd.f32 %v1632, %v2606
        %v2755 = vadd.f32 %v1441, %v2594
        %v2756 = vadd.f32 %v1443, %v2598
        %v2757 = vadd.f32 %v1634, %v2602
        %v2758 = vadd.f32 %v1636, %v2606
        %v2759 = vadd.f32 %v1447, %v2594
        %v2760 = vadd.f32 %v1449, %v2598
        %v2761 = vadd.f32 %v1640, %v2602
        %v2762 = vadd.f32 %v1642, %v2606
        %v2763 = vadd.f32 %v1451, %v2594
        %v2764 = vadd.f32 %v1453, %v2598
        %v2765 = vadd.f32 %v1644, %v2602
        %v2766 = vadd.f32 %v1646, %v2606
        %v2767 = vld [vmem:[%s6] sm:$0xf]
        %v2769 = vlaneseq
        %v2770 = vshrl.u32 %v2769, 7
        %v2771 = vsub.s32 0, %v2770
        %v2772 = vrot.slane %v2767, %v2771
        %v2773 = vlaneseq
        %v2774 = vshrl.u32 %v2773, 7
        %v2775 = vsub.s32 1, %v2774
        %v2776 = vrot.slane %v2767, %v2775
        %v2777 = vlaneseq
        %v2778 = vshrl.u32 %v2777, 7
        %v2779 = vsub.s32 2, %v2778
        %v2780 = vrot.slane %v2767, %v2779
        %v2781 = vlaneseq
        %v2782 = vshrl.u32 %v2781, 7
        %v2783 = vsub.s32 3, %v2782
        %v2784 = vrot.slane %v2767, %v2783
        %v2789 = vadd.f32 %v2639, %v2772
        %v2790 = vadd.f32 %v2640, %v2776
        %v2791 = vadd.f32 %v2641, %v2780
        %v2792 = vadd.f32 %v2642, %v2784
        %v2793 = vadd.f32 %v2643, %v2772
        %v2794 = vadd.f32 %v2644, %v2776
        %v2795 = vadd.f32 %v2645, %v2780
        %v2796 = vadd.f32 %v2646, %v2784
        %v2797 = vadd.f32 %v2647, %v2772
        %v2798 = vadd.f32 %v2648, %v2776
        %v2799 = vadd.f32 %v2649, %v2780
        %v2800 = vadd.f32 %v2650, %v2784
        %v2801 = vadd.f32 %v2651, %v2772
        %v2802 = vadd.f32 %v2652, %v2776
        %v2803 = vadd.f32 %v2653, %v2780
        %v2804 = vadd.f32 %v2654, %v2784
        %v2805 = vadd.f32 %v2655, %v2772
        %v2806 = vadd.f32 %v2656, %v2776
        %v2807 = vadd.f32 %v2657, %v2780
        %v2808 = vadd.f32 %v2658, %v2784
        %v2809 = vadd.f32 %v2659, %v2772
        %v2810 = vadd.f32 %v2660, %v2776
        %v2811 = vadd.f32 %v2661, %v2780
        %v2812 = vadd.f32 %v2662, %v2784
        %v2813 = vadd.f32 %v2663, %v2772
        %v2814 = vadd.f32 %v2664, %v2776
        %v2815 = vadd.f32 %v2665, %v2780
        %v2816 = vadd.f32 %v2666, %v2784
        %v2817 = vadd.f32 %v2667, %v2772
        %v2818 = vadd.f32 %v2668, %v2776
        %v2819 = vadd.f32 %v2669, %v2780
        %v2820 = vadd.f32 %v2670, %v2784
        %v2821 = vadd.f32 %v2671, %v2772
        %v2822 = vadd.f32 %v2672, %v2776
        %v2823 = vadd.f32 %v2673, %v2780
        %v2824 = vadd.f32 %v2674, %v2784
        %v2825 = vadd.f32 %v2675, %v2772
        %v2826 = vadd.f32 %v2676, %v2776
        %v2827 = vadd.f32 %v2677, %v2780
        %v2828 = vadd.f32 %v2678, %v2784
        %v2829 = vadd.f32 %v2679, %v2772
        %v2830 = vadd.f32 %v2680, %v2776
        %v2831 = vadd.f32 %v2681, %v2780
        %v2832 = vadd.f32 %v2682, %v2784
        %v2833 = vadd.f32 %v2683, %v2772
        %v2834 = vadd.f32 %v2684, %v2776
        %v2835 = vadd.f32 %v2685, %v2780
        %v2836 = vadd.f32 %v2686, %v2784
        %v2837 = vadd.f32 %v2687, %v2772
        %v2838 = vadd.f32 %v2688, %v2776
        %v2839 = vadd.f32 %v2689, %v2780
        %v2840 = vadd.f32 %v2690, %v2784
        %v2841 = vadd.f32 %v2691, %v2772
        %v2842 = vadd.f32 %v2692, %v2776
        %v2843 = vadd.f32 %v2693, %v2780
        %v2844 = vadd.f32 %v2694, %v2784
        %v2845 = vadd.f32 %v2695, %v2772
        %v2846 = vadd.f32 %v2696, %v2776
        %v2847 = vadd.f32 %v2697, %v2780
        %v2848 = vadd.f32 %v2698, %v2784
        %v2849 = vadd.f32 %v2699, %v2772
        %v2850 = vadd.f32 %v2700, %v2776
        %v2851 = vadd.f32 %v2701, %v2780
        %v2852 = vadd.f32 %v2702, %v2784
        %v2853 = vadd.f32 %v2703, %v2772
        %v2854 = vadd.f32 %v2704, %v2776
        %v2855 = vadd.f32 %v2705, %v2780
        %v2856 = vadd.f32 %v2706, %v2784
        %v2857 = vadd.f32 %v2707, %v2772
        %v2858 = vadd.f32 %v2708, %v2776
        %v2859 = vadd.f32 %v2709, %v2780
        %v2860 = vadd.f32 %v2710, %v2784
        %v2861 = vadd.f32 %v2711, %v2772
        %v2862 = vadd.f32 %v2712, %v2776
        %v2863 = vadd.f32 %v2713, %v2780
        %v2864 = vadd.f32 %v2714, %v2784
        %v2865 = vadd.f32 %v2715, %v2772
        %v2866 = vadd.f32 %v2716, %v2776
        %v2867 = vadd.f32 %v2717, %v2780
        %v2868 = vadd.f32 %v2718, %v2784
        %v2869 = vadd.f32 %v2719, %v2772
        %v2870 = vadd.f32 %v2720, %v2776
        %v2871 = vadd.f32 %v2721, %v2780
        %v2872 = vadd.f32 %v2722, %v2784
        %v2873 = vadd.f32 %v2723, %v2772
        %v2874 = vadd.f32 %v2724, %v2776
        %v2875 = vadd.f32 %v2725, %v2780
        %v2876 = vadd.f32 %v2726, %v2784
        %v2877 = vadd.f32 %v2727, %v2772
        %v2878 = vadd.f32 %v2728, %v2776
        %v2879 = vadd.f32 %v2729, %v2780
        %v2880 = vadd.f32 %v2730, %v2784
        %v2881 = vadd.f32 %v2731, %v2772
        %v2882 = vadd.f32 %v2732, %v2776
        %v2883 = vadd.f32 %v2733, %v2780
        %v2884 = vadd.f32 %v2734, %v2784
        %v2885 = vadd.f32 %v2735, %v2772
        %v2886 = vadd.f32 %v2736, %v2776
        %v2887 = vadd.f32 %v2737, %v2780
        %v2888 = vadd.f32 %v2738, %v2784
        %v2889 = vadd.f32 %v2739, %v2772
        %v2890 = vadd.f32 %v2740, %v2776
        %v2891 = vadd.f32 %v2741, %v2780
        %v2892 = vadd.f32 %v2742, %v2784
        %v2893 = vadd.f32 %v2743, %v2772
        %v2894 = vadd.f32 %v2744, %v2776
        %v2895 = vadd.f32 %v2745, %v2780
        %v2896 = vadd.f32 %v2746, %v2784
        %v2897 = vadd.f32 %v2747, %v2772
        %v2898 = vadd.f32 %v2748, %v2776
        %v2899 = vadd.f32 %v2749, %v2780
        %v2900 = vadd.f32 %v2750, %v2784
        %v2901 = vadd.f32 %v2751, %v2772
        %v2902 = vadd.f32 %v2752, %v2776
        %v2903 = vadd.f32 %v2753, %v2780
        %v2904 = vadd.f32 %v2754, %v2784
        %v2905 = vadd.f32 %v2755, %v2772
        %v2906 = vadd.f32 %v2756, %v2776
        %v2907 = vadd.f32 %v2757, %v2780
        %v2908 = vadd.f32 %v2758, %v2784
        %v2909 = vadd.f32 %v2759, %v2772
        %v2910 = vadd.f32 %v2760, %v2776
        %v2911 = vadd.f32 %v2761, %v2780
        %v2912 = vadd.f32 %v2762, %v2784
        %v2913 = vadd.f32 %v2763, %v2772
        %v2914 = vadd.f32 %v2764, %v2776
        %v2915 = vadd.f32 %v2765, %v2780
        %v2916 = vadd.f32 %v2766, %v2784
        %v2917 = vmax.f32 %v2789, 0.0
        %v2918 = vmax.f32 %v2790, 0.0
        %v2919 = vmax.f32 %v2791, 0.0
        %v2920 = vmax.f32 %v2792, 0.0
        %v2921 = vmax.f32 %v2793, 0.0
        %v2922 = vmax.f32 %v2794, 0.0
        %v2923 = vmax.f32 %v2795, 0.0
        %v2924 = vmax.f32 %v2796, 0.0
        %v2925 = vmax.f32 %v2797, 0.0
        %v2926 = vmax.f32 %v2798, 0.0
        %v2927 = vmax.f32 %v2799, 0.0
        %v2928 = vmax.f32 %v2800, 0.0
        %v2929 = vmax.f32 %v2801, 0.0
        %v2930 = vmax.f32 %v2802, 0.0
        %v2931 = vmax.f32 %v2803, 0.0
        %v2932 = vmax.f32 %v2804, 0.0
        %v2933 = vmax.f32 %v2805, 0.0
        %v2934 = vmax.f32 %v2806, 0.0
        %v2935 = vmax.f32 %v2807, 0.0
        %v2936 = vmax.f32 %v2808, 0.0
        %v2937 = vmax.f32 %v2809, 0.0
        %v2938 = vmax.f32 %v2810, 0.0
        %v2939 = vmax.f32 %v2811, 0.0
        %v2940 = vmax.f32 %v2812, 0.0
        %v2941 = vmax.f32 %v2813, 0.0
        %v2942 = vmax.f32 %v2814, 0.0
        %v2943 = vmax.f32 %v2815, 0.0
        %v2944 = vmax.f32 %v2816, 0.0
        %v2945 = vmax.f32 %v2817, 0.0
        %v2946 = vmax.f32 %v2818, 0.0
        %v2947 = vmax.f32 %v2819, 0.0
        %v2948 = vmax.f32 %v2820, 0.0
        %v2949 = vmax.f32 %v2821, 0.0
        %v2950 = vmax.f32 %v2822, 0.0
        %v2951 = vmax.f32 %v2823, 0.0
        %v2952 = vmax.f32 %v2824, 0.0
        %v2953 = vmax.f32 %v2825, 0.0
        %v2954 = vmax.f32 %v2826, 0.0
        %v2955 = vmax.f32 %v2827, 0.0
        %v2956 = vmax.f32 %v2828, 0.0
        %v2957 = vmax.f32 %v2829, 0.0
        %v2958 = vmax.f32 %v2830, 0.0
        %v2959 = vmax.f32 %v2831, 0.0
        %v2960 = vmax.f32 %v2832, 0.0
        %v2961 = vmax.f32 %v2833, 0.0
        %v2962 = vmax.f32 %v2834, 0.0
        %v2963 = vmax.f32 %v2835, 0.0
        %v2964 = vmax.f32 %v2836, 0.0
        %v2965 = vmax.f32 %v2837, 0.0
        %v2966 = vmax.f32 %v2838, 0.0
        %v2967 = vmax.f32 %v2839, 0.0
        %v2968 = vmax.f32 %v2840, 0.0
        %v2969 = vmax.f32 %v2841, 0.0
        %v2970 = vmax.f32 %v2842, 0.0
        %v2971 = vmax.f32 %v2843, 0.0
        %v2972 = vmax.f32 %v2844, 0.0
        %v2973 = vmax.f32 %v2845, 0.0
        %v2974 = vmax.f32 %v2846, 0.0
        %v2975 = vmax.f32 %v2847, 0.0
        %v2976 = vmax.f32 %v2848, 0.0
        %v2977 = vmax.f32 %v2849, 0.0
        %v2978 = vmax.f32 %v2850, 0.0
        %v2979 = vmax.f32 %v2851, 0.0
        %v2980 = vmax.f32 %v2852, 0.0
        %v2981 = vmax.f32 %v2853, 0.0
        %v2982 = vmax.f32 %v2854, 0.0
        %v2983 = vmax.f32 %v2855, 0.0
        %v2984 = vmax.f32 %v2856, 0.0
        %v2985 = vmax.f32 %v2857, 0.0
        %v2986 = vmax.f32 %v2858, 0.0
        %v2987 = vmax.f32 %v2859, 0.0
        %v2988 = vmax.f32 %v2860, 0.0
        %v2989 = vmax.f32 %v2861, 0.0
        %v2990 = vmax.f32 %v2862, 0.0
        %v2991 = vmax.f32 %v2863, 0.0
        %v2992 = vmax.f32 %v2864, 0.0
        %v2993 = vmax.f32 %v2865, 0.0
        %v2994 = vmax.f32 %v2866, 0.0
        %v2995 = vmax.f32 %v2867, 0.0
        %v2996 = vmax.f32 %v2868, 0.0
        %v2997 = vmax.f32 %v2869, 0.0
        %v2998 = vmax.f32 %v2870, 0.0
        %v2999 = vmax.f32 %v2871, 0.0
        %v3000 = vmax.f32 %v2872, 0.0
        %v3001 = vmax.f32 %v2873, 0.0
        %v3002 = vmax.f32 %v2874, 0.0
        %v3003 = vmax.f32 %v2875, 0.0
        %v3004 = vmax.f32 %v2876, 0.0
        %v3005 = vmax.f32 %v2877, 0.0
        %v3006 = vmax.f32 %v2878, 0.0
        %v3007 = vmax.f32 %v2879, 0.0
        %v3008 = vmax.f32 %v2880, 0.0
        %v3009 = vmax.f32 %v2881, 0.0
        %v3010 = vmax.f32 %v2882, 0.0
        %v3011 = vmax.f32 %v2883, 0.0
        %v3012 = vmax.f32 %v2884, 0.0
        %v3013 = vmax.f32 %v2885, 0.0
        %v3014 = vmax.f32 %v2886, 0.0
        %v3015 = vmax.f32 %v2887, 0.0
        %v3016 = vmax.f32 %v2888, 0.0
        %v3017 = vmax.f32 %v2889, 0.0
        %v3018 = vmax.f32 %v2890, 0.0
        %v3019 = vmax.f32 %v2891, 0.0
        %v3020 = vmax.f32 %v2892, 0.0
        %v3021 = vmax.f32 %v2893, 0.0
        %v3022 = vmax.f32 %v2894, 0.0
        %v3023 = vmax.f32 %v2895, 0.0
        %v3024 = vmax.f32 %v2896, 0.0
        %v3025 = vmax.f32 %v2897, 0.0
        %v3026 = vmax.f32 %v2898, 0.0
        %v3027 = vmax.f32 %v2899, 0.0
        %v3028 = vmax.f32 %v2900, 0.0
        %v3029 = vmax.f32 %v2901, 0.0
        %v3030 = vmax.f32 %v2902, 0.0
        %v3031 = vmax.f32 %v2903, 0.0
        %v3032 = vmax.f32 %v2904, 0.0
        %v3033 = vmax.f32 %v2905, 0.0
        %v3034 = vmax.f32 %v2906, 0.0
        %v3035 = vmax.f32 %v2907, 0.0
        %v3036 = vmax.f32 %v2908, 0.0
        %v3037 = vmax.f32 %v2909, 0.0
        %v3038 = vmax.f32 %v2910, 0.0
        %v3039 = vmax.f32 %v2911, 0.0
        %v3040 = vmax.f32 %v2912, 0.0
        %v3041 = vmax.f32 %v2913, 0.0
        %v3042 = vmax.f32 %v2914, 0.0
        %v3043 = vmax.f32 %v2915, 0.0
        %v3044 = vmax.f32 %v2916, 0.0
        %v3045 = vpack.c.bf16 %v2921, %v2917
        %v3046 = vpack.c.bf16 %v2922, %v2918
        %v3047 = vpack.c.bf16 %v2923, %v2919
        %v3048 = vpack.c.bf16 %v2924, %v2920
        %v3049 = vpack.c.bf16 %v2929, %v2925
        %v3050 = vpack.c.bf16 %v2930, %v2926
        %v3051 = vpack.c.bf16 %v2931, %v2927
        %v3052 = vpack.c.bf16 %v2932, %v2928
        %v3053 = vpack.c.bf16 %v2937, %v2933
        %v3054 = vpack.c.bf16 %v2938, %v2934
        %v3055 = vpack.c.bf16 %v2939, %v2935
        %v3056 = vpack.c.bf16 %v2940, %v2936
        %v3057 = vpack.c.bf16 %v2945, %v2941
        %v3058 = vpack.c.bf16 %v2946, %v2942
        %v3059 = vpack.c.bf16 %v2947, %v2943
        %v3060 = vpack.c.bf16 %v2948, %v2944
        %v3061 = vpack.c.bf16 %v2953, %v2949
        %v3062 = vpack.c.bf16 %v2954, %v2950
        %v3063 = vpack.c.bf16 %v2955, %v2951
        %v3064 = vpack.c.bf16 %v2956, %v2952
        %v3065 = vpack.c.bf16 %v2961, %v2957
        %v3066 = vpack.c.bf16 %v2962, %v2958
        %v3067 = vpack.c.bf16 %v2963, %v2959
        %v3068 = vpack.c.bf16 %v2964, %v2960
        %v3069 = vpack.c.bf16 %v2969, %v2965
        %v3070 = vpack.c.bf16 %v2970, %v2966
        %v3071 = vpack.c.bf16 %v2971, %v2967
        %v3072 = vpack.c.bf16 %v2972, %v2968
        %v3073 = vpack.c.bf16 %v2977, %v2973
        %v3074 = vpack.c.bf16 %v2978, %v2974
        %v3075 = vpack.c.bf16 %v2979, %v2975
        %v3076 = vpack.c.bf16 %v2980, %v2976
        %v3077 = vpack.c.bf16 %v2985, %v2981
        %v3078 = vpack.c.bf16 %v2986, %v2982
        %v3079 = vpack.c.bf16 %v2987, %v2983
        %v3080 = vpack.c.bf16 %v2988, %v2984
        %v3081 = vpack.c.bf16 %v2993, %v2989
        %v3082 = vpack.c.bf16 %v2994, %v2990
        %v3083 = vpack.c.bf16 %v2995, %v2991
        %v3084 = vpack.c.bf16 %v2996, %v2992
        %v3085 = vpack.c.bf16 %v3001, %v2997
        %v3086 = vpack.c.bf16 %v3002, %v2998
        %v3087 = vpack.c.bf16 %v3003, %v2999
        %v3088 = vpack.c.bf16 %v3004, %v3000
        %v3089 = vpack.c.bf16 %v3009, %v3005
        %v3090 = vpack.c.bf16 %v3010, %v3006
        %v3091 = vpack.c.bf16 %v3011, %v3007
        %v3092 = vpack.c.bf16 %v3012, %v3008
        %v3093 = vpack.c.bf16 %v3017, %v3013
        %v3094 = vpack.c.bf16 %v3018, %v3014
        %v3095 = vpack.c.bf16 %v3019, %v3015
        %v3096 = vpack.c.bf16 %v3020, %v3016
        %v3097 = vpack.c.bf16 %v3025, %v3021
        %v3098 = vpack.c.bf16 %v3026, %v3022
        %v3099 = vpack.c.bf16 %v3027, %v3023
        %v3100 = vpack.c.bf16 %v3028, %v3024
        %v3101 = vpack.c.bf16 %v3033, %v3029
        %v3102 = vpack.c.bf16 %v3034, %v3030
        %v3103 = vpack.c.bf16 %v3035, %v3031
        %v3104 = vpack.c.bf16 %v3036, %v3032
        %v3105 = vpack.c.bf16 %v3041, %v3037
        %v3106 = vpack.c.bf16 %v3042, %v3038
        %v3107 = vpack.c.bf16 %v3043, %v3039
        %v3108 = vpack.c.bf16 %v3044, %v3040
        %v3109 = vld [vmem:[#allocation5] sm:$0xff]
        %v3110 = vld [vmem:[#allocation5 + $0x8] sm:$0xff]
        %v3111 = vld [vmem:[#allocation5 + $0x10] sm:$0xff]
        %v3112 = vld [vmem:[#allocation5 + $0x18] sm:$0xff]
        %v3113 = vld [vmem:[#allocation5 + $0x20] sm:$0xff]
        %v3114 = vld [vmem:[#allocation5 + $0x28] sm:$0xff]
        %v3115 = vld [vmem:[#allocation5 + $0x30] sm:$0xff]
        %v3116 = vld [vmem:[#allocation5 + $0x38] sm:$0xff]
        %v3117 = vld [vmem:[#allocation5 + $0x40] sm:$0xff]
        %v3118 = vld [vmem:[#allocation5 + $0x48] sm:$0xff]
        %v3119 = vld [vmem:[#allocation5 + $0x50] sm:$0xff]
        %v3120 = vld [vmem:[#allocation5 + $0x58] sm:$0xff]
        %v3121 = vld [vmem:[#allocation5 + $0x60] sm:$0xff]
        %v3122 = vld [vmem:[#allocation5 + $0x68] sm:$0xff]
        %v3123 = vld [vmem:[#allocation5 + $0x70] sm:$0xff]
        %v3124 = vld [vmem:[#allocation5 + $0x78] sm:$0xff]
        %v3125 = vld [vmem:[#allocation5 + $0x80] sm:$0xff]
        %v3126 = vld [vmem:[#allocation5 + $0x88] sm:$0xff]
        %v3127 = vld [vmem:[#allocation5 + $0x90] sm:$0xff]
        %v3128 = vld [vmem:[#allocation5 + $0x98] sm:$0xff]
        %v3129 = vld [vmem:[#allocation5 + $0xa0] sm:$0xff]
        %v3130 = vld [vmem:[#allocation5 + $0xa8] sm:$0xff]
        %v3131 = vld [vmem:[#allocation5 + $0xb0] sm:$0xff]
        %v3132 = vld [vmem:[#allocation5 + $0xb8] sm:$0xff]
        %v3133 = vld [vmem:[#allocation5 + $0xc0] sm:$0xff]
        %v3134 = vld [vmem:[#allocation5 + $0xc8] sm:$0xff]
        %v3135 = vld [vmem:[#allocation5 + $0xd0] sm:$0xff]
        %v3136 = vld [vmem:[#allocation5 + $0xd8] sm:$0xff]
        %v3137 = vld [vmem:[#allocation5 + $0xe0] sm:$0xff]
        %v3138 = vld [vmem:[#allocation5 + $0xe8] sm:$0xff]
        %v3139 = vld [vmem:[#allocation5 + $0xf0] sm:$0xff]
        %v3140 = vld [vmem:[#allocation5 + $0xf8] sm:$0xff]
        %v3141 = vld [vmem:[#allocation5 + $0x100] sm:$0xff]
        %v3142 = vld [vmem:[#allocation5 + $0x108] sm:$0xff]
        %v3143 = vld [vmem:[#allocation5 + $0x110] sm:$0xff]
        %v3144 = vld [vmem:[#allocation5 + $0x118] sm:$0xff]
        %v3145 = vld [vmem:[#allocation5 + $0x120] sm:$0xff]
        %v3146 = vld [vmem:[#allocation5 + $0x128] sm:$0xff]
        %v3147 = vld [vmem:[#allocation5 + $0x130] sm:$0xff]
        %v3148 = vld [vmem:[#allocation5 + $0x138] sm:$0xff]
        %v3149 = vld [vmem:[#allocation5 + $0x140] sm:$0xff]
        %v3150 = vld [vmem:[#allocation5 + $0x148] sm:$0xff]
        %v3151 = vld [vmem:[#allocation5 + $0x150] sm:$0xff]
        %v3152 = vld [vmem:[#allocation5 + $0x158] sm:$0xff]
        %v3153 = vld [vmem:[#allocation5 + $0x160] sm:$0xff]
        %v3154 = vld [vmem:[#allocation5 + $0x168] sm:$0xff]
        %v3155 = vld [vmem:[#allocation5 + $0x170] sm:$0xff]
        %v3156 = vld [vmem:[#allocation5 + $0x178] sm:$0xff]
        %v3157 = vld [vmem:[#allocation5 + $0x180] sm:$0xff]
        %v3158 = vld [vmem:[#allocation5 + $0x188] sm:$0xff]
        %v3159 = vld [vmem:[#allocation5 + $0x190] sm:$0xff]
        %v3160 = vld [vmem:[#allocation5 + $0x198] sm:$0xff]
        %v3161 = vld [vmem:[#allocation5 + $0x1a0] sm:$0xff]
        %v3162 = vld [vmem:[#allocation5 + $0x1a8] sm:$0xff]
        %v3163 = vld [vmem:[#allocation5 + $0x1b0] sm:$0xff]
        %v3164 = vld [vmem:[#allocation5 + $0x1b8] sm:$0xff]
        %v3165 = vld [vmem:[#allocation5 + $0x1c0] sm:$0xff]
        %v3166 = vld [vmem:[#allocation5 + $0x1c8] sm:$0xff]
        %v3167 = vld [vmem:[#allocation5 + $0x1d0] sm:$0xff]
        %v3168 = vld [vmem:[#allocation5 + $0x1d8] sm:$0xff]
        %v3169 = vld [vmem:[#allocation5 + $0x1e0] sm:$0xff]
        %v3170 = vld [vmem:[#allocation5 + $0x1e8] sm:$0xff]
        %v3171 = vld [vmem:[#allocation5 + $0x1f0] sm:$0xff]
        %v3172 = vld [vmem:[#allocation5 + $0x1f8] sm:$0xff]
        %v3173 = vld [vmem:[%s8] sm:$0x3]
        %v3175 = vlaneseq
        %v3176 = vshrl.u32 %v3175, 7
        %v3177 = vsub.s32 0, %v3176
        %v3178 = vrot.slane %v3173, %v3177
        %v3179 = vlaneseq
        %v3180 = vshrl.u32 %v3179, 7
        %v3181 = vsub.s32 1, %v3180
        %v3182 = vrot.slane %v3173, %v3181
        %v3249 = vunpack.c.l.b16 %v3109
        %v3250 = vunpack.c.h.b16 %v3109
        %v3251 = vunpack.c.l.b16 %v3110
        %v3252 = vunpack.c.h.b16 %v3110
        %v3253 = vunpack.c.l.b16 %v3111
        %v3254 = vunpack.c.h.b16 %v3111
        %v3255 = vunpack.c.l.b16 %v3112
        %v3256 = vunpack.c.h.b16 %v3112
        %v3257 = vunpack.c.l.b16 %v3113
        %v3258 = vunpack.c.h.b16 %v3113
        %v3259 = vunpack.c.l.b16 %v3114
        %v3260 = vunpack.c.h.b16 %v3114
        %v3261 = vunpack.c.l.b16 %v3115
        %v3262 = vunpack.c.h.b16 %v3115
        %v3263 = vunpack.c.l.b16 %v3116
        %v3264 = vunpack.c.h.b16 %v3116
        %v3265 = vunpack.c.l.b16 %v3117
        %v3266 = vunpack.c.h.b16 %v3117
        %v3267 = vunpack.c.l.b16 %v3118
        %v3268 = vunpack.c.h.b16 %v3118
        %v3269 = vunpack.c.l.b16 %v3119
        %v3270 = vunpack.c.h.b16 %v3119
        %v3271 = vunpack.c.l.b16 %v3120
        %v3272 = vunpack.c.h.b16 %v3120
        %v3273 = vunpack.c.l.b16 %v3121
        %v3274 = vunpack.c.h.b16 %v3121
        %v3275 = vunpack.c.l.b16 %v3122
        %v3276 = vunpack.c.h.b16 %v3122
        %v3277 = vunpack.c.l.b16 %v3123
        %v3278 = vunpack.c.h.b16 %v3123
        %v3279 = vunpack.c.l.b16 %v3124
        %v3280 = vunpack.c.h.b16 %v3124
        %v3281 = vunpack.c.l.b16 %v3125
        %v3282 = vunpack.c.h.b16 %v3125
        %v3283 = vunpack.c.l.b16 %v3126
        %v3284 = vunpack.c.h.b16 %v3126
        %v3285 = vunpack.c.l.b16 %v3127
        %v3286 = vunpack.c.h.b16 %v3127
        %v3287 = vunpack.c.l.b16 %v3128
        %v3288 = vunpack.c.h.b16 %v3128
        %v3289 = vunpack.c.l.b16 %v3129
        %v3290 = vunpack.c.h.b16 %v3129
        %v3291 = vunpack.c.l.b16 %v3130
        %v3292 = vunpack.c.h.b16 %v3130
        %v3293 = vunpack.c.l.b16 %v3131
        %v3294 = vunpack.c.h.b16 %v3131
        %v3295 = vunpack.c.l.b16 %v3132
        %v3296 = vunpack.c.h.b16 %v3132
        %v3297 = vunpack.c.l.b16 %v3133
        %v3298 = vunpack.c.h.b16 %v3133
        %v3299 = vunpack.c.l.b16 %v3134
        %v3300 = vunpack.c.h.b16 %v3134
        %v3301 = vunpack.c.l.b16 %v3135
        %v3302 = vunpack.c.h.b16 %v3135
        %v3303 = vunpack.c.l.b16 %v3136
        %v3304 = vunpack.c.h.b16 %v3136
        %v3305 = vunpack.c.l.b16 %v3137
        %v3306 = vunpack.c.h.b16 %v3137
        %v3307 = vunpack.c.l.b16 %v3138
        %v3308 = vunpack.c.h.b16 %v3138
        %v3309 = vunpack.c.l.b16 %v3139
        %v3310 = vunpack.c.h.b16 %v3139
        %v3311 = vunpack.c.l.b16 %v3140
        %v3312 = vunpack.c.h.b16 %v3140
        %v3313 = vunpack.c.l.b16 %v3141
        %v3314 = vunpack.c.h.b16 %v3141
        %v3315 = vunpack.c.l.b16 %v3142
        %v3316 = vunpack.c.h.b16 %v3142
        %v3317 = vunpack.c.l.b16 %v3143
        %v3318 = vunpack.c.h.b16 %v3143
        %v3319 = vunpack.c.l.b16 %v3144
        %v3320 = vunpack.c.h.b16 %v3144
        %v3321 = vunpack.c.l.b16 %v3145
        %v3322 = vunpack.c.h.b16 %v3145
        %v3323 = vunpack.c.l.b16 %v3146
        %v3324 = vunpack.c.h.b16 %v3146
        %v3325 = vunpack.c.l.b16 %v3147
        %v3326 = vunpack.c.h.b16 %v3147
        %v3327 = vunpack.c.l.b16 %v3148
        %v3328 = vunpack.c.h.b16 %v3148
        %v3329 = vunpack.c.l.b16 %v3149
        %v3330 = vunpack.c.h.b16 %v3149
        %v3331 = vunpack.c.l.b16 %v3150
        %v3332 = vunpack.c.h.b16 %v3150
        %v3333 = vunpack.c.l.b16 %v3151
        %v3334 = vunpack.c.h.b16 %v3151
        %v3335 = vunpack.c.l.b16 %v3152
        %v3336 = vunpack.c.h.b16 %v3152
        %v3337 = vunpack.c.l.b16 %v3153
        %v3338 = vunpack.c.h.b16 %v3153
        %v3339 = vunpack.c.l.b16 %v3154
        %v3340 = vunpack.c.h.b16 %v3154
        %v3341 = vunpack.c.l.b16 %v3155
        %v3342 = vunpack.c.h.b16 %v3155
        %v3343 = vunpack.c.l.b16 %v3156
        %v3344 = vunpack.c.h.b16 %v3156
        %v3345 = vunpack.c.l.b16 %v3157
        %v3346 = vunpack.c.h.b16 %v3157
        %v3347 = vunpack.c.l.b16 %v3158
        %v3348 = vunpack.c.h.b16 %v3158
        %v3349 = vunpack.c.l.b16 %v3159
        %v3350 = vunpack.c.h.b16 %v3159
        %v3351 = vunpack.c.l.b16 %v3160
        %v3352 = vunpack.c.h.b16 %v3160
        %v3353 = vunpack.c.l.b16 %v3161
        %v3354 = vunpack.c.h.b16 %v3161
        %v3355 = vunpack.c.l.b16 %v3162
        %v3356 = vunpack.c.h.b16 %v3162
        %v3357 = vunpack.c.l.b16 %v3163
        %v3358 = vunpack.c.h.b16 %v3163
        %v3359 = vunpack.c.l.b16 %v3164
        %v3360 = vunpack.c.h.b16 %v3164
        %v3361 = vunpack.c.l.b16 %v3165
        %v3362 = vunpack.c.h.b16 %v3165
        %v3363 = vunpack.c.l.b16 %v3166
        %v3364 = vunpack.c.h.b16 %v3166
        %v3365 = vunpack.c.l.b16 %v3167
        %v3366 = vunpack.c.h.b16 %v3167
        %v3367 = vunpack.c.l.b16 %v3168
        %v3368 = vunpack.c.h.b16 %v3168
        %v3369 = vunpack.c.l.b16 %v3169
        %v3370 = vunpack.c.h.b16 %v3169
        %v3371 = vunpack.c.l.b16 %v3170
        %v3372 = vunpack.c.h.b16 %v3170
        %v3373 = vunpack.c.l.b16 %v3171
        %v3374 = vunpack.c.h.b16 %v3171
        %v3375 = vunpack.c.l.b16 %v3172
        %v3376 = vunpack.c.h.b16 %v3172
        %v3377 = vpack.c.b16 %v3251, %v3249
        %v3378 = vpack.c.b16 %v3252, %v3250
        %v3379 = vpack.c.b16 %v3255, %v3253
        %v3380 = vpack.c.b16 %v3256, %v3254
        %v3381 = vpack.c.b16 %v3259, %v3257
        %v3382 = vpack.c.b16 %v3260, %v3258
        %v3383 = vpack.c.b16 %v3263, %v3261
        %v3384 = vpack.c.b16 %v3264, %v3262
        %v3385 = vpack.c.b16 %v3267, %v3265
        %v3386 = vpack.c.b16 %v3268, %v3266
        %v3387 = vpack.c.b16 %v3271, %v3269
        %v3388 = vpack.c.b16 %v3272, %v3270
        %v3389 = vpack.c.b16 %v3275, %v3273
        %v3390 = vpack.c.b16 %v3276, %v3274
        %v3391 = vpack.c.b16 %v3279, %v3277
        %v3392 = vpack.c.b16 %v3280, %v3278
        %v3393 = vpack.c.b16 %v3283, %v3281
        %v3394 = vpack.c.b16 %v3284, %v3282
        %v3395 = vpack.c.b16 %v3287, %v3285
        %v3396 = vpack.c.b16 %v3288, %v3286
        %v3397 = vpack.c.b16 %v3291, %v3289
        %v3398 = vpack.c.b16 %v3292, %v3290
        %v3399 = vpack.c.b16 %v3295, %v3293
        %v3400 = vpack.c.b16 %v3296, %v3294
        %v3401 = vpack.c.b16 %v3299, %v3297
        %v3402 = vpack.c.b16 %v3300, %v3298
        %v3403 = vpack.c.b16 %v3303, %v3301
        %v3404 = vpack.c.b16 %v3304, %v3302
        %v3405 = vpack.c.b16 %v3307, %v3305
        %v3406 = vpack.c.b16 %v3308, %v3306
        %v3407 = vpack.c.b16 %v3311, %v3309
        %v3408 = vpack.c.b16 %v3312, %v3310
        %v3409 = vpack.c.b16 %v3315, %v3313
        %v3410 = vpack.c.b16 %v3316, %v3314
        %v3411 = vpack.c.b16 %v3319, %v3317
        %v3412 = vpack.c.b16 %v3320, %v3318
        %v3413 = vpack.c.b16 %v3323, %v3321
        %v3414 = vpack.c.b16 %v3324, %v3322
        %v3415 = vpack.c.b16 %v3327, %v3325
        %v3416 = vpack.c.b16 %v3328, %v3326
        %v3417 = vpack.c.b16 %v3331, %v3329
        %v3418 = vpack.c.b16 %v3332, %v3330
        %v3419 = vpack.c.b16 %v3335, %v3333
        %v3420 = vpack.c.b16 %v3336, %v3334
        %v3421 = vpack.c.b16 %v3339, %v3337
        %v3422 = vpack.c.b16 %v3340, %v3338
        %v3423 = vpack.c.b16 %v3343, %v3341
        %v3424 = vpack.c.b16 %v3344, %v3342
        %v3425 = vpack.c.b16 %v3347, %v3345
        %v3426 = vpack.c.b16 %v3348, %v3346
        %v3427 = vpack.c.b16 %v3351, %v3349
        %v3428 = vpack.c.b16 %v3352, %v3350
        %v3429 = vpack.c.b16 %v3355, %v3353
        %v3430 = vpack.c.b16 %v3356, %v3354
        %v3431 = vpack.c.b16 %v3359, %v3357
        %v3432 = vpack.c.b16 %v3360, %v3358
        %v3433 = vpack.c.b16 %v3363, %v3361
        %v3434 = vpack.c.b16 %v3364, %v3362
        %v3435 = vpack.c.b16 %v3367, %v3365
        %v3436 = vpack.c.b16 %v3368, %v3366
        %v3437 = vpack.c.b16 %v3371, %v3369
        %v3438 = vpack.c.b16 %v3372, %v3370
        %v3439 = vpack.c.b16 %v3375, %v3373
        %v3440 = vpack.c.b16 %v3376, %v3374
        %3505 = vmatprep.subr.bf16.mxu0 %v3378
        %3506 = vmatpush1.bf16.msra.mxu0 %v3377
        %3507 = vmatprep.subr.bf16.mxu0 %v3380
        %3508 = vmatpush1.bf16.msra.mxu0 %v3379
        %3509 = vmatprep.subr.bf16.mxu0 %v3382
        %3510 = vmatpush1.bf16.msra.mxu0 %v3381
        %3511 = vmatprep.subr.bf16.mxu0 %v3384
        %3512 = vmatpush1.bf16.msra.mxu0 %v3383
        %3513 = vmatprep.subr.bf16.mxu0 %v3386
        %3514 = vmatpush1.bf16.msra.mxu0 %v3385
        %3515 = vmatprep.subr.bf16.mxu0 %v3388
        %3516 = vmatpush1.bf16.msra.mxu0 %v3387
        %3517 = vmatprep.subr.bf16.mxu0 %v3390
        %3518 = vmatpush1.bf16.msra.mxu0 %v3389
        %3519 = vmatprep.subr.bf16.mxu0 %v3392
        %3520 = vmatpush1.bf16.msra.mxu0 %v3391
        %3521 = vmatprep.subr.bf16.mxu0 %v3394
        %3522 = vmatpush1.bf16.msra.mxu0 %v3393
        %3523 = vmatprep.subr.bf16.mxu0 %v3396
        %3524 = vmatpush1.bf16.msra.mxu0 %v3395
        %3525 = vmatprep.subr.bf16.mxu0 %v3398
        %3526 = vmatpush1.bf16.msra.mxu0 %v3397
        %3527 = vmatprep.subr.bf16.mxu0 %v3400
        %3528 = vmatpush1.bf16.msra.mxu0 %v3399
        %3529 = vmatprep.subr.bf16.mxu0 %v3402
        %3530 = vmatpush1.bf16.msra.mxu0 %v3401
        %3531 = vmatprep.subr.bf16.mxu0 %v3404
        %3532 = vmatpush1.bf16.msra.mxu0 %v3403
        %3533 = vmatprep.subr.bf16.mxu0 %v3406
        %3534 = vmatpush1.bf16.msra.mxu0 %v3405
        %3535 = vmatprep.subr.bf16.mxu0 %v3408
        %3536 = vmatpush1.bf16.msra.mxu0 %v3407
        %3537 = vmatprep.mubr.bf16.mxu0 %v3046
        %3538 = vmatmul.mubr.bf16.gmra.mrb[0].mxu0 %v3045
        %v3539 = vpop.f32.mrb[0].mxu0
        %v3540 = vadd.f32 %v3178, %v3539
        %v3541 = vpop.f32.mrb[0].mxu0
        %v3542 = vadd.f32 %v3182, %v3541
        %v3543 = vpop.f32.mrb[0].mxu0
        %v3544 = vadd.f32 %v3178, %v3543
        %v3545 = vpop.f32.mrb[0].mxu0
        %v3546 = vadd.f32 %v3182, %v3545
        %3547 = vmatprep.mubr.bf16.mxu0 %v3050
        %3548 = vmatmul.mubr.bf16.gmra.mrb[0].mxu0 %v3049
        %v3549 = vpop.f32.mrb[0].mxu0
        %v3550 = vadd.f32 %v3178, %v3549
        %v3551 = vpop.f32.mrb[0].mxu0
        %v3552 = vadd.f32 %v3182, %v3551
        %v3553 = vpop.f32.mrb[0].mxu0
        %v3554 = vadd.f32 %v3178, %v3553
        %v3555 = vpop.f32.mrb[0].mxu0
        %v3556 = vadd.f32 %v3182, %v3555
        %3557 = vmatprep.mubr.bf16.mxu0 %v3054
        %3558 = vmatmul.mubr.bf16.gmra.mrb[0].mxu0 %v3053
        %v3559 = vpop.f32.mrb[0].mxu0
        %v3560 = vadd.f32 %v3178, %v3559
        %v3561 = vpop.f32.mrb[0].mxu0
        %v3562 = vadd.f32 %v3182, %v3561
        %v3563 = vpop.f32.mrb[0].mxu0
        %v3564 = vadd.f32 %v3178, %v3563
        %v3565 = vpop.f32.mrb[0].mxu0
        %v3566 = vadd.f32 %v3182, %v3565
        %3567 = vmatprep.mubr.bf16.mxu0 %v3058
        %3568 = vmatmul.mubr.bf16.gmra.mrb[0].mxu0 %v3057
        %v3569 = vpop.f32.mrb[0].mxu0
        %v3570 = vadd.f32 %v3178, %v3569
        %v3571 = vpop.f32.mrb[0].mxu0
        %v3572 = vadd.f32 %v3182, %v3571
        %v3573 = vpop.f32.mrb[0].mxu0
        %v3574 = vadd.f32 %v3178, %v3573
        %v3575 = vpop.f32.mrb[0].mxu0
        %v3576 = vadd.f32 %v3182, %v3575
        %3577 = vmatprep.mubr.bf16.mxu0 %v3062
        %3578 = vmatmul.mubr.bf16.gmra.mrb[0].mxu0 %v3061
        %v3579 = vpop.f32.mrb[0].mxu0
        %v3580 = vadd.f32 %v3178, %v3579
        %v3581 = vpop.f32.mrb[0].mxu0
        %v3582 = vadd.f32 %v3182, %v3581
        %v3583 = vpop.f32.mrb[0].mxu0
        %v3584 = vadd.f32 %v3178, %v3583
        %v3585 = vpop.f32.mrb[0].mxu0
        %v3586 = vadd.f32 %v3182, %v3585
        %3587 = vmatprep.mubr.bf16.mxu0 %v3066
        %3588 = vmatmul.mubr.bf16.gmra.mrb[0].mxu0 %v3065
        %v3589 = vpop.f32.mrb[0].mxu0
        %v3590 = vadd.f32 %v3178, %v3589
        %v3591 = vpop.f32.mrb[0].mxu0
        %v3592 = vadd.f32 %v3182, %v3591
        %v3593 = vpop.f32.mrb[0].mxu0
        %v3594 = vadd.f32 %v3178, %v3593
        %v3595 = vpop.f32.mrb[0].mxu0
        %v3596 = vadd.f32 %v3182, %v3595
        %3597 = vmatprep.mubr.bf16.mxu0 %v3070
        %3598 = vmatmul.mubr.bf16.gmra.mrb[0].mxu0 %v3069
        %v3599 = vpop.f32.mrb[0].mxu0
        %v3600 = vadd.f32 %v3178, %v3599
        %v3601 = vpop.f32.mrb[0].mxu0
        %v3602 = vadd.f32 %v3182, %v3601
        %v3603 = vpop.f32.mrb[0].mxu0
        %v3604 = vadd.f32 %v3178, %v3603
        %v3605 = vpop.f32.mrb[0].mxu0
        %v3606 = vadd.f32 %v3182, %v3605
        %3607 = vmatprep.mubr.bf16.mxu0 %v3074
        %3608 = vmatmul.mubr.bf16.gmra.mrb[0].mxu0 %v3073
        %v3609 = vpop.f32.mrb[0].mxu0
        %v3610 = vadd.f32 %v3178, %v3609
        %v3611 = vpop.f32.mrb[0].mxu0
        %v3612 = vadd.f32 %v3182, %v3611
        %v3613 = vpop.f32.mrb[0].mxu0
        %v3614 = vadd.f32 %v3178, %v3613
        %v3615 = vpop.f32.mrb[0].mxu0
        %v3616 = vadd.f32 %v3182, %v3615
        %3617 = vmatprep.mubr.bf16.mxu0 %v3078
        %3618 = vmatmul.mubr.bf16.gmra.mrb[0].mxu0 %v3077
        %v3619 = vpop.f32.mrb[0].mxu0
        %v3620 = vadd.f32 %v3178, %v3619
        %v3621 = vpop.f32.mrb[0].mxu0
        %v3622 = vadd.f32 %v3182, %v3621
        %v3623 = vpop.f32.mrb[0].mxu0
        %v3624 = vadd.f32 %v3178, %v3623
        %v3625 = vpop.f32.mrb[0].mxu0
        %v3626 = vadd.f32 %v3182, %v3625
        %3627 = vmatprep.mubr.bf16.mxu0 %v3082
        %3628 = vmatmul.mubr.bf16.gmra.mrb[0].mxu0 %v3081
        %v3629 = vpop.f32.mrb[0].mxu0
        %v3630 = vadd.f32 %v3178, %v3629
        %v3631 = vpop.f32.mrb[0].mxu0
        %v3632 = vadd.f32 %v3182, %v3631
        %v3633 = vpop.f32.mrb[0].mxu0
        %v3634 = vadd.f32 %v3178, %v3633
        %v3635 = vpop.f32.mrb[0].mxu0
        %v3636 = vadd.f32 %v3182, %v3635
        %3637 = vmatprep.mubr.bf16.mxu0 %v3086
        %3638 = vmatmul.mubr.bf16.gmra.mrb[0].mxu0 %v3085
        %v3639 = vpop.f32.mrb[0].mxu0
        %v3640 = vadd.f32 %v3178, %v3639
        %v3641 = vpop.f32.mrb[0].mxu0
        %v3642 = vadd.f32 %v3182, %v3641
        %v3643 = vpop.f32.mrb[0].mxu0
        %v3644 = vadd.f32 %v3178, %v3643
        %v3645 = vpop.f32.mrb[0].mxu0
        %v3646 = vadd.f32 %v3182, %v3645
        %3647 = vmatprep.mubr.bf16.mxu0 %v3090
        %3648 = vmatmul.mubr.bf16.gmra.mrb[0].mxu0 %v3089
        %v3649 = vpop.f32.mrb[0].mxu0
        %v3650 = vadd.f32 %v3178, %v3649
        %v3651 = vpop.f32.mrb[0].mxu0
        %v3652 = vadd.f32 %v3182, %v3651
        %v3653 = vpop.f32.mrb[0].mxu0
        %v3654 = vadd.f32 %v3178, %v3653
        %v3655 = vpop.f32.mrb[0].mxu0
        %v3656 = vadd.f32 %v3182, %v3655
        %3657 = vmatprep.mubr.bf16.mxu0 %v3094
        %3658 = vmatmul.mubr.bf16.gmra.mrb[0].mxu0 %v3093
        %v3659 = vpop.f32.mrb[0].mxu0
        %v3660 = vadd.f32 %v3178, %v3659
        %v3661 = vpop.f32.mrb[0].mxu0
        %v3662 = vadd.f32 %v3182, %v3661
        %v3663 = vpop.f32.mrb[0].mxu0
        %v3664 = vadd.f32 %v3178, %v3663
        %v3665 = vpop.f32.mrb[0].mxu0
        %v3666 = vadd.f32 %v3182, %v3665
        %3667 = vmatprep.mubr.bf16.mxu0 %v3098
        %3668 = vmatmul.mubr.bf16.gmra.mrb[0].mxu0 %v3097
        %v3669 = vpop.f32.mrb[0].mxu0
        %v3670 = vadd.f32 %v3178, %v3669
        %v3671 = vpop.f32.mrb[0].mxu0
        %v3672 = vadd.f32 %v3182, %v3671
        %v3673 = vpop.f32.mrb[0].mxu0
        %v3674 = vadd.f32 %v3178, %v3673
        %v3675 = vpop.f32.mrb[0].mxu0
        %v3676 = vadd.f32 %v3182, %v3675
        %3677 = vmatprep.mubr.bf16.mxu0 %v3102
        %3678 = vmatmul.mubr.bf16.gmra.mrb[0].mxu0 %v3101
        %v3679 = vpop.f32.mrb[0].mxu0
        %v3680 = vadd.f32 %v3178, %v3679
        %v3681 = vpop.f32.mrb[0].mxu0
        %v3682 = vadd.f32 %v3182, %v3681
        %v3683 = vpop.f32.mrb[0].mxu0
        %v3684 = vadd.f32 %v3178, %v3683
        %v3685 = vpop.f32.mrb[0].mxu0
        %v3686 = vadd.f32 %v3182, %v3685
        %3687 = vmatprep.mubr.bf16.mxu0 %v3106
        %3688 = vmatmul.mubr.bf16.gmra.mrb[0].mxu0 %v3105
        %v3689 = vpop.f32.mrb[0].mxu0
        %v3690 = vadd.f32 %v3178, %v3689
        %v3691 = vpop.f32.mrb[0].mxu0
        %v3692 = vadd.f32 %v3182, %v3691
        %v3693 = vpop.f32.mrb[0].mxu0
        %v3694 = vadd.f32 %v3178, %v3693
        %v3695 = vpop.f32.mrb[0].mxu0
        %v3696 = vadd.f32 %v3182, %v3695
        %3697 = vdwg.mxu0
        %3698 = vmatprep.subr.bf16.mxu0 %v3410
        %3699 = vmatpush1.bf16.msra.mxu0 %v3409
        %3700 = vmatprep.subr.bf16.mxu0 %v3412
        %3701 = vmatpush1.bf16.msra.mxu0 %v3411
        %3702 = vmatprep.subr.bf16.mxu0 %v3414
        %3703 = vmatpush1.bf16.msra.mxu0 %v3413
        %3704 = vmatprep.subr.bf16.mxu0 %v3416
        %3705 = vmatpush1.bf16.msra.mxu0 %v3415
        %3706 = vmatprep.subr.bf16.mxu0 %v3418
        %3707 = vmatpush1.bf16.msra.mxu0 %v3417
        %3708 = vmatprep.subr.bf16.mxu0 %v3420
        %3709 = vmatpush1.bf16.msra.mxu0 %v3419
        %3710 = vmatprep.subr.bf16.mxu0 %v3422
        %3711 = vmatpush1.bf16.msra.mxu0 %v3421
        %3712 = vmatprep.subr.bf16.mxu0 %v3424
        %3713 = vmatpush1.bf16.msra.mxu0 %v3423
        %3714 = vmatprep.subr.bf16.mxu0 %v3426
        %3715 = vmatpush1.bf16.msra.mxu0 %v3425
        %3716 = vmatprep.subr.bf16.mxu0 %v3428
        %3717 = vmatpush1.bf16.msra.mxu0 %v3427
        %3718 = vmatprep.subr.bf16.mxu0 %v3430
        %3719 = vmatpush1.bf16.msra.mxu0 %v3429
        %3720 = vmatprep.subr.bf16.mxu0 %v3432
        %3721 = vmatpush1.bf16.msra.mxu0 %v3431
        %3722 = vmatprep.subr.bf16.mxu0 %v3434
        %3723 = vmatpush1.bf16.msra.mxu0 %v3433
        %3724 = vmatprep.subr.bf16.mxu0 %v3436
        %3725 = vmatpush1.bf16.msra.mxu0 %v3435
        %3726 = vmatprep.subr.bf16.mxu0 %v3438
        %3727 = vmatpush1.bf16.msra.mxu0 %v3437
        %3728 = vmatprep.subr.bf16.mxu0 %v3440
        %3729 = vmatpush1.bf16.msra.mxu0 %v3439
        %3730 = vmatprep.mubr.bf16.mxu0 %v3048
        %3731 = vmatmul.mubr.bf16.gmra.mrb[0].mxu0 %v3047
        %v3732 = vpop.f32.mrb[0].mxu0
        %v3733 = vadd.f32 %v3540, %v3732
        %v3734 = vpop.f32.mrb[0].mxu0
        %v3735 = vadd.f32 %v3542, %v3734
        %v3736 = vpop.f32.mrb[0].mxu0
        %v3737 = vadd.f32 %v3544, %v3736
        %v3738 = vpop.f32.mrb[0].mxu0
        %v3739 = vadd.f32 %v3546, %v3738
        %3740 = vmatprep.mubr.bf16.mxu0 %v3052
        %3741 = vmatmul.mubr.bf16.gmra.mrb[0].mxu0 %v3051
        %v3742 = vpop.f32.mrb[0].mxu0
        %v3743 = vadd.f32 %v3550, %v3742
        %v3744 = vpop.f32.mrb[0].mxu0
        %v3745 = vadd.f32 %v3552, %v3744
        %v3746 = vpop.f32.mrb[0].mxu0
        %v3747 = vadd.f32 %v3554, %v3746
        %v3748 = vpop.f32.mrb[0].mxu0
        %v3749 = vadd.f32 %v3556, %v3748
        %3750 = vmatprep.mubr.bf16.mxu0 %v3056
        %3751 = vmatmul.mubr.bf16.gmra.mrb[0].mxu0 %v3055
        %v3752 = vpop.f32.mrb[0].mxu0
        %v3753 = vadd.f32 %v3560, %v3752
        %v3754 = vpop.f32.mrb[0].mxu0
        %v3755 = vadd.f32 %v3562, %v3754
        %v3756 = vpop.f32.mrb[0].mxu0
        %v3757 = vadd.f32 %v3564, %v3756
        %v3758 = vpop.f32.mrb[0].mxu0
        %v3759 = vadd.f32 %v3566, %v3758
        %3760 = vmatprep.mubr.bf16.mxu0 %v3060
        %3761 = vmatmul.mubr.bf16.gmra.mrb[0].mxu0 %v3059
        %v3762 = vpop.f32.mrb[0].mxu0
        %v3763 = vadd.f32 %v3570, %v3762
        %v3764 = vpop.f32.mrb[0].mxu0
        %v3765 = vadd.f32 %v3572, %v3764
        %v3766 = vpop.f32.mrb[0].mxu0
        %v3767 = vadd.f32 %v3574, %v3766
        %v3768 = vpop.f32.mrb[0].mxu0
        %v3769 = vadd.f32 %v3576, %v3768
        %3770 = vmatprep.mubr.bf16.mxu0 %v3064
        %3771 = vmatmul.mubr.bf16.gmra.mrb[0].mxu0 %v3063
        %v3772 = vpop.f32.mrb[0].mxu0
        %v3773 = vadd.f32 %v3580, %v3772
        %v3774 = vpop.f32.mrb[0].mxu0
        %v3775 = vadd.f32 %v3582, %v3774
        %v3776 = vpop.f32.mrb[0].mxu0
        %v3777 = vadd.f32 %v3584, %v3776
        %v3778 = vpop.f32.mrb[0].mxu0
        %v3779 = vadd.f32 %v3586, %v3778
        %3780 = vmatprep.mubr.bf16.mxu0 %v3068
        %3781 = vmatmul.mubr.bf16.gmra.mrb[0].mxu0 %v3067
        %v3782 = vpop.f32.mrb[0].mxu0
        %v3783 = vadd.f32 %v3590, %v3782
        %v3784 = vpop.f32.mrb[0].mxu0
        %v3785 = vadd.f32 %v3592, %v3784
        %v3786 = vpop.f32.mrb[0].mxu0
        %v3787 = vadd.f32 %v3594, %v3786
        %v3788 = vpop.f32.mrb[0].mxu0
        %v3789 = vadd.f32 %v3596, %v3788
        %3790 = vmatprep.mubr.bf16.mxu0 %v3072
        %3791 = vmatmul.mubr.bf16.gmra.mrb[0].mxu0 %v3071
        %v3792 = vpop.f32.mrb[0].mxu0
        %v3793 = vadd.f32 %v3600, %v3792
        %v3794 = vpop.f32.mrb[0].mxu0
        %v3795 = vadd.f32 %v3602, %v3794
        %v3796 = vpop.f32.mrb[0].mxu0
        %v3797 = vadd.f32 %v3604, %v3796
        %v3798 = vpop.f32.mrb[0].mxu0
        %v3799 = vadd.f32 %v3606, %v3798
        %3800 = vmatprep.mubr.bf16.mxu0 %v3076
        %3801 = vmatmul.mubr.bf16.gmra.mrb[0].mxu0 %v3075
        %v3802 = vpop.f32.mrb[0].mxu0
        %v3803 = vadd.f32 %v3610, %v3802
        %v3804 = vpop.f32.mrb[0].mxu0
        %v3805 = vadd.f32 %v3612, %v3804
        %v3806 = vpop.f32.mrb[0].mxu0
        %v3807 = vadd.f32 %v3614, %v3806
        %v3808 = vpop.f32.mrb[0].mxu0
        %v3809 = vadd.f32 %v3616, %v3808
        %3810 = vmatprep.mubr.bf16.mxu0 %v3080
        %3811 = vmatmul.mubr.bf16.gmra.mrb[0].mxu0 %v3079
        %v3812 = vpop.f32.mrb[0].mxu0
        %v3813 = vadd.f32 %v3620, %v3812
        %v3814 = vpop.f32.mrb[0].mxu0
        %v3815 = vadd.f32 %v3622, %v3814
        %v3816 = vpop.f32.mrb[0].mxu0
        %v3817 = vadd.f32 %v3624, %v3816
        %v3818 = vpop.f32.mrb[0].mxu0
        %v3819 = vadd.f32 %v3626, %v3818
        %3820 = vmatprep.mubr.bf16.mxu0 %v3084
        %3821 = vmatmul.mubr.bf16.gmra.mrb[0].mxu0 %v3083
        %v3822 = vpop.f32.mrb[0].mxu0
        %v3823 = vadd.f32 %v3630, %v3822
        %v3824 = vpop.f32.mrb[0].mxu0
        %v3825 = vadd.f32 %v3632, %v3824
        %v3826 = vpop.f32.mrb[0].mxu0
        %v3827 = vadd.f32 %v3634, %v3826
        %v3828 = vpop.f32.mrb[0].mxu0
        %v3829 = vadd.f32 %v3636, %v3828
        %3830 = vmatprep.mubr.bf16.mxu0 %v3088
        %3831 = vmatmul.mubr.bf16.gmra.mrb[0].mxu0 %v3087
        %v3832 = vpop.f32.mrb[0].mxu0
        %v3833 = vadd.f32 %v3640, %v3832
        %v3834 = vpop.f32.mrb[0].mxu0
        %v3835 = vadd.f32 %v3642, %v3834
        %v3836 = vpop.f32.mrb[0].mxu0
        %v3837 = vadd.f32 %v3644, %v3836
        %v3838 = vpop.f32.mrb[0].mxu0
        %v3839 = vadd.f32 %v3646, %v3838
        %3840 = vmatprep.mubr.bf16.mxu0 %v3092
        %3841 = vmatmul.mubr.bf16.gmra.mrb[0].mxu0 %v3091
        %v3842 = vpop.f32.mrb[0].mxu0
        %v3843 = vadd.f32 %v3650, %v3842
        %v3844 = vpop.f32.mrb[0].mxu0
        %v3845 = vadd.f32 %v3652, %v3844
        %v3846 = vpop.f32.mrb[0].mxu0
        %v3847 = vadd.f32 %v3654, %v3846
        %v3848 = vpop.f32.mrb[0].mxu0
        %v3849 = vadd.f32 %v3656, %v3848
        %3850 = vmatprep.mubr.bf16.mxu0 %v3096
        %3851 = vmatmul.mubr.bf16.gmra.mrb[0].mxu0 %v3095
        %v3852 = vpop.f32.mrb[0].mxu0
        %v3853 = vadd.f32 %v3660, %v3852
        %v3854 = vpop.f32.mrb[0].mxu0
        %v3855 = vadd.f32 %v3662, %v3854
        %v3856 = vpop.f32.mrb[0].mxu0
        %v3857 = vadd.f32 %v3664, %v3856
        %v3858 = vpop.f32.mrb[0].mxu0
        %v3859 = vadd.f32 %v3666, %v3858
        %3860 = vmatprep.mubr.bf16.mxu0 %v3100
        %3861 = vmatmul.mubr.bf16.gmra.mrb[0].mxu0 %v3099
        %v3862 = vpop.f32.mrb[0].mxu0
        %v3863 = vadd.f32 %v3670, %v3862
        %v3864 = vpop.f32.mrb[0].mxu0
        %v3865 = vadd.f32 %v3672, %v3864
        %v3866 = vpop.f32.mrb[0].mxu0
        %v3867 = vadd.f32 %v3674, %v3866
        %v3868 = vpop.f32.mrb[0].mxu0
        %v3869 = vadd.f32 %v3676, %v3868
        %3870 = vmatprep.mubr.bf16.mxu0 %v3104
        %3871 = vmatmul.mubr.bf16.gmra.mrb[0].mxu0 %v3103
        %v3872 = vpop.f32.mrb[0].mxu0
        %v3873 = vadd.f32 %v3680, %v3872
        %v3874 = vpop.f32.mrb[0].mxu0
        %v3875 = vadd.f32 %v3682, %v3874
        %v3876 = vpop.f32.mrb[0].mxu0
        %v3877 = vadd.f32 %v3684, %v3876
        %v3878 = vpop.f32.mrb[0].mxu0
        %v3879 = vadd.f32 %v3686, %v3878
        %3880 = vmatprep.mubr.bf16.mxu0 %v3108
        %3881 = vmatmul.mubr.bf16.gmra.mrb[0].mxu0 %v3107
        %v3882 = vpop.f32.mrb[0].mxu0
        %v3883 = vadd.f32 %v3690, %v3882
        %v3884 = vpop.f32.mrb[0].mxu0
        %v3885 = vadd.f32 %v3692, %v3884
        %v3886 = vpop.f32.mrb[0].mxu0
        %v3887 = vadd.f32 %v3694, %v3886
        %v3888 = vpop.f32.mrb[0].mxu0
        %v3889 = vadd.f32 %v3696, %v3888
        %3890 = vdwg.mxu0
        %v3891 = vmax.f32 %v3733, %v3737
        %v3892 = vmax.f32 %v3891, %v3743
        %v3893 = vmax.f32 %v3892, %v3747
        %v3894 = vrot.slane %v3893, 4
        %v3895 = vmax.f32 %v3893, %v3894
        %v3896 = vrot.slane %v3895, 2
        %v3897 = vmax.f32 %v3895, %v3896
        %v3898 = vrot.slane %v3897, 1
        %v3899 = vmax.f32 %v3897, %v3898
        %v3900 = vmax.f32 %v3735, %v3739
        %v3901 = vmax.f32 %v3900, %v3745
        %v3902 = vmax.f32 %v3901, %v3749
        %v3903 = vrot.slane %v3902, 4
        %v3904 = vmax.f32 %v3902, %v3903
        %v3905 = vrot.slane %v3904, 2
        %v3906 = vmax.f32 %v3904, %v3905
        %v3907 = vrot.slane %v3906, 1
        %v3908 = vmax.f32 %v3906, %v3907
        %v3909 = vmax.f32 %v3753, %v3757
        %v3910 = vmax.f32 %v3909, %v3763
        %v3911 = vmax.f32 %v3910, %v3767
        %v3912 = vrot.slane %v3911, 4
        %v3913 = vmax.f32 %v3911, %v3912
        %v3914 = vrot.slane %v3913, 2
        %v3915 = vmax.f32 %v3913, %v3914
        %v3916 = vrot.slane %v3915, 1
        %v3917 = vmax.f32 %v3915, %v3916
        %v3918 = vmax.f32 %v3755, %v3759
        %v3919 = vmax.f32 %v3918, %v3765
        %v3920 = vmax.f32 %v3919, %v3769
        %v3921 = vrot.slane %v3920, 4
        %v3922 = vmax.f32 %v3920, %v3921
        %v3923 = vrot.slane %v3922, 2
        %v3924 = vmax.f32 %v3922, %v3923
        %v3925 = vrot.slane %v3924, 1
        %v3926 = vmax.f32 %v3924, %v3925
        %v3927 = vmax.f32 %v3773, %v3777
        %v3928 = vmax.f32 %v3927, %v3783
        %v3929 = vmax.f32 %v3928, %v3787
        %v3930 = vrot.slane %v3929, 4
        %v3931 = vmax.f32 %v3929, %v3930
        %v3932 = vrot.slane %v3931, 2
        %v3933 = vmax.f32 %v3931, %v3932
        %v3934 = vrot.slane %v3933, 1
        %v3935 = vmax.f32 %v3933, %v3934
        %v3936 = vmax.f32 %v3775, %v3779
        %v3937 = vmax.f32 %v3936, %v3785
        %v3938 = vmax.f32 %v3937, %v3789
        %v3939 = vrot.slane %v3938, 4
        %v3940 = vmax.f32 %v3938, %v3939
        %v3941 = vrot.slane %v3940, 2
        %v3942 = vmax.f32 %v3940, %v3941
        %v3943 = vrot.slane %v3942, 1
        %v3944 = vmax.f32 %v3942, %v3943
        %v3945 = vmax.f32 %v3793, %v3797
        %v3946 = vmax.f32 %v3945, %v3803
        %v3947 = vmax.f32 %v3946, %v3807
        %v3948 = vrot.slane %v3947, 4
        %v3949 = vmax.f32 %v3947, %v3948
        %v3950 = vrot.slane %v3949, 2
        %v3951 = vmax.f32 %v3949, %v3950
        %v3952 = vrot.slane %v3951, 1
        %v3953 = vmax.f32 %v3951, %v3952
        %v3954 = vmax.f32 %v3795, %v3799
        %v3955 = vmax.f32 %v3954, %v3805
        %v3956 = vmax.f32 %v3955, %v3809
        %v3957 = vrot.slane %v3956, 4
        %v3958 = vmax.f32 %v3956, %v3957
        %v3959 = vrot.slane %v3958, 2
        %v3960 = vmax.f32 %v3958, %v3959
        %v3961 = vrot.slane %v3960, 1
        %v3962 = vmax.f32 %v3960, %v3961
        %v3963 = vmax.f32 %v3813, %v3817
        %v3964 = vmax.f32 %v3963, %v3823
        %v3965 = vmax.f32 %v3964, %v3827
        %v3966 = vrot.slane %v3965, 4
        %v3967 = vmax.f32 %v3965, %v3966
        %v3968 = vrot.slane %v3967, 2
        %v3969 = vmax.f32 %v3967, %v3968
        %v3970 = vrot.slane %v3969, 1
        %v3971 = vmax.f32 %v3969, %v3970
        %v3972 = vmax.f32 %v3815, %v3819
        %v3973 = vmax.f32 %v3972, %v3825
        %v3974 = vmax.f32 %v3973, %v3829
        %v3975 = vrot.slane %v3974, 4
        %v3976 = vmax.f32 %v3974, %v3975
        %v3977 = vrot.slane %v3976, 2
        %v3978 = vmax.f32 %v3976, %v3977
        %v3979 = vrot.slane %v3978, 1
        %v3980 = vmax.f32 %v3978, %v3979
        %v3981 = vmax.f32 %v3833, %v3837
        %v3982 = vmax.f32 %v3981, %v3843
        %v3983 = vmax.f32 %v3982, %v3847
        %v3984 = vrot.slane %v3983, 4
        %v3985 = vmax.f32 %v3983, %v3984
        %v3986 = vrot.slane %v3985, 2
        %v3987 = vmax.f32 %v3985, %v3986
        %v3988 = vrot.slane %v3987, 1
        %v3989 = vmax.f32 %v3987, %v3988
        %v3990 = vmax.f32 %v3835, %v3839
        %v3991 = vmax.f32 %v3990, %v3845
        %v3992 = vmax.f32 %v3991, %v3849
        %v3993 = vrot.slane %v3992, 4
        %v3994 = vmax.f32 %v3992, %v3993
        %v3995 = vrot.slane %v3994, 2
        %v3996 = vmax.f32 %v3994, %v3995
        %v3997 = vrot.slane %v3996, 1
        %v3998 = vmax.f32 %v3996, %v3997
        %v3999 = vmax.f32 %v3853, %v3857
        %v4000 = vmax.f32 %v3999, %v3863
        %v4001 = vmax.f32 %v4000, %v3867
        %v4002 = vrot.slane %v4001, 4
        %v4003 = vmax.f32 %v4001, %v4002
        %v4004 = vrot.slane %v4003, 2
        %v4005 = vmax.f32 %v4003, %v4004
        %v4006 = vrot.slane %v4005, 1
        %v4007 = vmax.f32 %v4005, %v4006
        %v4008 = vmax.f32 %v3855, %v3859
        %v4009 = vmax.f32 %v4008, %v3865
        %v4010 = vmax.f32 %v4009, %v3869
        %v4011 = vrot.slane %v4010, 4
        %v4012 = vmax.f32 %v4010, %v4011
        %v4013 = vrot.slane %v4012, 2
        %v4014 = vmax.f32 %v4012, %v4013
        %v4015 = vrot.slane %v4014, 1
        %v4016 = vmax.f32 %v4014, %v4015
        %v4017 = vmax.f32 %v3873, %v3877
        %v4018 = vmax.f32 %v4017, %v3883
        %v4019 = vmax.f32 %v4018, %v3887
        %v4020 = vrot.slane %v4019, 4
        %v4021 = vmax.f32 %v4019, %v4020
        %v4022 = vrot.slane %v4021, 2
        %v4023 = vmax.f32 %v4021, %v4022
        %v4024 = vrot.slane %v4023, 1
        %v4025 = vmax.f32 %v4023, %v4024
        %v4026 = vmax.f32 %v3875, %v3879
        %v4027 = vmax.f32 %v4026, %v3885
        %v4028 = vmax.f32 %v4027, %v3889
        %v4029 = vrot.slane %v4028, 4
        %v4030 = vmax.f32 %v4028, %v4029
        %v4031 = vrot.slane %v4030, 2
        %v4032 = vmax.f32 %v4030, %v4031
        %v4033 = vrot.slane %v4032, 1
        %v4034 = vmax.f32 %v4032, %v4033
        %v4051 = vsel %vm1980, %v3917, %v3899
        %v4052 = vsel %vm1982, %v3935, %v4051
        %v4053 = vsel %vm1984, %v3953, %v4052
        %v4054 = vsel %vm1986, %v3971, %v4053
        %v4055 = vsel %vm1988, %v3989, %v4054
        %v4056 = vsel %vm1990, %v4007, %v4055
        %v4057 = vsel %vm1992, %v4025, %v4056
        %v4058 = vsel %vm1980, %v3926, %v3908
        %v4059 = vsel %vm1982, %v3944, %v4058
        %v4060 = vsel %vm1984, %v3962, %v4059
        %v4061 = vsel %vm1986, %v3980, %v4060
        %v4062 = vsel %vm1988, %v3998, %v4061
        %v4063 = vsel %vm1990, %v4016, %v4062
        %v4064 = vsel %vm1992, %v4034, %v4063
        %4067 = vst [vmem:[%s358] sm:$0xff] %v4057
        %4068 = vst [vmem:[%s358 + $0x8] sm:$0xff] %v4064
        %s4069 = sand.u32 %s227, 1
        %s4070 = scalar_lea.sflag [#allocation4], %s4069
        %s4071 = sand.u32 %s227, 1
        %s4072 = smul.addr %s4071, 16
        %s4073 = scalar_lea.vmem [#allocation7], %s4072
        // Predicated region
        $region65: #{encoder_forward.1} parent=55 // pred_check
          %p4074 = pneg %p237
        $region66: #{encoder_forward.1} parent=55 // pred_check_branch
          %4076 = sbr.rel (%p4074) target = $region68
        $region67: #{encoder_forward.1} parent=55 // pred_region
          %s4078 = ssub.s32 256, 256
          %4079 = vsyncadd %s4070, %s4078
          %s4080 = smul.addr %s25, 2
          %s4081 = smul.addr %s4080, 128
          %s4082 = scalar_lea.hbm %s9, %s4081
          %s4084 = sshll.u32 %s4073, 4
          %s4085 = int_to_ptr.vmem [resolvable:$true] %s4084
          %4087 = dma.vmem_to_hbm [thread:$0]  %s4085, 256, %s4082, %s4070
        $region68: #{encoder_forward.1} parent=55 // pred_fallthru
          _
      $region56: #{encoder_forward.1} parent=5 // pred_fallthru
        _
      %p4088 = scmp.le.s32.totalorder 2, %s20
      // Predicated region
      $region69: #{encoder_forward.1} parent=5 // pred_check
        %p4089 = pneg %p4088
      $region70: #{encoder_forward.1} parent=5 // pred_check_branch
        %4091 = sbr.rel (%p4089) target = $region72
      $region71: #{encoder_forward.1} parent=5 // pred_region
        %s4092 = ssub.s32 %s20, 2
        // Predicated region
        $region73: #{encoder_forward.1} parent=71 // pred_check
          %p4093 = pneg %p243
        $region74: #{encoder_forward.1} parent=71 // pred_check_branch
          %4095 = sbr.rel (%p4093) target = $region76
        $region75: #{encoder_forward.1} parent=71 // pred_region
          %s4096 = sand.u32 %s228, 1
          %s4097 = scalar_lea.sflag [#allocation4], %s4096
          %s4098 = sand.u32 %s228, 1
          %s4099 = smul.addr %s4098, 16
          %s4100 = scalar_lea.vmem [#allocation7], %s4099
          %4101 = dma.done %s4097, 256
        $region76: #{encoder_forward.1} parent=71 // pred_fallthru
          _
      $region72: #{encoder_forward.1} parent=5 // pred_fallthru
        _
    $region6: #{encoder_forward.1} parent=1 // loop_footer
      %s24 = sadd.s32 1, %s20
    $region7: #{encoder_forward.1} parent=1 // loop_footer_branch
      %19 = sbr.rel target = $region3
    $region8: #{encoder_forward.1} parent=1 // loop_exit
      _
    %4102 = vsyncpa [#allocation3], 1
    %s4103 = scalar_lea.sflag [#allocation3], 1
    %4104 = vsyncpa %s4103, 1
    %4105 = vsyncpa [#allocation6], 1
    %4106 = vsyncpa [#allocation4], 1
    %s4107 = scalar_lea.sflag [#allocation4], 1
    %4108 = vsyncpa %s4107, 1

</llo_original>
